<compile_context>
chip_gen: v5e
topology: v5e:2x2
jax: 0.10.0
libtpu: 0.0.40
codegen_flags: <defaults>
</compile_context>

<pallas_src>
import numpy as np
import jax
import jax.numpy as jnp
from jax import lax
from jax.experimental import pallas as pl
from jax.experimental.pallas import tpu as pltpu


# ----------------------------- fused Pallas kernel -----------------------------

def make_fused_kernel(*, T, B_pad, H, K, V, num_dirs, start_idx):
    TB = T * B_pad
    H4 = 4 * H

    def kernel(ids_ref, emb_ref, wih_ref, whh_ref, bias_ref, lens_ref,
               wtag_ref, btag_ref, trans_ref, trans_end_ref,
               path_ref, score_ref,
               gx_sc, y_sc, bps_sc):
        # ---- 1. embedding lookup as a one-hot MXU matmul (bf16 in, f32 acc) ----
        iota_v = lax.broadcasted_iota(jnp.int32, (TB, V), 1)
        onehot = (ids_ref[...] == iota_v).astype(jnp.bfloat16)          # built directly in bf16
        x_bf = jnp.dot(onehot, emb_ref[...],
                       preferred_element_type=jnp.float32).astype(jnp.bfloat16)   # (TB, E)

        # ---- 2. input projection hoisted out of the recurrence ----
        # PyTorch gate order i, f, g, o packed on the lane axis (4H); bias =
        # b_ih + b_hh folded in.  ONE matmul per direction.
        for d in range(num_dirs):
            gx_sc[d] = (jnp.dot(x_bf, wih_ref[d],
                                preferred_element_type=jnp.float32)
                        + bias_ref[d])                                    # (TB, 4H)

        lens = lens_ref[...]                                              # (B_pad, 1)

        # ---- 3. LSTM recurrences: one h @ W_hh (H x 4H) per step per dir ----
        whh_mats = [whh_ref[d] for d in range(num_dirs)]                  # hoisted weight loads

        def lstm_step(d, t, h, c):
            r0 = t * B_pad
            gates = gx_sc[d, r0:r0 + B_pad, :] + jnp.dot(
                h.astype(jnp.bfloat16), whh_mats[d],
                preferred_element_type=jnp.float32)                       # (B_pad, 4H) packed
            sig = jax.nn.sigmoid(gates)                                   # one EUP pass (i,f,o live here)
            i_g = sig[:, 0:H]
            f_g = sig[:, H:2 * H]
            o_g = sig[:, 3 * H:4 * H]
            g_g = jnp.tanh(gates[:, 2 * H:3 * H])
            c_new = f_g * c + i_g * g_g
            h_new = o_g * jnp.tanh(c_new)
            mask = t < lens                                               # packed-sequence semantics
            h = jnp.where(mask, h_new, h)
            c = jnp.where(mask, c_new, c)
            # pad_packed -> zeros; directions concatenated on the lane axis
            y_sc[r0:r0 + B_pad, d * H:(d + 1) * H] = \
                jnp.where(mask, h, 0.0).astype(jnp.bfloat16)
            return h, c

        h_st = [jnp.zeros((B_pad, H), jnp.float32) for _ in range(num_dirs)]
        c_st = [jnp.zeros((B_pad, H), jnp.float32) for _ in range(num_dirs)]
        for s in range(T):
            # interleave fwd (t=s) and bwd (t=T-1-s): two independent chains.
            h_st[0], c_st[0] = lstm_step(0, s, h_st[0], c_st[0])
            if num_dirs == 2:
                h_st[1], c_st[1] = lstm_step(1, T - 1 - s, h_st[1], c_st[1])

        # ---- 4. hidden2tag: single (TB, 2H) x (2H, K) matmul over all steps ----
        feats = btag_ref[...] + jnp.dot(y_sc[...], wtag_ref[...],
                                        preferred_element_type=jnp.float32)   # (TB, K)

        # ---- 5. CRF viterbi forward max-recursion (2D running max/argmax) ----
        iota_k = lax.broadcasted_iota(jnp.int32, (B_pad, K), 1)
        alpha = jnp.where(iota_k == start_idx, 0.0, -10000.0).astype(jnp.float32)
        trans = trans_ref[...]                                             # (K, K) indexed [prev, cur]
        for t in range(T):
            feat = feats[t * B_pad:(t + 1) * B_pad, :]                     # (B_pad, K) aligned tile
            # running max over previous tag i of feat[b,j] + alpha[b,i] + trans[i,j]
            best = feat + alpha[:, 0:1] + trans[0:1, :]
            best_idx = jnp.zeros((B_pad, K), jnp.int32)
            for i in range(1, K):
                cand = feat + alpha[:, i:i + 1] + trans[i:i + 1, :]
                better = cand > best                                       # strict > keeps first max (tie-break)
                best_idx = jnp.where(better, i, best_idx)
                best = jnp.where(better, cand, best)
            bps_sc[t] = best_idx                                           # backpointers to VMEM scratch
            alpha = jnp.where(t < lens, best, alpha)

        alpha_end = alpha + trans_end_ref[...]                             # + trans[:, END_TAG]
        score_ref[...] = jnp.max(alpha_end, axis=-1, keepdims=True)
        bt = jnp.argmax(alpha_end, axis=-1).astype(jnp.int32)[:, None]     # (B_pad, 1)

        # ---- 6. backtrace; path built in a (B_pad, T) tile and stored once ----
        iota_t = lax.broadcasted_iota(jnp.int32, (B_pad, T), 1)
        path_acc = jnp.zeros((B_pad, T), jnp.int32)
        for s in range(T):
            t = T - 1 - s
            mask = t < lens
            path_acc = jnp.where(jnp.logical_and(mask, iota_t == t), bt, path_acc)
            # gather bps[t][b, bt[b]] via one-hot select (single index per row)
            sel = jnp.sum(jnp.where(iota_k == bt, bps_sc[t], 0), axis=-1, keepdims=True)
            bt = jnp.where(mask, sel, bt)
        path_ref[...] = path_acc                                           # single store

    return kernel


def run_fused(ids_col, emb, wih, whh, bias, lens_col, wtag, btag, trans, trans_end,
              *, T, B_pad, H, K, V, num_dirs, start_idx):
    TB = T * B_pad
    kernel = make_fused_kernel(T=T, B_pad=B_pad, H=H, K=K, V=V,
                               num_dirs=num_dirs, start_idx=start_idx)
    vmem = lambda: pl.BlockSpec(memory_space=pltpu.MemorySpace.VMEM)
    return pl.pallas_call(
        kernel,
        out_shape=(jax.ShapeDtypeStruct((B_pad, T), jnp.int32),      # decoded tags (padded)
                   jax.ShapeDtypeStruct((B_pad, 1), jnp.float32)),   # viterbi path score
        in_specs=[vmem() for _ in range(10)],
        out_specs=(vmem(), vmem()),
        scratch_shapes=[
            pltpu.VMEM((num_dirs, TB, 4 * H), jnp.float32),          # packed gate inputs
            pltpu.VMEM((TB, num_dirs * H), jnp.bfloat16),            # LSTM outputs, lane-concat dirs
            pltpu.VMEM((T, B_pad, K), jnp.int32),                    # viterbi backpointers
        ],
        compiler_params=pltpu.CompilerParams(
            vmem_limit_bytes=32 * 1024 * 1024),
    )(ids_col, emb, wih, whh, bias, lens_col, wtag, btag, trans, trans_end)


# ----------------------------- parameters (deterministic) -----------------------------

def init_params(key, vocab_size, tagset, embedding_dim, hidden_dim,
                num_layers, bidirectional, start_tag, end_tag):
    # TODO(synk): num_layers > 1 stacking (and inter-layer dropout, training-only)
    # is not fused into the kernel; the demo config uses num_layers=1.
    assert num_layers == 1
    K = len(tagset)
    num_dirs = 2 if bidirectional else 1
    H = hidden_dim // 2 if bidirectional else hidden_dim
    E = embedding_dim
    keys = list(jax.random.split(key, 4 + 4 * num_dirs))
    it = iter(keys)

    emb = jax.random.normal(next(it), (vocab_size, E), jnp.float32)

    wih, whh, bias = [], [], []
    for _ in range(num_dirs):
        w_ih = 0.2 * jax.random.normal(next(it), (4 * H, E), jnp.float32)   # PyTorch (4H, E), gates i,f,g,o
        w_hh = 0.2 * jax.random.normal(next(it), (4 * H, H), jnp.float32)
        b_ih = 0.1 * jax.random.normal(next(it), (4 * H,), jnp.float32)
        b_hh = 0.1 * jax.random.normal(next(it), (4 * H,), jnp.float32)
        wih.append(jnp.transpose(w_ih))                                     # (E, 4H) lane-packed gates
        whh.append(jnp.transpose(w_hh))                                     # (H, 4H)
        bias.append((b_ih + b_hh).reshape(1, 4 * H))

    w_tag = 0.3 * jax.random.normal(next(it), (K, hidden_dim), jnp.float32)  # nn.Linear(hidden_dim, K)
    b_tag = 0.1 * jax.random.normal(next(it), (K,), jnp.float32)

    trans = jax.random.normal(next(it), (K, K), jnp.float32)                 # trans[from, to] (reference convention)
    start_idx = tagset.index(start_tag)
    end_idx = tagset.index(end_tag)
    trans = trans.at[:, start_idx].set(-10000.0)
    trans = trans.at[end_idx, :].set(-10000.0)

    return dict(
        emb=emb.astype(jnp.bfloat16),                          # MXU operands in bf16, f32 accumulation
        wih=jnp.stack(wih).astype(jnp.bfloat16),               # (num_dirs, E, 4H)
        whh=jnp.stack(whh).astype(jnp.bfloat16),               # (num_dirs, H, 4H)
        bias=jnp.stack(bias).astype(jnp.float32),              # (num_dirs, 1, 4H)
        wtag=jnp.transpose(w_tag).astype(jnp.bfloat16),        # (num_dirs*H, K): rows 0:H fwd, H:2H bwd
        btag=b_tag.reshape(1, K).astype(jnp.float32),
        trans=trans.astype(jnp.float32),                       # indexed [prev, cur]
        trans_end=trans[:, end_idx].reshape(1, K).astype(jnp.float32),
        start_idx=start_idx, end_idx=end_idx,
    )


# ----------------------------- full forward (BiLSTM_CRF.forward) -----------------------------

def bilstm_crf_forward(params, token_ids, lens, *, hidden_dim, num_layers, bidirectional):
    assert num_layers == 1
    B, T = token_ids.shape
    num_dirs = 2 if bidirectional else 1
    H = hidden_dim // 2 if bidirectional else hidden_dim
    V = params['emb'].shape[0]
    K = params['trans'].shape[0]
    B_pad = ((B + 7) // 8) * 8                                 # pad batch to one sublane tile

    lens_np = np.asarray(lens, np.int32)
    # time-major-flattened padded token ids: row = t*B_pad + b
    ids_pad = jnp.zeros((B_pad, T), jnp.int32).at[:B].set(token_ids.astype(jnp.int32))
    ids_col = jnp.transpose(ids_pad).reshape(T * B_pad, 1)
    lens_col = jnp.zeros((B_pad, 1), jnp.int32).at[:B, 0].set(jnp.asarray(lens_np))

    path_pad, _score = run_fused(
        ids_col, params['emb'], params['wih'], params['whh'], params['bias'],
        lens_col, params['wtag'], params['btag'], params['trans'], params['trans_end'],
        T=T, B_pad=B_pad, H=H, K=K, V=V, num_dirs=num_dirs,
        start_idx=params['start_idx'])                          # path_pad: (B_pad, T)

    # flatten to the reference ordering (batch-major, valid positions only) with a
    # single device-side gather over statically precomputed indices.
    flat_idx = np.concatenate([b * T + np.arange(int(lens_np[b])) for b in range(B)]).astype(np.int32)
    return jnp.take(path_pad.reshape(-1), jnp.asarray(flat_idx))


# ----------------------------- main -----------------------------

if __name__ == "__main__":
    tagset = ["O", "B-X", "I-X", "E-X", "<START>", "<END>"]
    vocab_size, embedding_dim, hidden_dim = 20, 8, 16
    num_layers, bidirectional = 1, True

    key = jax.random.PRNGKey(0)
    k_par, k_tok = jax.random.split(key)
    params = init_params(k_par, vocab_size, tagset, embedding_dim, hidden_dim,
                         num_layers, bidirectional, "<START>", "<END>")

    B, T = 3, 8
    lens = np.array([8, 6, 4], dtype=np.int32)   # sorted desc (pack_padded_sequence req.)
    token_ids = jax.random.randint(k_tok, (B, T), 0, vocab_size, dtype=jnp.int32)
    # batch_mask equivalent (t < lens[b] over the (B*T) flattening) is realized via the
    # in-kernel length mask plus the final static-index gather.

    path = bilstm_crf_forward(params, token_ids, lens,
                              hidden_dim=hidden_dim, num_layers=num_layers,
                              bidirectional=bidirectional)
    path = jax.block_until_ready(path)
    assert path.shape == (int(lens.sum()),)
    assert path.dtype == jnp.int32
    print("KERNEL_OK")
</pallas_src>

<mosaic_0001>
module attributes {stable_mosaic.version = 11 : i64} {
  func.func @kernel(%arg0: memref<64x1xi32, #tpu.memory_space<vmem>>, %arg1: memref<20x8xbf16, #tpu.memory_space<vmem>>, %arg2: memref<2x8x32xbf16, #tpu.memory_space<vmem>>, %arg3: memref<2x8x32xbf16, #tpu.memory_space<vmem>>, %arg4: memref<2x1x32xf32, #tpu.memory_space<vmem>>, %arg5: memref<8x1xi32, #tpu.memory_space<vmem>>, %arg6: memref<16x6xbf16, #tpu.memory_space<vmem>>, %arg7: memref<1x6xf32, #tpu.memory_space<vmem>>, %arg8: memref<6x6xf32, #tpu.memory_space<vmem>>, %arg9: memref<1x6xf32, #tpu.memory_space<vmem>>, %arg10: memref<8x8xi32, #tpu.memory_space<vmem>>, %arg11: memref<8x1xf32, #tpu.memory_space<vmem>>, %arg12: memref<2x64x32xf32, #tpu.memory_space<vmem>>, %arg13: memref<64x16xbf16, #tpu.memory_space<vmem>>, %arg14: memref<8x8x6xi32, #tpu.memory_space<vmem>>) attributes {dimension_semantics = [], scalar_prefetch = 0 : i64, scratch_operands = 3 : i64, tpu.core_type = #tpu.core_type<tc>} {
    %0 = tpu.iota {dimensions = array<i32: 1>} : vector<64x20xi32>
    %c0 = arith.constant 0 : index
    %c0_0 = arith.constant 0 : index
    %1 = vector.load %arg0[%c0, %c0_0] : memref<64x1xi32, #tpu.memory_space<vmem>>, vector<64x1xi32>
    %2 = vector.broadcast %1 : vector<64x1xi32> to vector<64x20xi32>
    %3 = arith.cmpi eq, %2, %0 : vector<64x20xi32>
    %4 = arith.extui %3 : vector<64x20xi1> to vector<64x20xi32>
    %5 = arith.sitofp %4 : vector<64x20xi32> to vector<64x20xf32>
    %6 = arith.truncf %5 : vector<64x20xf32> to vector<64x20xbf16>
    %c0_1 = arith.constant 0 : index
    %c0_2 = arith.constant 0 : index
    %7 = vector.load %arg1[%c0_1, %c0_2] : memref<20x8xbf16, #tpu.memory_space<vmem>>, vector<20x8xbf16>
    %cst = arith.constant dense<0.000000e+00> : vector<64x8xf32>
    %8 = tpu.matmul %6, %7, %cst {dimension_numbers = #tpu.dot_dimension_numbers<[1], [0], [0], [1], [0, 0, 1, 1], [], []>} : vector<64x20xbf16>, vector<20x8xbf16>, vector<64x8xf32> -> vector<64x8xf32>
    %9 = arith.truncf %8 : vector<64x8xf32> to vector<64x8xbf16>
    %c0_3 = arith.constant 0 : index
    %c0_4 = arith.constant 0 : index
    %c0_5 = arith.constant 0 : index
    %10 = vector.load %arg2[%c0_3, %c0_4, %c0_5] : memref<2x8x32xbf16, #tpu.memory_space<vmem>>, vector<1x8x32xbf16>
    %11 = vector.shape_cast %10 : vector<1x8x32xbf16> to vector<8x32xbf16>
    %cst_6 = arith.constant dense<0.000000e+00> : vector<64x32xf32>
    %12 = tpu.matmul %9, %11, %cst_6 {dimension_numbers = #tpu.dot_dimension_numbers<[1], [0], [0], [1], [0, 0, 1, 1], [], []>} : vector<64x8xbf16>, vector<8x32xbf16>, vector<64x32xf32> -> vector<64x32xf32>
    %c0_7 = arith.constant 0 : index
    %c0_8 = arith.constant 0 : index
    %c0_9 = arith.constant 0 : index
    %13 = vector.load %arg4[%c0_7, %c0_8, %c0_9] : memref<2x1x32xf32, #tpu.memory_space<vmem>>, vector<1x1x32xf32>
    %14 = vector.shape_cast %13 : vector<1x1x32xf32> to vector<1x32xf32>
    %15 = vector.broadcast %14 : vector<1x32xf32> to vector<64x32xf32>
    %16 = arith.addf %12, %15 : vector<64x32xf32>
    %c0_10 = arith.constant 0 : index
    %c0_11 = arith.constant 0 : index
    %c0_12 = arith.constant 0 : index
    %17 = vector.load %arg12[%c0_10, %c0_11, %c0_12] : memref<2x64x32xf32, #tpu.memory_space<vmem>>, vector<1x64x32xf32>
    %18 = vector.shape_cast %17 : vector<1x64x32xf32> to vector<64x32xf32>
    %19 = vector.shape_cast %16 : vector<64x32xf32> to vector<1x64x32xf32>
    tpu.vector_store %arg12[%c0_10, %c0_11, %c0_12], %19 {strides = array<i32>} : memref<2x64x32xf32, #tpu.memory_space<vmem>>, vector<1x64x32xf32>,
    %c1 = arith.constant 1 : index
    %c0_13 = arith.constant 0 : index
    %c0_14 = arith.constant 0 : index
    %20 = vector.load %arg2[%c1, %c0_13, %c0_14] : memref<2x8x32xbf16, #tpu.memory_space<vmem>>, vector<1x8x32xbf16>
    %21 = vector.shape_cast %20 : vector<1x8x32xbf16> to vector<8x32xbf16>
    %cst_15 = arith.constant dense<0.000000e+00> : vector<64x32xf32>
    %22 = tpu.matmul %9, %21, %cst_15 {dimension_numbers = #tpu.dot_dimension_numbers<[1], [0], [0], [1], [0, 0, 1, 1], [], []>} : vector<64x8xbf16>, vector<8x32xbf16>, vector<64x32xf32> -> vector<64x32xf32>
    %c1_16 = arith.constant 1 : index
    %c0_17 = arith.constant 0 : index
    %c0_18 = arith.constant 0 : index
    %23 = vector.load %arg4[%c1_16, %c0_17, %c0_18] : memref<2x1x32xf32, #tpu.memory_space<vmem>>, vector<1x1x32xf32>
    %24 = vector.shape_cast %23 : vector<1x1x32xf32> to vector<1x32xf32>
    %25 = vector.broadcast %24 : vector<1x32xf32> to vector<64x32xf32>
    %26 = arith.addf %22, %25 : vector<64x32xf32>
    %c1_19 = arith.constant 1 : index
    %c0_20 = arith.constant 0 : index
    %c0_21 = arith.constant 0 : index
    %27 = vector.load %arg12[%c1_19, %c0_20, %c0_21] : memref<2x64x32xf32, #tpu.memory_space<vmem>>, vector<1x64x32xf32>
    %28 = vector.shape_cast %27 : vector<1x64x32xf32> to vector<64x32xf32>
    %29 = vector.shape_cast %26 : vector<64x32xf32> to vector<1x64x32xf32>
    tpu.vector_store %arg12[%c1_19, %c0_20, %c0_21], %29 {strides = array<i32>} : memref<2x64x32xf32, #tpu.memory_space<vmem>>, vector<1x64x32xf32>,
    %c0_22 = arith.constant 0 : index
    %c0_23 = arith.constant 0 : index
    %30 = vector.load %arg5[%c0_22, %c0_23] : memref<8x1xi32, #tpu.memory_space<vmem>>, vector<8x1xi32>
    %c0_24 = arith.constant 0 : index
    %c0_25 = arith.constant 0 : index
    %c0_26 = arith.constant 0 : index
    %31 = vector.load %arg3[%c0_24, %c0_25, %c0_26] : memref<2x8x32xbf16, #tpu.memory_space<vmem>>, vector<1x8x32xbf16>
    %32 = vector.shape_cast %31 : vector<1x8x32xbf16> to vector<8x32xbf16>
    %c1_27 = arith.constant 1 : index
    %c0_28 = arith.constant 0 : index
    %c0_29 = arith.constant 0 : index
    %33 = vector.load %arg3[%c1_27, %c0_28, %c0_29] : memref<2x8x32xbf16, #tpu.memory_space<vmem>>, vector<1x8x32xbf16>
    %34 = vector.shape_cast %33 : vector<1x8x32xbf16> to vector<8x32xbf16>
    %cst_30 = arith.constant 0.000000e+00 : f32
    %35 = vector.broadcast %cst_30 : f32 to vector<8x8xf32>
    %cst_31 = arith.constant 0.000000e+00 : f32
    %36 = vector.broadcast %cst_31 : f32 to vector<8x8xf32>
    %cst_32 = arith.constant 0.000000e+00 : f32
    %37 = vector.broadcast %cst_32 : f32 to vector<8x8xf32>
    %cst_33 = arith.constant 0.000000e+00 : f32
    %38 = vector.broadcast %cst_33 : f32 to vector<8x8xf32>
    %c0_34 = arith.constant 0 : index
    %c0_35 = arith.constant 0 : index
    %c0_36 = arith.constant 0 : index
    %39 = vector.load %arg12[%c0_34, %c0_35, %c0_36] : memref<2x64x32xf32, #tpu.memory_space<vmem>>, vector<1x8x32xf32>
    %40 = vector.shape_cast %39 : vector<1x8x32xf32> to vector<8x32xf32>
    %41 = arith.truncf %35 : vector<8x8xf32> to vector<8x8xbf16>
    %cst_37 = arith.constant dense<0.000000e+00> : vector<8x32xf32>
    %42 = tpu.matmul %41, %32, %cst_37 {dimension_numbers = #tpu.dot_dimension_numbers<[1], [0], [0], [1], [0, 0, 1, 1], [], []>} : vector<8x8xbf16>, vector<8x32xbf16>, vector<8x32xf32> -> vector<8x32xf32>
    %43 = arith.addf %40, %42 : vector<8x32xf32>
    %44 = arith.negf %43 : vector<8x32xf32>
    %45 = math.exp %44 : vector<8x32xf32>
    %cst_38 = arith.constant 1.000000e+00 : f32
    %46 = vector.broadcast %cst_38 : f32 to vector<8x32xf32>
    %47 = arith.addf %46, %45 : vector<8x32xf32>
    %48 = arith.divf %46, %47 : vector<8x32xf32>
    %49 = vector.extract_strided_slice %48 {offsets = [0, 0], sizes = [8, 8], strides = [1, 1]} : vector<8x32xf32> to vector<8x8xf32>
    %50 = vector.extract_strided_slice %48 {offsets = [0, 8], sizes = [8, 8], strides = [1, 1]} : vector<8x32xf32> to vector<8x8xf32>
    %51 = vector.extract_strided_slice %48 {offsets = [0, 24], sizes = [8, 8], strides = [1, 1]} : vector<8x32xf32> to vector<8x8xf32>
    %52 = vector.extract_strided_slice %43 {offsets = [0, 16], sizes = [8, 8], strides = [1, 1]} : vector<8x32xf32> to vector<8x8xf32>
    %53 = math.tanh %52 : vector<8x8xf32>
    %54 = arith.mulf %50, %37 : vector<8x8xf32>
    %55 = arith.mulf %49, %53 : vector<8x8xf32>
    %56 = arith.addf %54, %55 : vector<8x8xf32>
    %57 = math.tanh %56 : vector<8x8xf32>
    %58 = arith.mulf %51, %57 : vector<8x8xf32>
    %c0_i32 = arith.constant 0 : i32
    %59 = vector.broadcast %c0_i32 : i32 to vector<8x1xi32>
    %60 = arith.cmpi sgt, %30, %59 : vector<8x1xi32>
    %61 = vector.shape_cast %60 : vector<8x1xi1> to vector<8x1xi1>
    %62 = vector.broadcast %61 : vector<8x1xi1> to vector<8x8xi1>
    %63 = arith.select %62, %58, %35 : vector<8x8xi1>, vector<8x8xf32>
    %64 = vector.shape_cast %60 : vector<8x1xi1> to vector<8x1xi1>
    %65 = vector.broadcast %64 : vector<8x1xi1> to vector<8x8xi1>
    %66 = arith.select %65, %56, %37 : vector<8x8xi1>, vector<8x8xf32>
    %cst_39 = arith.constant 0.000000e+00 : f32
    %67 = vector.shape_cast %60 : vector<8x1xi1> to vector<8x1xi1>
    %68 = vector.broadcast %67 : vector<8x1xi1> to vector<8x8xi1>
    %69 = vector.broadcast %cst_39 : f32 to vector<8x8xf32>
    %70 = arith.select %68, %63, %69 : vector<8x8xi1>, vector<8x8xf32>
    %71 = arith.truncf %70 : vector<8x8xf32> to vector<8x8xbf16>
    %c0_40 = arith.constant 0 : index
    %c0_41 = arith.constant 0 : index
    %72 = vector.load %arg13[%c0_40, %c0_41] : memref<64x16xbf16, #tpu.memory_space<vmem>>, vector<8x8xbf16>
    tpu.vector_store %arg13[%c0_40, %c0_41], %71 {strides = array<i32>} : memref<64x16xbf16, #tpu.memory_space<vmem>>, vector<8x8xbf16>,
    %c1_42 = arith.constant 1 : index
    %c56 = arith.constant 56 : index
    %c0_43 = arith.constant 0 : index
    %73 = vector.load %arg12[%c1_42, %c56, %c0_43] : memref<2x64x32xf32, #tpu.memory_space<vmem>>, vector<1x8x32xf32>
    %74 = vector.shape_cast %73 : vector<1x8x32xf32> to vector<8x32xf32>
    %75 = arith.truncf %36 : vector<8x8xf32> to vector<8x8xbf16>
    %cst_44 = arith.constant dense<0.000000e+00> : vector<8x32xf32>
    %76 = tpu.matmul %75, %34, %cst_44 {dimension_numbers = #tpu.dot_dimension_numbers<[1], [0], [0], [1], [0, 0, 1, 1], [], []>} : vector<8x8xbf16>, vector<8x32xbf16>, vector<8x32xf32> -> vector<8x32xf32>
    %77 = arith.addf %74, %76 : vector<8x32xf32>
    %78 = arith.negf %77 : vector<8x32xf32>
    %79 = math.exp %78 : vector<8x32xf32>
    %cst_45 = arith.constant 1.000000e+00 : f32
    %80 = vector.broadcast %cst_45 : f32 to vector<8x32xf32>
    %81 = arith.addf %80, %79 : vector<8x32xf32>
    %82 = arith.divf %80, %81 : vector<8x32xf32>
    %83 = vector.extract_strided_slice %82 {offsets = [0, 0], sizes = [8, 8], strides = [1, 1]} : vector<8x32xf32> to vector<8x8xf32>
    %84 = vector.extract_strided_slice %82 {offsets = [0, 8], sizes = [8, 8], strides = [1, 1]} : vector<8x32xf32> to vector<8x8xf32>
    %85 = vector.extract_strided_slice %82 {offsets = [0, 24], sizes = [8, 8], strides = [1, 1]} : vector<8x32xf32> to vector<8x8xf32>
    %86 = vector.extract_strided_slice %77 {offsets = [0, 16], sizes = [8, 8], strides = [1, 1]} : vector<8x32xf32> to vector<8x8xf32>
    %87 = math.tanh %86 : vector<8x8xf32>
    %88 = arith.mulf %84, %38 : vector<8x8xf32>
    %89 = arith.mulf %83, %87 : vector<8x8xf32>
    %90 = arith.addf %88, %89 : vector<8x8xf32>
    %91 = math.tanh %90 : vector<8x8xf32>
    %92 = arith.mulf %85, %91 : vector<8x8xf32>
    %c7_i32 = arith.constant 7 : i32
    %93 = vector.broadcast %c7_i32 : i32 to vector<8x1xi32>
    %94 = arith.cmpi sgt, %30, %93 : vector<8x1xi32>
    %95 = vector.shape_cast %94 : vector<8x1xi1> to vector<8x1xi1>
    %96 = vector.broadcast %95 : vector<8x1xi1> to vector<8x8xi1>
    %97 = arith.select %96, %92, %36 : vector<8x8xi1>, vector<8x8xf32>
    %98 = vector.shape_cast %94 : vector<8x1xi1> to vector<8x1xi1>
    %99 = vector.broadcast %98 : vector<8x1xi1> to vector<8x8xi1>
    %100 = arith.select %99, %90, %38 : vector<8x8xi1>, vector<8x8xf32>
    %cst_46 = arith.constant 0.000000e+00 : f32
    %101 = vector.shape_cast %94 : vector<8x1xi1> to vector<8x1xi1>
    %102 = vector.broadcast %101 : vector<8x1xi1> to vector<8x8xi1>
    %103 = vector.broadcast %cst_46 : f32 to vector<8x8xf32>
    %104 = arith.select %102, %97, %103 : vector<8x8xi1>, vector<8x8xf32>
    %105 = arith.truncf %104 : vector<8x8xf32> to vector<8x8xbf16>
    %c56_47 = arith.constant 56 : index
    %c8 = arith.constant 8 : index
    %106 = vector.load %arg13[%c56_47, %c8] : memref<64x16xbf16, #tpu.memory_space<vmem>>, vector<8x8xbf16>
    tpu.vector_store %arg13[%c56_47, %c8], %105 {strides = array<i32>} : memref<64x16xbf16, #tpu.memory_space<vmem>>, vector<8x8xbf16>,
    %c0_48 = arith.constant 0 : index
    %c8_49 = arith.constant 8 : index
    %c0_50 = arith.constant 0 : index
    %107 = vector.load %arg12[%c0_48, %c8_49, %c0_50] : memref<2x64x32xf32, #tpu.memory_space<vmem>>, vector<1x8x32xf32>
    %108 = vector.shape_cast %107 : vector<1x8x32xf32> to vector<8x32xf32>
    %109 = arith.truncf %63 : vector<8x8xf32> to vector<8x8xbf16>
    %cst_51 = arith.constant dense<0.000000e+00> : vector<8x32xf32>
    %110 = tpu.matmul %109, %32, %cst_51 {dimension_numbers = #tpu.dot_dimension_numbers<[1], [0], [0], [1], [0, 0, 1, 1], [], []>} : vector<8x8xbf16>, vector<8x32xbf16>, vector<8x32xf32> -> vector<8x32xf32>
    %111 = arith.addf %108, %110 : vector<8x32xf32>
    %112 = arith.negf %111 : vector<8x32xf32>
    %113 = math.exp %112 : vector<8x32xf32>
    %cst_52 = arith.constant 1.000000e+00 : f32
    %114 = vector.broadcast %cst_52 : f32 to vector<8x32xf32>
    %115 = arith.addf %114, %113 : vector<8x32xf32>
    %116 = arith.divf %114, %115 : vector<8x32xf32>
    %117 = vector.extract_strided_slice %116 {offsets = [0, 0], sizes = [8, 8], strides = [1, 1]} : vector<8x32xf32> to vector<8x8xf32>
    %118 = vector.extract_strided_slice %116 {offsets = [0, 8], sizes = [8, 8], strides = [1, 1]} : vector<8x32xf32> to vector<8x8xf32>
    %119 = vector.extract_strided_slice %116 {offsets = [0, 24], sizes = [8, 8], strides = [1, 1]} : vector<8x32xf32> to vector<8x8xf32>
    %120 = vector.extract_strided_slice %111 {offsets = [0, 16], sizes = [8, 8], strides = [1, 1]} : vector<8x32xf32> to vector<8x8xf32>
    %121 = math.tanh %120 : vector<8x8xf32>
    %122 = arith.mulf %118, %66 : vector<8x8xf32>
    %123 = arith.mulf %117, %121 : vector<8x8xf32>
    %124 = arith.addf %122, %123 : vector<8x8xf32>
    %125 = math.tanh %124 : vector<8x8xf32>
    %126 = arith.mulf %119, %125 : vector<8x8xf32>
    %c1_i32 = arith.constant 1 : i32
    %127 = vector.broadcast %c1_i32 : i32 to vector<8x1xi32>
    %128 = arith.cmpi sgt, %30, %127 : vector<8x1xi32>
    %129 = vector.shape_cast %128 : vector<8x1xi1> to vector<8x1xi1>
    %130 = vector.broadcast %129 : vector<8x1xi1> to vector<8x8xi1>
    %131 = arith.select %130, %126, %63 : vector<8x8xi1>, vector<8x8xf32>
    %132 = vector.shape_cast %128 : vector<8x1xi1> to vector<8x1xi1>
    %133 = vector.broadcast %132 : vector<8x1xi1> to vector<8x8xi1>
    %134 = arith.select %133, %124, %66 : vector<8x8xi1>, vector<8x8xf32>
    %cst_53 = arith.constant 0.000000e+00 : f32
    %135 = vector.shape_cast %128 : vector<8x1xi1> to vector<8x1xi1>
    %136 = vector.broadcast %135 : vector<8x1xi1> to vector<8x8xi1>
    %137 = vector.broadcast %cst_53 : f32 to vector<8x8xf32>
    %138 = arith.select %136, %131, %137 : vector<8x8xi1>, vector<8x8xf32>
    %139 = arith.truncf %138 : vector<8x8xf32> to vector<8x8xbf16>
    %c8_54 = arith.constant 8 : index
    %c0_55 = arith.constant 0 : index
    %140 = vector.load %arg13[%c8_54, %c0_55] : memref<64x16xbf16, #tpu.memory_space<vmem>>, vector<8x8xbf16>
    tpu.vector_store %arg13[%c8_54, %c0_55], %139 {strides = array<i32>} : memref<64x16xbf16, #tpu.memory_space<vmem>>, vector<8x8xbf16>,
    %c1_56 = arith.constant 1 : index
    %c48 = arith.constant 48 : index
    %c0_57 = arith.constant 0 : index
    %141 = vector.load %arg12[%c1_56, %c48, %c0_57] : memref<2x64x32xf32, #tpu.memory_space<vmem>>, vector<1x8x32xf32>
    %142 = vector.shape_cast %141 : vector<1x8x32xf32> to vector<8x32xf32>
    %143 = arith.truncf %97 : vector<8x8xf32> to vector<8x8xbf16>
    %cst_58 = arith.constant dense<0.000000e+00> : vector<8x32xf32>
    %144 = tpu.matmul %143, %34, %cst_58 {dimension_numbers = #tpu.dot_dimension_numbers<[1], [0], [0], [1], [0, 0, 1, 1], [], []>} : vector<8x8xbf16>, vector<8x32xbf16>, vector<8x32xf32> -> vector<8x32xf32>
    %145 = arith.addf %142, %144 : vector<8x32xf32>
    %146 = arith.negf %145 : vector<8x32xf32>
    %147 = math.exp %146 : vector<8x32xf32>
    %cst_59 = arith.constant 1.000000e+00 : f32
    %148 = vector.broadcast %cst_59 : f32 to vector<8x32xf32>
    %149 = arith.addf %148, %147 : vector<8x32xf32>
    %150 = arith.divf %148, %149 : vector<8x32xf32>
    %151 = vector.extract_strided_slice %150 {offsets = [0, 0], sizes = [8, 8], strides = [1, 1]} : vector<8x32xf32> to vector<8x8xf32>
    %152 = vector.extract_strided_slice %150 {offsets = [0, 8], sizes = [8, 8], strides = [1, 1]} : vector<8x32xf32> to vector<8x8xf32>
    %153 = vector.extract_strided_slice %150 {offsets = [0, 24], sizes = [8, 8], strides = [1, 1]} : vector<8x32xf32> to vector<8x8xf32>
    %154 = vector.extract_strided_slice %145 {offsets = [0, 16], sizes = [8, 8], strides = [1, 1]} : vector<8x32xf32> to vector<8x8xf32>
    %155 = math.tanh %154 : vector<8x8xf32>
    %156 = arith.mulf %152, %100 : vector<8x8xf32>
    %157 = arith.mulf %151, %155 : vector<8x8xf32>
    %158 = arith.addf %156, %157 : vector<8x8xf32>
    %159 = math.tanh %158 : vector<8x8xf32>
    %160 = arith.mulf %153, %159 : vector<8x8xf32>
    %c6_i32 = arith.constant 6 : i32
    %161 = vector.broadcast %c6_i32 : i32 to vector<8x1xi32>
    %162 = arith.cmpi sgt, %30, %161 : vector<8x1xi32>
    %163 = vector.shape_cast %162 : vector<8x1xi1> to vector<8x1xi1>
    %164 = vector.broadcast %163 : vector<8x1xi1> to vector<8x8xi1>
    %165 = arith.select %164, %160, %97 : vector<8x8xi1>, vector<8x8xf32>
    %166 = vector.shape_cast %162 : vector<8x1xi1> to vector<8x1xi1>
    %167 = vector.broadcast %166 : vector<8x1xi1> to vector<8x8xi1>
    %168 = arith.select %167, %158, %100 : vector<8x8xi1>, vector<8x8xf32>
    %cst_60 = arith.constant 0.000000e+00 : f32
    %169 = vector.shape_cast %162 : vector<8x1xi1> to vector<8x1xi1>
    %170 = vector.broadcast %169 : vector<8x1xi1> to vector<8x8xi1>
    %171 = vector.broadcast %cst_60 : f32 to vector<8x8xf32>
    %172 = arith.select %170, %165, %171 : vector<8x8xi1>, vector<8x8xf32>
    %173 = arith.truncf %172 : vector<8x8xf32> to vector<8x8xbf16>
    %c48_61 = arith.constant 48 : index
    %c8_62 = arith.constant 8 : index
    %174 = vector.load %arg13[%c48_61, %c8_62] : memref<64x16xbf16, #tpu.memory_space<vmem>>, vector<8x8xbf16>
    tpu.vector_store %arg13[%c48_61, %c8_62], %173 {strides = array<i32>} : memref<64x16xbf16, #tpu.memory_space<vmem>>, vector<8x8xbf16>,
    %c0_63 = arith.constant 0 : index
    %c16 = arith.constant 16 : index
    %c0_64 = arith.constant 0 : index
    %175 = vector.load %arg12[%c0_63, %c16, %c0_64] : memref<2x64x32xf32, #tpu.memory_space<vmem>>, vector<1x8x32xf32>
    %176 = vector.shape_cast %175 : vector<1x8x32xf32> to vector<8x32xf32>
    %177 = arith.truncf %131 : vector<8x8xf32> to vector<8x8xbf16>
    %cst_65 = arith.constant dense<0.000000e+00> : vector<8x32xf32>
    %178 = tpu.matmul %177, %32, %cst_65 {dimension_numbers = #tpu.dot_dimension_numbers<[1], [0], [0], [1], [0, 0, 1, 1], [], []>} : vector<8x8xbf16>, vector<8x32xbf16>, vector<8x32xf32> -> vector<8x32xf32>
    %179 = arith.addf %176, %178 : vector<8x32xf32>
    %180 = arith.negf %179 : vector<8x32xf32>
    %181 = math.exp %180 : vector<8x32xf32>
    %cst_66 = arith.constant 1.000000e+00 : f32
    %182 = vector.broadcast %cst_66 : f32 to vector<8x32xf32>
    %183 = arith.addf %182, %181 : vector<8x32xf32>
    %184 = arith.divf %182, %183 : vector<8x32xf32>
    %185 = vector.extract_strided_slice %184 {offsets = [0, 0], sizes = [8, 8], strides = [1, 1]} : vector<8x32xf32> to vector<8x8xf32>
    %186 = vector.extract_strided_slice %184 {offsets = [0, 8], sizes = [8, 8], strides = [1, 1]} : vector<8x32xf32> to vector<8x8xf32>
    %187 = vector.extract_strided_slice %184 {offsets = [0, 24], sizes = [8, 8], strides = [1, 1]} : vector<8x32xf32> to vector<8x8xf32>
    %188 = vector.extract_strided_slice %179 {offsets = [0, 16], sizes = [8, 8], strides = [1, 1]} : vector<8x32xf32> to vector<8x8xf32>
    %189 = math.tanh %188 : vector<8x8xf32>
    %190 = arith.mulf %186, %134 : vector<8x8xf32>
    %191 = arith.mulf %185, %189 : vector<8x8xf32>
    %192 = arith.addf %190, %191 : vector<8x8xf32>
    %193 = math.tanh %192 : vector<8x8xf32>
    %194 = arith.mulf %187, %193 : vector<8x8xf32>
    %c2_i32 = arith.constant 2 : i32
    %195 = vector.broadcast %c2_i32 : i32 to vector<8x1xi32>
    %196 = arith.cmpi sgt, %30, %195 : vector<8x1xi32>
    %197 = vector.shape_cast %196 : vector<8x1xi1> to vector<8x1xi1>
    %198 = vector.broadcast %197 : vector<8x1xi1> to vector<8x8xi1>
    %199 = arith.select %198, %194, %131 : vector<8x8xi1>, vector<8x8xf32>
    %200 = vector.shape_cast %196 : vector<8x1xi1> to vector<8x1xi1>
    %201 = vector.broadcast %200 : vector<8x1xi1> to vector<8x8xi1>
    %202 = arith.select %201, %192, %134 : vector<8x8xi1>, vector<8x8xf32>
    %cst_67 = arith.constant 0.000000e+00 : f32
    %203 = vector.shape_cast %196 : vector<8x1xi1> to vector<8x1xi1>
    %204 = vector.broadcast %203 : vector<8x1xi1> to vector<8x8xi1>
    %205 = vector.broadcast %cst_67 : f32 to vector<8x8xf32>
    %206 = arith.select %204, %199, %205 : vector<8x8xi1>, vector<8x8xf32>
    %207 = arith.truncf %206 : vector<8x8xf32> to vector<8x8xbf16>
    %c16_68 = arith.constant 16 : index
    %c0_69 = arith.constant 0 : index
    %208 = vector.load %arg13[%c16_68, %c0_69] : memref<64x16xbf16, #tpu.memory_space<vmem>>, vector<8x8xbf16>
    tpu.vector_store %arg13[%c16_68, %c0_69], %207 {strides = array<i32>} : memref<64x16xbf16, #tpu.memory_space<vmem>>, vector<8x8xbf16>,
    %c1_70 = arith.constant 1 : index
    %c40 = arith.constant 40 : index
    %c0_71 = arith.constant 0 : index
    %209 = vector.load %arg12[%c1_70, %c40, %c0_71] : memref<2x64x32xf32, #tpu.memory_space<vmem>>, vector<1x8x32xf32>
    %210 = vector.shape_cast %209 : vector<1x8x32xf32> to vector<8x32xf32>
    %211 = arith.truncf %165 : vector<8x8xf32> to vector<8x8xbf16>
    %cst_72 = arith.constant dense<0.000000e+00> : vector<8x32xf32>
    %212 = tpu.matmul %211, %34, %cst_72 {dimension_numbers = #tpu.dot_dimension_numbers<[1], [0], [0], [1], [0, 0, 1, 1], [], []>} : vector<8x8xbf16>, vector<8x32xbf16>, vector<8x32xf32> -> vector<8x32xf32>
    %213 = arith.addf %210, %212 : vector<8x32xf32>
    %214 = arith.negf %213 : vector<8x32xf32>
    %215 = math.exp %214 : vector<8x32xf32>
    %cst_73 = arith.constant 1.000000e+00 : f32
    %216 = vector.broadcast %cst_73 : f32 to vector<8x32xf32>
    %217 = arith.addf %216, %215 : vector<8x32xf32>
    %218 = arith.divf %216, %217 : vector<8x32xf32>
    %219 = vector.extract_strided_slice %218 {offsets = [0, 0], sizes = [8, 8], strides = [1, 1]} : vector<8x32xf32> to vector<8x8xf32>
    %220 = vector.extract_strided_slice %218 {offsets = [0, 8], sizes = [8, 8], strides = [1, 1]} : vector<8x32xf32> to vector<8x8xf32>
    %221 = vector.extract_strided_slice %218 {offsets = [0, 24], sizes = [8, 8], strides = [1, 1]} : vector<8x32xf32> to vector<8x8xf32>
    %222 = vector.extract_strided_slice %213 {offsets = [0, 16], sizes = [8, 8], strides = [1, 1]} : vector<8x32xf32> to vector<8x8xf32>
    %223 = math.tanh %222 : vector<8x8xf32>
    %224 = arith.mulf %220, %168 : vector<8x8xf32>
    %225 = arith.mulf %219, %223 : vector<8x8xf32>
    %226 = arith.addf %224, %225 : vector<8x8xf32>
    %227 = math.tanh %226 : vector<8x8xf32>
    %228 = arith.mulf %221, %227 : vector<8x8xf32>
    %c5_i32 = arith.constant 5 : i32
    %229 = vector.broadcast %c5_i32 : i32 to vector<8x1xi32>
    %230 = arith.cmpi sgt, %30, %229 : vector<8x1xi32>
    %231 = vector.shape_cast %230 : vector<8x1xi1> to vector<8x1xi1>
    %232 = vector.broadcast %231 : vector<8x1xi1> to vector<8x8xi1>
    %233 = arith.select %232, %228, %165 : vector<8x8xi1>, vector<8x8xf32>
    %234 = vector.shape_cast %230 : vector<8x1xi1> to vector<8x1xi1>
    %235 = vector.broadcast %234 : vector<8x1xi1> to vector<8x8xi1>
    %236 = arith.select %235, %226, %168 : vector<8x8xi1>, vector<8x8xf32>
    %cst_74 = arith.constant 0.000000e+00 : f32
    %237 = vector.shape_cast %230 : vector<8x1xi1> to vector<8x1xi1>
    %238 = vector.broadcast %237 : vector<8x1xi1> to vector<8x8xi1>
    %239 = vector.broadcast %cst_74 : f32 to vector<8x8xf32>
    %240 = arith.select %238, %233, %239 : vector<8x8xi1>, vector<8x8xf32>
    %241 = arith.truncf %240 : vector<8x8xf32> to vector<8x8xbf16>
    %c40_75 = arith.constant 40 : index
    %c8_76 = arith.constant 8 : index
    %242 = vector.load %arg13[%c40_75, %c8_76] : memref<64x16xbf16, #tpu.memory_space<vmem>>, vector<8x8xbf16>
    tpu.vector_store %arg13[%c40_75, %c8_76], %241 {strides = array<i32>} : memref<64x16xbf16, #tpu.memory_space<vmem>>, vector<8x8xbf16>,
    %c0_77 = arith.constant 0 : index
    %c24 = arith.constant 24 : index
    %c0_78 = arith.constant 0 : index
    %243 = vector.load %arg12[%c0_77, %c24, %c0_78] : memref<2x64x32xf32, #tpu.memory_space<vmem>>, vector<1x8x32xf32>
    %244 = vector.shape_cast %243 : vector<1x8x32xf32> to vector<8x32xf32>
    %245 = arith.truncf %199 : vector<8x8xf32> to vector<8x8xbf16>
    %cst_79 = arith.constant dense<0.000000e+00> : vector<8x32xf32>
    %246 = tpu.matmul %245, %32, %cst_79 {dimension_numbers = #tpu.dot_dimension_numbers<[1], [0], [0], [1], [0, 0, 1, 1], [], []>} : vector<8x8xbf16>, vector<8x32xbf16>, vector<8x32xf32> -> vector<8x32xf32>
    %247 = arith.addf %244, %246 : vector<8x32xf32>
    %248 = arith.negf %247 : vector<8x32xf32>
    %249 = math.exp %248 : vector<8x32xf32>
    %cst_80 = arith.constant 1.000000e+00 : f32
    %250 = vector.broadcast %cst_80 : f32 to vector<8x32xf32>
    %251 = arith.addf %250, %249 : vector<8x32xf32>
    %252 = arith.divf %250, %251 : vector<8x32xf32>
    %253 = vector.extract_strided_slice %252 {offsets = [0, 0], sizes = [8, 8], strides = [1, 1]} : vector<8x32xf32> to vector<8x8xf32>
    %254 = vector.extract_strided_slice %252 {offsets = [0, 8], sizes = [8, 8], strides = [1, 1]} : vector<8x32xf32> to vector<8x8xf32>
    %255 = vector.extract_strided_slice %252 {offsets = [0, 24], sizes = [8, 8], strides = [1, 1]} : vector<8x32xf32> to vector<8x8xf32>
    %256 = vector.extract_strided_slice %247 {offsets = [0, 16], sizes = [8, 8], strides = [1, 1]} : vector<8x32xf32> to vector<8x8xf32>
    %257 = math.tanh %256 : vector<8x8xf32>
    %258 = arith.mulf %254, %202 : vector<8x8xf32>
    %259 = arith.mulf %253, %257 : vector<8x8xf32>
    %260 = arith.addf %258, %259 : vector<8x8xf32>
    %261 = math.tanh %260 : vector<8x8xf32>
    %262 = arith.mulf %255, %261 : vector<8x8xf32>
    %c3_i32 = arith.constant 3 : i32
    %263 = vector.broadcast %c3_i32 : i32 to vector<8x1xi32>
    %264 = arith.cmpi sgt, %30, %263 : vector<8x1xi32>
    %265 = vector.shape_cast %264 : vector<8x1xi1> to vector<8x1xi1>
    %266 = vector.broadcast %265 : vector<8x1xi1> to vector<8x8xi1>
    %267 = arith.select %266, %262, %199 : vector<8x8xi1>, vector<8x8xf32>
    %268 = vector.shape_cast %264 : vector<8x1xi1> to vector<8x1xi1>
    %269 = vector.broadcast %268 : vector<8x1xi1> to vector<8x8xi1>
    %270 = arith.select %269, %260, %202 : vector<8x8xi1>, vector<8x8xf32>
    %cst_81 = arith.constant 0.000000e+00 : f32
    %271 = vector.shape_cast %264 : vector<8x1xi1> to vector<8x1xi1>
    %272 = vector.broadcast %271 : vector<8x1xi1> to vector<8x8xi1>
    %273 = vector.broadcast %cst_81 : f32 to vector<8x8xf32>
    %274 = arith.select %272, %267, %273 : vector<8x8xi1>, vector<8x8xf32>
    %275 = arith.truncf %274 : vector<8x8xf32> to vector<8x8xbf16>
    %c24_82 = arith.constant 24 : index
    %c0_83 = arith.constant 0 : index
    %276 = vector.load %arg13[%c24_82, %c0_83] : memref<64x16xbf16, #tpu.memory_space<vmem>>, vector<8x8xbf16>
    tpu.vector_store %arg13[%c24_82, %c0_83], %275 {strides = array<i32>} : memref<64x16xbf16, #tpu.memory_space<vmem>>, vector<8x8xbf16>,
    %c1_84 = arith.constant 1 : index
    %c32 = arith.constant 32 : index
    %c0_85 = arith.constant 0 : index
    %277 = vector.load %arg12[%c1_84, %c32, %c0_85] : memref<2x64x32xf32, #tpu.memory_space<vmem>>, vector<1x8x32xf32>
    %278 = vector.shape_cast %277 : vector<1x8x32xf32> to vector<8x32xf32>
    %279 = arith.truncf %233 : vector<8x8xf32> to vector<8x8xbf16>
    %cst_86 = arith.constant dense<0.000000e+00> : vector<8x32xf32>
    %280 = tpu.matmul %279, %34, %cst_86 {dimension_numbers = #tpu.dot_dimension_numbers<[1], [0], [0], [1], [0, 0, 1, 1], [], []>} : vector<8x8xbf16>, vector<8x32xbf16>, vector<8x32xf32> -> vector<8x32xf32>
    %281 = arith.addf %278, %280 : vector<8x32xf32>
    %282 = arith.negf %281 : vector<8x32xf32>
    %283 = math.exp %282 : vector<8x32xf32>
    %cst_87 = arith.constant 1.000000e+00 : f32
    %284 = vector.broadcast %cst_87 : f32 to vector<8x32xf32>
    %285 = arith.addf %284, %283 : vector<8x32xf32>
    %286 = arith.divf %284, %285 : vector<8x32xf32>
    %287 = vector.extract_strided_slice %286 {offsets = [0, 0], sizes = [8, 8], strides = [1, 1]} : vector<8x32xf32> to vector<8x8xf32>
    %288 = vector.extract_strided_slice %286 {offsets = [0, 8], sizes = [8, 8], strides = [1, 1]} : vector<8x32xf32> to vector<8x8xf32>
    %289 = vector.extract_strided_slice %286 {offsets = [0, 24], sizes = [8, 8], strides = [1, 1]} : vector<8x32xf32> to vector<8x8xf32>
    %290 = vector.extract_strided_slice %281 {offsets = [0, 16], sizes = [8, 8], strides = [1, 1]} : vector<8x32xf32> to vector<8x8xf32>
    %291 = math.tanh %290 : vector<8x8xf32>
    %292 = arith.mulf %288, %236 : vector<8x8xf32>
    %293 = arith.mulf %287, %291 : vector<8x8xf32>
    %294 = arith.addf %292, %293 : vector<8x8xf32>
    %295 = math.tanh %294 : vector<8x8xf32>
    %296 = arith.mulf %289, %295 : vector<8x8xf32>
    %c4_i32 = arith.constant 4 : i32
    %297 = vector.broadcast %c4_i32 : i32 to vector<8x1xi32>
    %298 = arith.cmpi sgt, %30, %297 : vector<8x1xi32>
    %299 = vector.shape_cast %298 : vector<8x1xi1> to vector<8x1xi1>
    %300 = vector.broadcast %299 : vector<8x1xi1> to vector<8x8xi1>
    %301 = arith.select %300, %296, %233 : vector<8x8xi1>, vector<8x8xf32>
    %302 = vector.shape_cast %298 : vector<8x1xi1> to vector<8x1xi1>
    %303 = vector.broadcast %302 : vector<8x1xi1> to vector<8x8xi1>
    %304 = arith.select %303, %294, %236 : vector<8x8xi1>, vector<8x8xf32>
    %cst_88 = arith.constant 0.000000e+00 : f32
    %305 = vector.shape_cast %298 : vector<8x1xi1> to vector<8x1xi1>
    %306 = vector.broadcast %305 : vector<8x1xi1> to vector<8x8xi1>
    %307 = vector.broadcast %cst_88 : f32 to vector<8x8xf32>
    %308 = arith.select %306, %301, %307 : vector<8x8xi1>, vector<8x8xf32>
    %309 = arith.truncf %308 : vector<8x8xf32> to vector<8x8xbf16>
    %c32_89 = arith.constant 32 : index
    %c8_90 = arith.constant 8 : index
    %310 = vector.load %arg13[%c32_89, %c8_90] : memref<64x16xbf16, #tpu.memory_space<vmem>>, vector<8x8xbf16>
    tpu.vector_store %arg13[%c32_89, %c8_90], %309 {strides = array<i32>} : memref<64x16xbf16, #tpu.memory_space<vmem>>, vector<8x8xbf16>,
    %c0_91 = arith.constant 0 : index
    %c32_92 = arith.constant 32 : index
    %c0_93 = arith.constant 0 : index
    %311 = vector.load %arg12[%c0_91, %c32_92, %c0_93] : memref<2x64x32xf32, #tpu.memory_space<vmem>>, vector<1x8x32xf32>
    %312 = vector.shape_cast %311 : vector<1x8x32xf32> to vector<8x32xf32>
    %313 = arith.truncf %267 : vector<8x8xf32> to vector<8x8xbf16>
    %cst_94 = arith.constant dense<0.000000e+00> : vector<8x32xf32>
    %314 = tpu.matmul %313, %32, %cst_94 {dimension_numbers = #tpu.dot_dimension_numbers<[1], [0], [0], [1], [0, 0, 1, 1], [], []>} : vector<8x8xbf16>, vector<8x32xbf16>, vector<8x32xf32> -> vector<8x32xf32>
    %315 = arith.addf %312, %314 : vector<8x32xf32>
    %316 = arith.negf %315 : vector<8x32xf32>
    %317 = math.exp %316 : vector<8x32xf32>
    %cst_95 = arith.constant 1.000000e+00 : f32
    %318 = vector.broadcast %cst_95 : f32 to vector<8x32xf32>
    %319 = arith.addf %318, %317 : vector<8x32xf32>
    %320 = arith.divf %318, %319 : vector<8x32xf32>
    %321 = vector.extract_strided_slice %320 {offsets = [0, 0], sizes = [8, 8], strides = [1, 1]} : vector<8x32xf32> to vector<8x8xf32>
    %322 = vector.extract_strided_slice %320 {offsets = [0, 8], sizes = [8, 8], strides = [1, 1]} : vector<8x32xf32> to vector<8x8xf32>
    %323 = vector.extract_strided_slice %320 {offsets = [0, 24], sizes = [8, 8], strides = [1, 1]} : vector<8x32xf32> to vector<8x8xf32>
    %324 = vector.extract_strided_slice %315 {offsets = [0, 16], sizes = [8, 8], strides = [1, 1]} : vector<8x32xf32> to vector<8x8xf32>
    %325 = math.tanh %324 : vector<8x8xf32>
    %326 = arith.mulf %322, %270 : vector<8x8xf32>
    %327 = arith.mulf %321, %325 : vector<8x8xf32>
    %328 = arith.addf %326, %327 : vector<8x8xf32>
    %329 = math.tanh %328 : vector<8x8xf32>
    %330 = arith.mulf %323, %329 : vector<8x8xf32>
    %c4_i32_96 = arith.constant 4 : i32
    %331 = vector.broadcast %c4_i32_96 : i32 to vector<8x1xi32>
    %332 = arith.cmpi sgt, %30, %331 : vector<8x1xi32>
    %333 = vector.shape_cast %332 : vector<8x1xi1> to vector<8x1xi1>
    %334 = vector.broadcast %333 : vector<8x1xi1> to vector<8x8xi1>
    %335 = arith.select %334, %330, %267 : vector<8x8xi1>, vector<8x8xf32>
    %336 = vector.shape_cast %332 : vector<8x1xi1> to vector<8x1xi1>
    %337 = vector.broadcast %336 : vector<8x1xi1> to vector<8x8xi1>
    %338 = arith.select %337, %328, %270 : vector<8x8xi1>, vector<8x8xf32>
    %cst_97 = arith.constant 0.000000e+00 : f32
    %339 = vector.shape_cast %332 : vector<8x1xi1> to vector<8x1xi1>
    %340 = vector.broadcast %339 : vector<8x1xi1> to vector<8x8xi1>
    %341 = vector.broadcast %cst_97 : f32 to vector<8x8xf32>
    %342 = arith.select %340, %335, %341 : vector<8x8xi1>, vector<8x8xf32>
    %343 = arith.truncf %342 : vector<8x8xf32> to vector<8x8xbf16>
    %c32_98 = arith.constant 32 : index
    %c0_99 = arith.constant 0 : index
    %344 = vector.load %arg13[%c32_98, %c0_99] : memref<64x16xbf16, #tpu.memory_space<vmem>>, vector<8x8xbf16>
    tpu.vector_store %arg13[%c32_98, %c0_99], %343 {strides = array<i32>} : memref<64x16xbf16, #tpu.memory_space<vmem>>, vector<8x8xbf16>,
    %c1_100 = arith.constant 1 : index
    %c24_101 = arith.constant 24 : index
    %c0_102 = arith.constant 0 : index
    %345 = vector.load %arg12[%c1_100, %c24_101, %c0_102] : memref<2x64x32xf32, #tpu.memory_space<vmem>>, vector<1x8x32xf32>
    %346 = vector.shape_cast %345 : vector<1x8x32xf32> to vector<8x32xf32>
    %347 = arith.truncf %301 : vector<8x8xf32> to vector<8x8xbf16>
    %cst_103 = arith.constant dense<0.000000e+00> : vector<8x32xf32>
    %348 = tpu.matmul %347, %34, %cst_103 {dimension_numbers = #tpu.dot_dimension_numbers<[1], [0], [0], [1], [0, 0, 1, 1], [], []>} : vector<8x8xbf16>, vector<8x32xbf16>, vector<8x32xf32> -> vector<8x32xf32>
    %349 = arith.addf %346, %348 : vector<8x32xf32>
    %350 = arith.negf %349 : vector<8x32xf32>
    %351 = math.exp %350 : vector<8x32xf32>
    %cst_104 = arith.constant 1.000000e+00 : f32
    %352 = vector.broadcast %cst_104 : f32 to vector<8x32xf32>
    %353 = arith.addf %352, %351 : vector<8x32xf32>
    %354 = arith.divf %352, %353 : vector<8x32xf32>
    %355 = vector.extract_strided_slice %354 {offsets = [0, 0], sizes = [8, 8], strides = [1, 1]} : vector<8x32xf32> to vector<8x8xf32>
    %356 = vector.extract_strided_slice %354 {offsets = [0, 8], sizes = [8, 8], strides = [1, 1]} : vector<8x32xf32> to vector<8x8xf32>
    %357 = vector.extract_strided_slice %354 {offsets = [0, 24], sizes = [8, 8], strides = [1, 1]} : vector<8x32xf32> to vector<8x8xf32>
    %358 = vector.extract_strided_slice %349 {offsets = [0, 16], sizes = [8, 8], strides = [1, 1]} : vector<8x32xf32> to vector<8x8xf32>
    %359 = math.tanh %358 : vector<8x8xf32>
    %360 = arith.mulf %356, %304 : vector<8x8xf32>
    %361 = arith.mulf %355, %359 : vector<8x8xf32>
    %362 = arith.addf %360, %361 : vector<8x8xf32>
    %363 = math.tanh %362 : vector<8x8xf32>
    %364 = arith.mulf %357, %363 : vector<8x8xf32>
    %c3_i32_105 = arith.constant 3 : i32
    %365 = vector.broadcast %c3_i32_105 : i32 to vector<8x1xi32>
    %366 = arith.cmpi sgt, %30, %365 : vector<8x1xi32>
    %367 = vector.shape_cast %366 : vector<8x1xi1> to vector<8x1xi1>
    %368 = vector.broadcast %367 : vector<8x1xi1> to vector<8x8xi1>
    %369 = arith.select %368, %364, %301 : vector<8x8xi1>, vector<8x8xf32>
    %370 = vector.shape_cast %366 : vector<8x1xi1> to vector<8x1xi1>
    %371 = vector.broadcast %370 : vector<8x1xi1> to vector<8x8xi1>
    %372 = arith.select %371, %362, %304 : vector<8x8xi1>, vector<8x8xf32>
    %cst_106 = arith.constant 0.000000e+00 : f32
    %373 = vector.shape_cast %366 : vector<8x1xi1> to vector<8x1xi1>
    %374 = vector.broadcast %373 : vector<8x1xi1> to vector<8x8xi1>
    %375 = vector.broadcast %cst_106 : f32 to vector<8x8xf32>
    %376 = arith.select %374, %369, %375 : vector<8x8xi1>, vector<8x8xf32>
    %377 = arith.truncf %376 : vector<8x8xf32> to vector<8x8xbf16>
    %c24_107 = arith.constant 24 : index
    %c8_108 = arith.constant 8 : index
    %378 = vector.load %arg13[%c24_107, %c8_108] : memref<64x16xbf16, #tpu.memory_space<vmem>>, vector<8x8xbf16>
    tpu.vector_store %arg13[%c24_107, %c8_108], %377 {strides = array<i32>} : memref<64x16xbf16, #tpu.memory_space<vmem>>, vector<8x8xbf16>,
    %c0_109 = arith.constant 0 : index
    %c40_110 = arith.constant 40 : index
    %c0_111 = arith.constant 0 : index
    %379 = vector.load %arg12[%c0_109, %c40_110, %c0_111] : memref<2x64x32xf32, #tpu.memory_space<vmem>>, vector<1x8x32xf32>
    %380 = vector.shape_cast %379 : vector<1x8x32xf32> to vector<8x32xf32>
    %381 = arith.truncf %335 : vector<8x8xf32> to vector<8x8xbf16>
    %cst_112 = arith.constant dense<0.000000e+00> : vector<8x32xf32>
    %382 = tpu.matmul %381, %32, %cst_112 {dimension_numbers = #tpu.dot_dimension_numbers<[1], [0], [0], [1], [0, 0, 1, 1], [], []>} : vector<8x8xbf16>, vector<8x32xbf16>, vector<8x32xf32> -> vector<8x32xf32>
    %383 = arith.addf %380, %382 : vector<8x32xf32>
    %384 = arith.negf %383 : vector<8x32xf32>
    %385 = math.exp %384 : vector<8x32xf32>
    %cst_113 = arith.constant 1.000000e+00 : f32
    %386 = vector.broadcast %cst_113 : f32 to vector<8x32xf32>
    %387 = arith.addf %386, %385 : vector<8x32xf32>
    %388 = arith.divf %386, %387 : vector<8x32xf32>
    %389 = vector.extract_strided_slice %388 {offsets = [0, 0], sizes = [8, 8], strides = [1, 1]} : vector<8x32xf32> to vector<8x8xf32>
    %390 = vector.extract_strided_slice %388 {offsets = [0, 8], sizes = [8, 8], strides = [1, 1]} : vector<8x32xf32> to vector<8x8xf32>
    %391 = vector.extract_strided_slice %388 {offsets = [0, 24], sizes = [8, 8], strides = [1, 1]} : vector<8x32xf32> to vector<8x8xf32>
    %392 = vector.extract_strided_slice %383 {offsets = [0, 16], sizes = [8, 8], strides = [1, 1]} : vector<8x32xf32> to vector<8x8xf32>
    %393 = math.tanh %392 : vector<8x8xf32>
    %394 = arith.mulf %390, %338 : vector<8x8xf32>
    %395 = arith.mulf %389, %393 : vector<8x8xf32>
    %396 = arith.addf %394, %395 : vector<8x8xf32>
    %397 = math.tanh %396 : vector<8x8xf32>
    %398 = arith.mulf %391, %397 : vector<8x8xf32>
    %c5_i32_114 = arith.constant 5 : i32
    %399 = vector.broadcast %c5_i32_114 : i32 to vector<8x1xi32>
    %400 = arith.cmpi sgt, %30, %399 : vector<8x1xi32>
    %401 = vector.shape_cast %400 : vector<8x1xi1> to vector<8x1xi1>
    %402 = vector.broadcast %401 : vector<8x1xi1> to vector<8x8xi1>
    %403 = arith.select %402, %398, %335 : vector<8x8xi1>, vector<8x8xf32>
    %404 = vector.shape_cast %400 : vector<8x1xi1> to vector<8x1xi1>
    %405 = vector.broadcast %404 : vector<8x1xi1> to vector<8x8xi1>
    %406 = arith.select %405, %396, %338 : vector<8x8xi1>, vector<8x8xf32>
    %cst_115 = arith.constant 0.000000e+00 : f32
    %407 = vector.shape_cast %400 : vector<8x1xi1> to vector<8x1xi1>
    %408 = vector.broadcast %407 : vector<8x1xi1> to vector<8x8xi1>
    %409 = vector.broadcast %cst_115 : f32 to vector<8x8xf32>
    %410 = arith.select %408, %403, %409 : vector<8x8xi1>, vector<8x8xf32>
    %411 = arith.truncf %410 : vector<8x8xf32> to vector<8x8xbf16>
    %c40_116 = arith.constant 40 : index
    %c0_117 = arith.constant 0 : index
    %412 = vector.load %arg13[%c40_116, %c0_117] : memref<64x16xbf16, #tpu.memory_space<vmem>>, vector<8x8xbf16>
    tpu.vector_store %arg13[%c40_116, %c0_117], %411 {strides = array<i32>} : memref<64x16xbf16, #tpu.memory_space<vmem>>, vector<8x8xbf16>,
    %c1_118 = arith.constant 1 : index
    %c16_119 = arith.constant 16 : index
    %c0_120 = arith.constant 0 : index
    %413 = vector.load %arg12[%c1_118, %c16_119, %c0_120] : memref<2x64x32xf32, #tpu.memory_space<vmem>>, vector<1x8x32xf32>
    %414 = vector.shape_cast %413 : vector<1x8x32xf32> to vector<8x32xf32>
    %415 = arith.truncf %369 : vector<8x8xf32> to vector<8x8xbf16>
    %cst_121 = arith.constant dense<0.000000e+00> : vector<8x32xf32>
    %416 = tpu.matmul %415, %34, %cst_121 {dimension_numbers = #tpu.dot_dimension_numbers<[1], [0], [0], [1], [0, 0, 1, 1], [], []>} : vector<8x8xbf16>, vector<8x32xbf16>, vector<8x32xf32> -> vector<8x32xf32>
    %417 = arith.addf %414, %416 : vector<8x32xf32>
    %418 = arith.negf %417 : vector<8x32xf32>
    %419 = math.exp %418 : vector<8x32xf32>
    %cst_122 = arith.constant 1.000000e+00 : f32
    %420 = vector.broadcast %cst_122 : f32 to vector<8x32xf32>
    %421 = arith.addf %420, %419 : vector<8x32xf32>
    %422 = arith.divf %420, %421 : vector<8x32xf32>
    %423 = vector.extract_strided_slice %422 {offsets = [0, 0], sizes = [8, 8], strides = [1, 1]} : vector<8x32xf32> to vector<8x8xf32>
    %424 = vector.extract_strided_slice %422 {offsets = [0, 8], sizes = [8, 8], strides = [1, 1]} : vector<8x32xf32> to vector<8x8xf32>
    %425 = vector.extract_strided_slice %422 {offsets = [0, 24], sizes = [8, 8], strides = [1, 1]} : vector<8x32xf32> to vector<8x8xf32>
    %426 = vector.extract_strided_slice %417 {offsets = [0, 16], sizes = [8, 8], strides = [1, 1]} : vector<8x32xf32> to vector<8x8xf32>
    %427 = math.tanh %426 : vector<8x8xf32>
    %428 = arith.mulf %424, %372 : vector<8x8xf32>
    %429 = arith.mulf %423, %427 : vector<8x8xf32>
    %430 = arith.addf %428, %429 : vector<8x8xf32>
    %431 = math.tanh %430 : vector<8x8xf32>
    %432 = arith.mulf %425, %431 : vector<8x8xf32>
    %c2_i32_123 = arith.constant 2 : i32
    %433 = vector.broadcast %c2_i32_123 : i32 to vector<8x1xi32>
    %434 = arith.cmpi sgt, %30, %433 : vector<8x1xi32>
    %435 = vector.shape_cast %434 : vector<8x1xi1> to vector<8x1xi1>
    %436 = vector.broadcast %435 : vector<8x1xi1> to vector<8x8xi1>
    %437 = arith.select %436, %432, %369 : vector<8x8xi1>, vector<8x8xf32>
    %438 = vector.shape_cast %434 : vector<8x1xi1> to vector<8x1xi1>
    %439 = vector.broadcast %438 : vector<8x1xi1> to vector<8x8xi1>
    %440 = arith.select %439, %430, %372 : vector<8x8xi1>, vector<8x8xf32>
    %cst_124 = arith.constant 0.000000e+00 : f32
    %441 = vector.shape_cast %434 : vector<8x1xi1> to vector<8x1xi1>
    %442 = vector.broadcast %441 : vector<8x1xi1> to vector<8x8xi1>
    %443 = vector.broadcast %cst_124 : f32 to vector<8x8xf32>
    %444 = arith.select %442, %437, %443 : vector<8x8xi1>, vector<8x8xf32>
    %445 = arith.truncf %444 : vector<8x8xf32> to vector<8x8xbf16>
    %c16_125 = arith.constant 16 : index
    %c8_126 = arith.constant 8 : index
    %446 = vector.load %arg13[%c16_125, %c8_126] : memref<64x16xbf16, #tpu.memory_space<vmem>>, vector<8x8xbf16>
    tpu.vector_store %arg13[%c16_125, %c8_126], %445 {strides = array<i32>} : memref<64x16xbf16, #tpu.memory_space<vmem>>, vector<8x8xbf16>,
    %c0_127 = arith.constant 0 : index
    %c48_128 = arith.constant 48 : index
    %c0_129 = arith.constant 0 : index
    %447 = vector.load %arg12[%c0_127, %c48_128, %c0_129] : memref<2x64x32xf32, #tpu.memory_space<vmem>>, vector<1x8x32xf32>
    %448 = vector.shape_cast %447 : vector<1x8x32xf32> to vector<8x32xf32>
    %449 = arith.truncf %403 : vector<8x8xf32> to vector<8x8xbf16>
    %cst_130 = arith.constant dense<0.000000e+00> : vector<8x32xf32>
    %450 = tpu.matmul %449, %32, %cst_130 {dimension_numbers = #tpu.dot_dimension_numbers<[1], [0], [0], [1], [0, 0, 1, 1], [], []>} : vector<8x8xbf16>, vector<8x32xbf16>, vector<8x32xf32> -> vector<8x32xf32>
    %451 = arith.addf %448, %450 : vector<8x32xf32>
    %452 = arith.negf %451 : vector<8x32xf32>
    %453 = math.exp %452 : vector<8x32xf32>
    %cst_131 = arith.constant 1.000000e+00 : f32
    %454 = vector.broadcast %cst_131 : f32 to vector<8x32xf32>
    %455 = arith.addf %454, %453 : vector<8x32xf32>
    %456 = arith.divf %454, %455 : vector<8x32xf32>
    %457 = vector.extract_strided_slice %456 {offsets = [0, 0], sizes = [8, 8], strides = [1, 1]} : vector<8x32xf32> to vector<8x8xf32>
    %458 = vector.extract_strided_slice %456 {offsets = [0, 8], sizes = [8, 8], strides = [1, 1]} : vector<8x32xf32> to vector<8x8xf32>
    %459 = vector.extract_strided_slice %456 {offsets = [0, 24], sizes = [8, 8], strides = [1, 1]} : vector<8x32xf32> to vector<8x8xf32>
    %460 = vector.extract_strided_slice %451 {offsets = [0, 16], sizes = [8, 8], strides = [1, 1]} : vector<8x32xf32> to vector<8x8xf32>
    %461 = math.tanh %460 : vector<8x8xf32>
    %462 = arith.mulf %458, %406 : vector<8x8xf32>
    %463 = arith.mulf %457, %461 : vector<8x8xf32>
    %464 = arith.addf %462, %463 : vector<8x8xf32>
    %465 = math.tanh %464 : vector<8x8xf32>
    %466 = arith.mulf %459, %465 : vector<8x8xf32>
    %c6_i32_132 = arith.constant 6 : i32
    %467 = vector.broadcast %c6_i32_132 : i32 to vector<8x1xi32>
    %468 = arith.cmpi sgt, %30, %467 : vector<8x1xi32>
    %469 = vector.shape_cast %468 : vector<8x1xi1> to vector<8x1xi1>
    %470 = vector.broadcast %469 : vector<8x1xi1> to vector<8x8xi1>
    %471 = arith.select %470, %466, %403 : vector<8x8xi1>, vector<8x8xf32>
    %472 = vector.shape_cast %468 : vector<8x1xi1> to vector<8x1xi1>
    %473 = vector.broadcast %472 : vector<8x1xi1> to vector<8x8xi1>
    %474 = arith.select %473, %464, %406 : vector<8x8xi1>, vector<8x8xf32>
    %cst_133 = arith.constant 0.000000e+00 : f32
    %475 = vector.shape_cast %468 : vector<8x1xi1> to vector<8x1xi1>
    %476 = vector.broadcast %475 : vector<8x1xi1> to vector<8x8xi1>
    %477 = vector.broadcast %cst_133 : f32 to vector<8x8xf32>
    %478 = arith.select %476, %471, %477 : vector<8x8xi1>, vector<8x8xf32>
    %479 = arith.truncf %478 : vector<8x8xf32> to vector<8x8xbf16>
    %c48_134 = arith.constant 48 : index
    %c0_135 = arith.constant 0 : index
    %480 = vector.load %arg13[%c48_134, %c0_135] : memref<64x16xbf16, #tpu.memory_space<vmem>>, vector<8x8xbf16>
    tpu.vector_store %arg13[%c48_134, %c0_135], %479 {strides = array<i32>} : memref<64x16xbf16, #tpu.memory_space<vmem>>, vector<8x8xbf16>,
    %c1_136 = arith.constant 1 : index
    %c8_137 = arith.constant 8 : index
    %c0_138 = arith.constant 0 : index
    %481 = vector.load %arg12[%c1_136, %c8_137, %c0_138] : memref<2x64x32xf32, #tpu.memory_space<vmem>>, vector<1x8x32xf32>
    %482 = vector.shape_cast %481 : vector<1x8x32xf32> to vector<8x32xf32>
    %483 = arith.truncf %437 : vector<8x8xf32> to vector<8x8xbf16>
    %cst_139 = arith.constant dense<0.000000e+00> : vector<8x32xf32>
    %484 = tpu.matmul %483, %34, %cst_139 {dimension_numbers = #tpu.dot_dimension_numbers<[1], [0], [0], [1], [0, 0, 1, 1], [], []>} : vector<8x8xbf16>, vector<8x32xbf16>, vector<8x32xf32> -> vector<8x32xf32>
    %485 = arith.addf %482, %484 : vector<8x32xf32>
    %486 = arith.negf %485 : vector<8x32xf32>
    %487 = math.exp %486 : vector<8x32xf32>
    %cst_140 = arith.constant 1.000000e+00 : f32
    %488 = vector.broadcast %cst_140 : f32 to vector<8x32xf32>
    %489 = arith.addf %488, %487 : vector<8x32xf32>
    %490 = arith.divf %488, %489 : vector<8x32xf32>
    %491 = vector.extract_strided_slice %490 {offsets = [0, 0], sizes = [8, 8], strides = [1, 1]} : vector<8x32xf32> to vector<8x8xf32>
    %492 = vector.extract_strided_slice %490 {offsets = [0, 8], sizes = [8, 8], strides = [1, 1]} : vector<8x32xf32> to vector<8x8xf32>
    %493 = vector.extract_strided_slice %490 {offsets = [0, 24], sizes = [8, 8], strides = [1, 1]} : vector<8x32xf32> to vector<8x8xf32>
    %494 = vector.extract_strided_slice %485 {offsets = [0, 16], sizes = [8, 8], strides = [1, 1]} : vector<8x32xf32> to vector<8x8xf32>
    %495 = math.tanh %494 : vector<8x8xf32>
    %496 = arith.mulf %492, %440 : vector<8x8xf32>
    %497 = arith.mulf %491, %495 : vector<8x8xf32>
    %498 = arith.addf %496, %497 : vector<8x8xf32>
    %499 = math.tanh %498 : vector<8x8xf32>
    %500 = arith.mulf %493, %499 : vector<8x8xf32>
    %c1_i32_141 = arith.constant 1 : i32
    %501 = vector.broadcast %c1_i32_141 : i32 to vector<8x1xi32>
    %502 = arith.cmpi sgt, %30, %501 : vector<8x1xi32>
    %503 = vector.shape_cast %502 : vector<8x1xi1> to vector<8x1xi1>
    %504 = vector.broadcast %503 : vector<8x1xi1> to vector<8x8xi1>
    %505 = arith.select %504, %500, %437 : vector<8x8xi1>, vector<8x8xf32>
    %506 = vector.shape_cast %502 : vector<8x1xi1> to vector<8x1xi1>
    %507 = vector.broadcast %506 : vector<8x1xi1> to vector<8x8xi1>
    %508 = arith.select %507, %498, %440 : vector<8x8xi1>, vector<8x8xf32>
    %cst_142 = arith.constant 0.000000e+00 : f32
    %509 = vector.shape_cast %502 : vector<8x1xi1> to vector<8x1xi1>
    %510 = vector.broadcast %509 : vector<8x1xi1> to vector<8x8xi1>
    %511 = vector.broadcast %cst_142 : f32 to vector<8x8xf32>
    %512 = arith.select %510, %505, %511 : vector<8x8xi1>, vector<8x8xf32>
    %513 = arith.truncf %512 : vector<8x8xf32> to vector<8x8xbf16>
    %c8_143 = arith.constant 8 : index
    %c8_144 = arith.constant 8 : index
    %514 = vector.load %arg13[%c8_143, %c8_144] : memref<64x16xbf16, #tpu.memory_space<vmem>>, vector<8x8xbf16>
    tpu.vector_store %arg13[%c8_143, %c8_144], %513 {strides = array<i32>} : memref<64x16xbf16, #tpu.memory_space<vmem>>, vector<8x8xbf16>,
    %c0_145 = arith.constant 0 : index
    %c56_146 = arith.constant 56 : index
    %c0_147 = arith.constant 0 : index
    %515 = vector.load %arg12[%c0_145, %c56_146, %c0_147] : memref<2x64x32xf32, #tpu.memory_space<vmem>>, vector<1x8x32xf32>
    %516 = vector.shape_cast %515 : vector<1x8x32xf32> to vector<8x32xf32>
    %517 = arith.truncf %471 : vector<8x8xf32> to vector<8x8xbf16>
    %cst_148 = arith.constant dense<0.000000e+00> : vector<8x32xf32>
    %518 = tpu.matmul %517, %32, %cst_148 {dimension_numbers = #tpu.dot_dimension_numbers<[1], [0], [0], [1], [0, 0, 1, 1], [], []>} : vector<8x8xbf16>, vector<8x32xbf16>, vector<8x32xf32> -> vector<8x32xf32>
    %519 = arith.addf %516, %518 : vector<8x32xf32>
    %520 = arith.negf %519 : vector<8x32xf32>
    %521 = math.exp %520 : vector<8x32xf32>
    %cst_149 = arith.constant 1.000000e+00 : f32
    %522 = vector.broadcast %cst_149 : f32 to vector<8x32xf32>
    %523 = arith.addf %522, %521 : vector<8x32xf32>
    %524 = arith.divf %522, %523 : vector<8x32xf32>
    %525 = vector.extract_strided_slice %524 {offsets = [0, 0], sizes = [8, 8], strides = [1, 1]} : vector<8x32xf32> to vector<8x8xf32>
    %526 = vector.extract_strided_slice %524 {offsets = [0, 8], sizes = [8, 8], strides = [1, 1]} : vector<8x32xf32> to vector<8x8xf32>
    %527 = vector.extract_strided_slice %524 {offsets = [0, 24], sizes = [8, 8], strides = [1, 1]} : vector<8x32xf32> to vector<8x8xf32>
    %528 = vector.extract_strided_slice %519 {offsets = [0, 16], sizes = [8, 8], strides = [1, 1]} : vector<8x32xf32> to vector<8x8xf32>
    %529 = math.tanh %528 : vector<8x8xf32>
    %530 = arith.mulf %526, %474 : vector<8x8xf32>
    %531 = arith.mulf %525, %529 : vector<8x8xf32>
    %532 = arith.addf %530, %531 : vector<8x8xf32>
    %533 = math.tanh %532 : vector<8x8xf32>
    %534 = arith.mulf %527, %533 : vector<8x8xf32>
    %c7_i32_150 = arith.constant 7 : i32
    %535 = vector.broadcast %c7_i32_150 : i32 to vector<8x1xi32>
    %536 = arith.cmpi sgt, %30, %535 : vector<8x1xi32>
    %537 = vector.shape_cast %536 : vector<8x1xi1> to vector<8x1xi1>
    %538 = vector.broadcast %537 : vector<8x1xi1> to vector<8x8xi1>
    %539 = arith.select %538, %534, %471 : vector<8x8xi1>, vector<8x8xf32>
    %cst_151 = arith.constant 0.000000e+00 : f32
    %540 = vector.shape_cast %536 : vector<8x1xi1> to vector<8x1xi1>
    %541 = vector.broadcast %540 : vector<8x1xi1> to vector<8x8xi1>
    %542 = vector.broadcast %cst_151 : f32 to vector<8x8xf32>
    %543 = arith.select %541, %539, %542 : vector<8x8xi1>, vector<8x8xf32>
    %544 = arith.truncf %543 : vector<8x8xf32> to vector<8x8xbf16>
    %c56_152 = arith.constant 56 : index
    %c0_153 = arith.constant 0 : index
    %545 = vector.load %arg13[%c56_152, %c0_153] : memref<64x16xbf16, #tpu.memory_space<vmem>>, vector<8x8xbf16>
    tpu.vector_store %arg13[%c56_152, %c0_153], %544 {strides = array<i32>} : memref<64x16xbf16, #tpu.memory_space<vmem>>, vector<8x8xbf16>,
    %c1_154 = arith.constant 1 : index
    %c0_155 = arith.constant 0 : index
    %c0_156 = arith.constant 0 : index
    %546 = vector.load %arg12[%c1_154, %c0_155, %c0_156] : memref<2x64x32xf32, #tpu.memory_space<vmem>>, vector<1x8x32xf32>
    %547 = vector.shape_cast %546 : vector<1x8x32xf32> to vector<8x32xf32>
    %548 = arith.truncf %505 : vector<8x8xf32> to vector<8x8xbf16>
    %cst_157 = arith.constant dense<0.000000e+00> : vector<8x32xf32>
    %549 = tpu.matmul %548, %34, %cst_157 {dimension_numbers = #tpu.dot_dimension_numbers<[1], [0], [0], [1], [0, 0, 1, 1], [], []>} : vector<8x8xbf16>, vector<8x32xbf16>, vector<8x32xf32> -> vector<8x32xf32>
    %550 = arith.addf %547, %549 : vector<8x32xf32>
    %551 = arith.negf %550 : vector<8x32xf32>
    %552 = math.exp %551 : vector<8x32xf32>
    %cst_158 = arith.constant 1.000000e+00 : f32
    %553 = vector.broadcast %cst_158 : f32 to vector<8x32xf32>
    %554 = arith.addf %553, %552 : vector<8x32xf32>
    %555 = arith.divf %553, %554 : vector<8x32xf32>
    %556 = vector.extract_strided_slice %555 {offsets = [0, 0], sizes = [8, 8], strides = [1, 1]} : vector<8x32xf32> to vector<8x8xf32>
    %557 = vector.extract_strided_slice %555 {offsets = [0, 8], sizes = [8, 8], strides = [1, 1]} : vector<8x32xf32> to vector<8x8xf32>
    %558 = vector.extract_strided_slice %555 {offsets = [0, 24], sizes = [8, 8], strides = [1, 1]} : vector<8x32xf32> to vector<8x8xf32>
    %559 = vector.extract_strided_slice %550 {offsets = [0, 16], sizes = [8, 8], strides = [1, 1]} : vector<8x32xf32> to vector<8x8xf32>
    %560 = math.tanh %559 : vector<8x8xf32>
    %561 = arith.mulf %557, %508 : vector<8x8xf32>
    %562 = arith.mulf %556, %560 : vector<8x8xf32>
    %563 = arith.addf %561, %562 : vector<8x8xf32>
    %564 = math.tanh %563 : vector<8x8xf32>
    %565 = arith.mulf %558, %564 : vector<8x8xf32>
    %c0_i32_159 = arith.constant 0 : i32
    %566 = vector.broadcast %c0_i32_159 : i32 to vector<8x1xi32>
    %567 = arith.cmpi sgt, %30, %566 : vector<8x1xi32>
    %568 = vector.shape_cast %567 : vector<8x1xi1> to vector<8x1xi1>
    %569 = vector.broadcast %568 : vector<8x1xi1> to vector<8x8xi1>
    %570 = arith.select %569, %565, %505 : vector<8x8xi1>, vector<8x8xf32>
    %cst_160 = arith.constant 0.000000e+00 : f32
    %571 = vector.shape_cast %567 : vector<8x1xi1> to vector<8x1xi1>
    %572 = vector.broadcast %571 : vector<8x1xi1> to vector<8x8xi1>
    %573 = vector.broadcast %cst_160 : f32 to vector<8x8xf32>
    %574 = arith.select %572, %570, %573 : vector<8x8xi1>, vector<8x8xf32>
    %575 = arith.truncf %574 : vector<8x8xf32> to vector<8x8xbf16>
    %c0_161 = arith.constant 0 : index
    %c8_162 = arith.constant 8 : index
    %576 = vector.load %arg13[%c0_161, %c8_162] : memref<64x16xbf16, #tpu.memory_space<vmem>>, vector<8x8xbf16>
    tpu.vector_store %arg13[%c0_161, %c8_162], %575 {strides = array<i32>} : memref<64x16xbf16, #tpu.memory_space<vmem>>, vector<8x8xbf16>,
    %c0_163 = arith.constant 0 : index
    %c0_164 = arith.constant 0 : index
    %577 = vector.load %arg7[%c0_163, %c0_164] : memref<1x6xf32, #tpu.memory_space<vmem>>, vector<1x6xf32>
    %c0_165 = arith.constant 0 : index
    %c0_166 = arith.constant 0 : index
    %578 = vector.load %arg13[%c0_165, %c0_166] : memref<64x16xbf16, #tpu.memory_space<vmem>>, vector<64x16xbf16>
    %c0_167 = arith.constant 0 : index
    %c0_168 = arith.constant 0 : index
    %579 = vector.load %arg6[%c0_167, %c0_168] : memref<16x6xbf16, #tpu.memory_space<vmem>>, vector<16x6xbf16>
    %cst_169 = arith.constant dense<0.000000e+00> : vector<64x6xf32>
    %580 = tpu.matmul %578, %579, %cst_169 {dimension_numbers = #tpu.dot_dimension_numbers<[1], [0], [0], [1], [0, 0, 1, 1], [], []>} : vector<64x16xbf16>, vector<16x6xbf16>, vector<64x6xf32> -> vector<64x6xf32>
    %581 = vector.broadcast %577 : vector<1x6xf32> to vector<64x6xf32>
    %582 = arith.addf %581, %580 : vector<64x6xf32>
    %583 = tpu.iota {dimensions = array<i32: 1>} : vector<8x6xi32>
    %c4_i32_170 = arith.constant 4 : i32
    %584 = vector.broadcast %c4_i32_170 : i32 to vector<8x6xi32>
    %585 = arith.cmpi eq, %583, %584 : vector<8x6xi32>
    %cst_171 = arith.constant 0.000000e+00 : f32
    %cst_172 = arith.constant -1.000000e+04 : f32
    %586 = vector.broadcast %cst_171 : f32 to vector<8x6xf32>
    %587 = vector.broadcast %cst_172 : f32 to vector<8x6xf32>
    %588 = arith.select %585, %586, %587 : vector<8x6xi1>, vector<8x6xf32>
    %c0_173 = arith.constant 0 : index
    %c0_174 = arith.constant 0 : index
    %589 = vector.load %arg8[%c0_173, %c0_174] : memref<6x6xf32, #tpu.memory_space<vmem>>, vector<6x6xf32>
    %590 = vector.extract_strided_slice %582 {offsets = [0, 0], sizes = [8, 6], strides = [1, 1]} : vector<64x6xf32> to vector<8x6xf32>
    %591 = vector.extract_strided_slice %588 {offsets = [0, 0], sizes = [8, 1], strides = [1, 1]} : vector<8x6xf32> to vector<8x1xf32>
    %592 = vector.broadcast %591 : vector<8x1xf32> to vector<8x6xf32>
    %593 = arith.addf %590, %592 : vector<8x6xf32>
    %594 = vector.extract_strided_slice %589 {offsets = [0, 0], sizes = [1, 6], strides = [1, 1]} : vector<6x6xf32> to vector<1x6xf32>
    %595 = vector.broadcast %594 : vector<1x6xf32> to vector<8x6xf32>
    %596 = arith.addf %593, %595 : vector<8x6xf32>
    %c0_i32_175 = arith.constant 0 : i32
    %597 = vector.broadcast %c0_i32_175 : i32 to vector<8x6xi32>
    %598 = vector.extract_strided_slice %588 {offsets = [0, 1], sizes = [8, 1], strides = [1, 1]} : vector<8x6xf32> to vector<8x1xf32>
    %599 = vector.broadcast %598 : vector<8x1xf32> to vector<8x6xf32>
    %600 = arith.addf %590, %599 : vector<8x6xf32>
    %601 = vector.extract_strided_slice %589 {offsets = [1, 0], sizes = [1, 6], strides = [1, 1]} : vector<6x6xf32> to vector<1x6xf32>
    %602 = vector.broadcast %601 : vector<1x6xf32> to vector<8x6xf32>
    %603 = arith.addf %600, %602 : vector<8x6xf32>
    %604 = arith.cmpf ogt, %603, %596 : vector<8x6xf32>
    %c1_i32_176 = arith.constant 1 : i32
    %605 = vector.broadcast %c1_i32_176 : i32 to vector<8x6xi32>
    %606 = arith.select %604, %605, %597 : vector<8x6xi1>, vector<8x6xi32>
    %607 = arith.select %604, %603, %596 : vector<8x6xi1>, vector<8x6xf32>
    %608 = vector.extract_strided_slice %588 {offsets = [0, 2], sizes = [8, 1], strides = [1, 1]} : vector<8x6xf32> to vector<8x1xf32>
    %609 = vector.broadcast %608 : vector<8x1xf32> to vector<8x6xf32>
    %610 = arith.addf %590, %609 : vector<8x6xf32>
    %611 = vector.extract_strided_slice %589 {offsets = [2, 0], sizes = [1, 6], strides = [1, 1]} : vector<6x6xf32> to vector<1x6xf32>
    %612 = vector.broadcast %611 : vector<1x6xf32> to vector<8x6xf32>
    %613 = arith.addf %610, %612 : vector<8x6xf32>
    %614 = arith.cmpf ogt, %613, %607 : vector<8x6xf32>
    %c2_i32_177 = arith.constant 2 : i32
    %615 = vector.broadcast %c2_i32_177 : i32 to vector<8x6xi32>
    %616 = arith.select %614, %615, %606 : vector<8x6xi1>, vector<8x6xi32>
    %617 = arith.select %614, %613, %607 : vector<8x6xi1>, vector<8x6xf32>
    %618 = vector.extract_strided_slice %588 {offsets = [0, 3], sizes = [8, 1], strides = [1, 1]} : vector<8x6xf32> to vector<8x1xf32>
    %619 = vector.broadcast %618 : vector<8x1xf32> to vector<8x6xf32>
    %620 = arith.addf %590, %619 : vector<8x6xf32>
    %621 = vector.extract_strided_slice %589 {offsets = [3, 0], sizes = [1, 6], strides = [1, 1]} : vector<6x6xf32> to vector<1x6xf32>
    %622 = vector.broadcast %621 : vector<1x6xf32> to vector<8x6xf32>
    %623 = arith.addf %620, %622 : vector<8x6xf32>
    %624 = arith.cmpf ogt, %623, %617 : vector<8x6xf32>
    %c3_i32_178 = arith.constant 3 : i32
    %625 = vector.broadcast %c3_i32_178 : i32 to vector<8x6xi32>
    %626 = arith.select %624, %625, %616 : vector<8x6xi1>, vector<8x6xi32>
    %627 = arith.select %624, %623, %617 : vector<8x6xi1>, vector<8x6xf32>
    %628 = vector.extract_strided_slice %588 {offsets = [0, 4], sizes = [8, 1], strides = [1, 1]} : vector<8x6xf32> to vector<8x1xf32>
    %629 = vector.broadcast %628 : vector<8x1xf32> to vector<8x6xf32>
    %630 = arith.addf %590, %629 : vector<8x6xf32>
    %631 = vector.extract_strided_slice %589 {offsets = [4, 0], sizes = [1, 6], strides = [1, 1]} : vector<6x6xf32> to vector<1x6xf32>
    %632 = vector.broadcast %631 : vector<1x6xf32> to vector<8x6xf32>
    %633 = arith.addf %630, %632 : vector<8x6xf32>
    %634 = arith.cmpf ogt, %633, %627 : vector<8x6xf32>
    %c4_i32_179 = arith.constant 4 : i32
    %635 = vector.broadcast %c4_i32_179 : i32 to vector<8x6xi32>
    %636 = arith.select %634, %635, %626 : vector<8x6xi1>, vector<8x6xi32>
    %637 = arith.select %634, %633, %627 : vector<8x6xi1>, vector<8x6xf32>
    %638 = vector.extract_strided_slice %588 {offsets = [0, 5], sizes = [8, 1], strides = [1, 1]} : vector<8x6xf32> to vector<8x1xf32>
    %639 = vector.broadcast %638 : vector<8x1xf32> to vector<8x6xf32>
    %640 = arith.addf %590, %639 : vector<8x6xf32>
    %641 = vector.extract_strided_slice %589 {offsets = [5, 0], sizes = [1, 6], strides = [1, 1]} : vector<6x6xf32> to vector<1x6xf32>
    %642 = vector.broadcast %641 : vector<1x6xf32> to vector<8x6xf32>
    %643 = arith.addf %640, %642 : vector<8x6xf32>
    %644 = arith.cmpf ogt, %643, %637 : vector<8x6xf32>
    %c5_i32_180 = arith.constant 5 : i32
    %645 = vector.broadcast %c5_i32_180 : i32 to vector<8x6xi32>
    %646 = arith.select %644, %645, %636 : vector<8x6xi1>, vector<8x6xi32>
    %647 = arith.select %644, %643, %637 : vector<8x6xi1>, vector<8x6xf32>
    %c0_181 = arith.constant 0 : index
    %c0_182 = arith.constant 0 : index
    %c0_183 = arith.constant 0 : index
    %648 = vector.load %arg14[%c0_181, %c0_182, %c0_183] : memref<8x8x6xi32, #tpu.memory_space<vmem>>, vector<1x8x6xi32>
    %649 = vector.shape_cast %648 : vector<1x8x6xi32> to vector<8x6xi32>
    %650 = vector.shape_cast %646 : vector<8x6xi32> to vector<1x8x6xi32>
    tpu.vector_store %arg14[%c0_181, %c0_182, %c0_183], %650 {strides = array<i32>} : memref<8x8x6xi32, #tpu.memory_space<vmem>>, vector<1x8x6xi32>,
    %c0_i32_184 = arith.constant 0 : i32
    %651 = vector.broadcast %c0_i32_184 : i32 to vector<8x1xi32>
    %652 = arith.cmpi sgt, %30, %651 : vector<8x1xi32>
    %653 = vector.shape_cast %652 : vector<8x1xi1> to vector<8x1xi1>
    %654 = vector.broadcast %653 : vector<8x1xi1> to vector<8x6xi1>
    %655 = arith.select %654, %647, %588 : vector<8x6xi1>, vector<8x6xf32>
    %656 = vector.extract_strided_slice %582 {offsets = [8, 0], sizes = [8, 6], strides = [1, 1]} : vector<64x6xf32> to vector<8x6xf32>
    %657 = vector.extract_strided_slice %655 {offsets = [0, 0], sizes = [8, 1], strides = [1, 1]} : vector<8x6xf32> to vector<8x1xf32>
    %658 = vector.broadcast %657 : vector<8x1xf32> to vector<8x6xf32>
    %659 = arith.addf %656, %658 : vector<8x6xf32>
    %660 = vector.extract_strided_slice %589 {offsets = [0, 0], sizes = [1, 6], strides = [1, 1]} : vector<6x6xf32> to vector<1x6xf32>
    %661 = vector.broadcast %660 : vector<1x6xf32> to vector<8x6xf32>
    %662 = arith.addf %659, %661 : vector<8x6xf32>
    %c0_i32_185 = arith.constant 0 : i32
    %663 = vector.broadcast %c0_i32_185 : i32 to vector<8x6xi32>
    %664 = vector.extract_strided_slice %655 {offsets = [0, 1], sizes = [8, 1], strides = [1, 1]} : vector<8x6xf32> to vector<8x1xf32>
    %665 = vector.broadcast %664 : vector<8x1xf32> to vector<8x6xf32>
    %666 = arith.addf %656, %665 : vector<8x6xf32>
    %667 = vector.extract_strided_slice %589 {offsets = [1, 0], sizes = [1, 6], strides = [1, 1]} : vector<6x6xf32> to vector<1x6xf32>
    %668 = vector.broadcast %667 : vector<1x6xf32> to vector<8x6xf32>
    %669 = arith.addf %666, %668 : vector<8x6xf32>
    %670 = arith.cmpf ogt, %669, %662 : vector<8x6xf32>
    %c1_i32_186 = arith.constant 1 : i32
    %671 = vector.broadcast %c1_i32_186 : i32 to vector<8x6xi32>
    %672 = arith.select %670, %671, %663 : vector<8x6xi1>, vector<8x6xi32>
    %673 = arith.select %670, %669, %662 : vector<8x6xi1>, vector<8x6xf32>
    %674 = vector.extract_strided_slice %655 {offsets = [0, 2], sizes = [8, 1], strides = [1, 1]} : vector<8x6xf32> to vector<8x1xf32>
    %675 = vector.broadcast %674 : vector<8x1xf32> to vector<8x6xf32>
    %676 = arith.addf %656, %675 : vector<8x6xf32>
    %677 = vector.extract_strided_slice %589 {offsets = [2, 0], sizes = [1, 6], strides = [1, 1]} : vector<6x6xf32> to vector<1x6xf32>
    %678 = vector.broadcast %677 : vector<1x6xf32> to vector<8x6xf32>
    %679 = arith.addf %676, %678 : vector<8x6xf32>
    %680 = arith.cmpf ogt, %679, %673 : vector<8x6xf32>
    %c2_i32_187 = arith.constant 2 : i32
    %681 = vector.broadcast %c2_i32_187 : i32 to vector<8x6xi32>
    %682 = arith.select %680, %681, %672 : vector<8x6xi1>, vector<8x6xi32>
    %683 = arith.select %680, %679, %673 : vector<8x6xi1>, vector<8x6xf32>
    %684 = vector.extract_strided_slice %655 {offsets = [0, 3], sizes = [8, 1], strides = [1, 1]} : vector<8x6xf32> to vector<8x1xf32>
    %685 = vector.broadcast %684 : vector<8x1xf32> to vector<8x6xf32>
    %686 = arith.addf %656, %685 : vector<8x6xf32>
    %687 = vector.extract_strided_slice %589 {offsets = [3, 0], sizes = [1, 6], strides = [1, 1]} : vector<6x6xf32> to vector<1x6xf32>
    %688 = vector.broadcast %687 : vector<1x6xf32> to vector<8x6xf32>
    %689 = arith.addf %686, %688 : vector<8x6xf32>
    %690 = arith.cmpf ogt, %689, %683 : vector<8x6xf32>
    %c3_i32_188 = arith.constant 3 : i32
    %691 = vector.broadcast %c3_i32_188 : i32 to vector<8x6xi32>
    %692 = arith.select %690, %691, %682 : vector<8x6xi1>, vector<8x6xi32>
    %693 = arith.select %690, %689, %683 : vector<8x6xi1>, vector<8x6xf32>
    %694 = vector.extract_strided_slice %655 {offsets = [0, 4], sizes = [8, 1], strides = [1, 1]} : vector<8x6xf32> to vector<8x1xf32>
    %695 = vector.broadcast %694 : vector<8x1xf32> to vector<8x6xf32>
    %696 = arith.addf %656, %695 : vector<8x6xf32>
    %697 = vector.extract_strided_slice %589 {offsets = [4, 0], sizes = [1, 6], strides = [1, 1]} : vector<6x6xf32> to vector<1x6xf32>
    %698 = vector.broadcast %697 : vector<1x6xf32> to vector<8x6xf32>
    %699 = arith.addf %696, %698 : vector<8x6xf32>
    %700 = arith.cmpf ogt, %699, %693 : vector<8x6xf32>
    %c4_i32_189 = arith.constant 4 : i32
    %701 = vector.broadcast %c4_i32_189 : i32 to vector<8x6xi32>
    %702 = arith.select %700, %701, %692 : vector<8x6xi1>, vector<8x6xi32>
    %703 = arith.select %700, %699, %693 : vector<8x6xi1>, vector<8x6xf32>
    %704 = vector.extract_strided_slice %655 {offsets = [0, 5], sizes = [8, 1], strides = [1, 1]} : vector<8x6xf32> to vector<8x1xf32>
    %705 = vector.broadcast %704 : vector<8x1xf32> to vector<8x6xf32>
    %706 = arith.addf %656, %705 : vector<8x6xf32>
    %707 = vector.extract_strided_slice %589 {offsets = [5, 0], sizes = [1, 6], strides = [1, 1]} : vector<6x6xf32> to vector<1x6xf32>
    %708 = vector.broadcast %707 : vector<1x6xf32> to vector<8x6xf32>
    %709 = arith.addf %706, %708 : vector<8x6xf32>
    %710 = arith.cmpf ogt, %709, %703 : vector<8x6xf32>
    %c5_i32_190 = arith.constant 5 : i32
    %711 = vector.broadcast %c5_i32_190 : i32 to vector<8x6xi32>
    %712 = arith.select %710, %711, %702 : vector<8x6xi1>, vector<8x6xi32>
    %713 = arith.select %710, %709, %703 : vector<8x6xi1>, vector<8x6xf32>
    %c1_191 = arith.constant 1 : index
    %c0_192 = arith.constant 0 : index
    %c0_193 = arith.constant 0 : index
    %714 = vector.load %arg14[%c1_191, %c0_192, %c0_193] : memref<8x8x6xi32, #tpu.memory_space<vmem>>, vector<1x8x6xi32>
    %715 = vector.shape_cast %714 : vector<1x8x6xi32> to vector<8x6xi32>
    %716 = vector.shape_cast %712 : vector<8x6xi32> to vector<1x8x6xi32>
    tpu.vector_store %arg14[%c1_191, %c0_192, %c0_193], %716 {strides = array<i32>} : memref<8x8x6xi32, #tpu.memory_space<vmem>>, vector<1x8x6xi32>,
    %c1_i32_194 = arith.constant 1 : i32
    %717 = vector.broadcast %c1_i32_194 : i32 to vector<8x1xi32>
    %718 = arith.cmpi sgt, %30, %717 : vector<8x1xi32>
    %719 = vector.shape_cast %718 : vector<8x1xi1> to vector<8x1xi1>
    %720 = vector.broadcast %719 : vector<8x1xi1> to vector<8x6xi1>
    %721 = arith.select %720, %713, %655 : vector<8x6xi1>, vector<8x6xf32>
    %722 = vector.extract_strided_slice %582 {offsets = [16, 0], sizes = [8, 6], strides = [1, 1]} : vector<64x6xf32> to vector<8x6xf32>
    %723 = vector.extract_strided_slice %721 {offsets = [0, 0], sizes = [8, 1], strides = [1, 1]} : vector<8x6xf32> to vector<8x1xf32>
    %724 = vector.broadcast %723 : vector<8x1xf32> to vector<8x6xf32>
    %725 = arith.addf %722, %724 : vector<8x6xf32>
    %726 = vector.extract_strided_slice %589 {offsets = [0, 0], sizes = [1, 6], strides = [1, 1]} : vector<6x6xf32> to vector<1x6xf32>
    %727 = vector.broadcast %726 : vector<1x6xf32> to vector<8x6xf32>
    %728 = arith.addf %725, %727 : vector<8x6xf32>
    %c0_i32_195 = arith.constant 0 : i32
    %729 = vector.broadcast %c0_i32_195 : i32 to vector<8x6xi32>
    %730 = vector.extract_strided_slice %721 {offsets = [0, 1], sizes = [8, 1], strides = [1, 1]} : vector<8x6xf32> to vector<8x1xf32>
    %731 = vector.broadcast %730 : vector<8x1xf32> to vector<8x6xf32>
    %732 = arith.addf %722, %731 : vector<8x6xf32>
    %733 = vector.extract_strided_slice %589 {offsets = [1, 0], sizes = [1, 6], strides = [1, 1]} : vector<6x6xf32> to vector<1x6xf32>
    %734 = vector.broadcast %733 : vector<1x6xf32> to vector<8x6xf32>
    %735 = arith.addf %732, %734 : vector<8x6xf32>
    %736 = arith.cmpf ogt, %735, %728 : vector<8x6xf32>
    %c1_i32_196 = arith.constant 1 : i32
    %737 = vector.broadcast %c1_i32_196 : i32 to vector<8x6xi32>
    %738 = arith.select %736, %737, %729 : vector<8x6xi1>, vector<8x6xi32>
    %739 = arith.select %736, %735, %728 : vector<8x6xi1>, vector<8x6xf32>
    %740 = vector.extract_strided_slice %721 {offsets = [0, 2], sizes = [8, 1], strides = [1, 1]} : vector<8x6xf32> to vector<8x1xf32>
    %741 = vector.broadcast %740 : vector<8x1xf32> to vector<8x6xf32>
    %742 = arith.addf %722, %741 : vector<8x6xf32>
    %743 = vector.extract_strided_slice %589 {offsets = [2, 0], sizes = [1, 6], strides = [1, 1]} : vector<6x6xf32> to vector<1x6xf32>
    %744 = vector.broadcast %743 : vector<1x6xf32> to vector<8x6xf32>
    %745 = arith.addf %742, %744 : vector<8x6xf32>
    %746 = arith.cmpf ogt, %745, %739 : vector<8x6xf32>
    %c2_i32_197 = arith.constant 2 : i32
    %747 = vector.broadcast %c2_i32_197 : i32 to vector<8x6xi32>
    %748 = arith.select %746, %747, %738 : vector<8x6xi1>, vector<8x6xi32>
    %749 = arith.select %746, %745, %739 : vector<8x6xi1>, vector<8x6xf32>
    %750 = vector.extract_strided_slice %721 {offsets = [0, 3], sizes = [8, 1], strides = [1, 1]} : vector<8x6xf32> to vector<8x1xf32>
    %751 = vector.broadcast %750 : vector<8x1xf32> to vector<8x6xf32>
    %752 = arith.addf %722, %751 : vector<8x6xf32>
    %753 = vector.extract_strided_slice %589 {offsets = [3, 0], sizes = [1, 6], strides = [1, 1]} : vector<6x6xf32> to vector<1x6xf32>
    %754 = vector.broadcast %753 : vector<1x6xf32> to vector<8x6xf32>
    %755 = arith.addf %752, %754 : vector<8x6xf32>
    %756 = arith.cmpf ogt, %755, %749 : vector<8x6xf32>
    %c3_i32_198 = arith.constant 3 : i32
    %757 = vector.broadcast %c3_i32_198 : i32 to vector<8x6xi32>
    %758 = arith.select %756, %757, %748 : vector<8x6xi1>, vector<8x6xi32>
    %759 = arith.select %756, %755, %749 : vector<8x6xi1>, vector<8x6xf32>
    %760 = vector.extract_strided_slice %721 {offsets = [0, 4], sizes = [8, 1], strides = [1, 1]} : vector<8x6xf32> to vector<8x1xf32>
    %761 = vector.broadcast %760 : vector<8x1xf32> to vector<8x6xf32>
    %762 = arith.addf %722, %761 : vector<8x6xf32>
    %763 = vector.extract_strided_slice %589 {offsets = [4, 0], sizes = [1, 6], strides = [1, 1]} : vector<6x6xf32> to vector<1x6xf32>
    %764 = vector.broadcast %763 : vector<1x6xf32> to vector<8x6xf32>
    %765 = arith.addf %762, %764 : vector<8x6xf32>
    %766 = arith.cmpf ogt, %765, %759 : vector<8x6xf32>
    %c4_i32_199 = arith.constant 4 : i32
    %767 = vector.broadcast %c4_i32_199 : i32 to vector<8x6xi32>
    %768 = arith.select %766, %767, %758 : vector<8x6xi1>, vector<8x6xi32>
    %769 = arith.select %766, %765, %759 : vector<8x6xi1>, vector<8x6xf32>
    %770 = vector.extract_strided_slice %721 {offsets = [0, 5], sizes = [8, 1], strides = [1, 1]} : vector<8x6xf32> to vector<8x1xf32>
    %771 = vector.broadcast %770 : vector<8x1xf32> to vector<8x6xf32>
    %772 = arith.addf %722, %771 : vector<8x6xf32>
    %773 = vector.extract_strided_slice %589 {offsets = [5, 0], sizes = [1, 6], strides = [1, 1]} : vector<6x6xf32> to vector<1x6xf32>
    %774 = vector.broadcast %773 : vector<1x6xf32> to vector<8x6xf32>
    %775 = arith.addf %772, %774 : vector<8x6xf32>
    %776 = arith.cmpf ogt, %775, %769 : vector<8x6xf32>
    %c5_i32_200 = arith.constant 5 : i32
    %777 = vector.broadcast %c5_i32_200 : i32 to vector<8x6xi32>
    %778 = arith.select %776, %777, %768 : vector<8x6xi1>, vector<8x6xi32>
    %779 = arith.select %776, %775, %769 : vector<8x6xi1>, vector<8x6xf32>
    %c2 = arith.constant 2 : index
    %c0_201 = arith.constant 0 : index
    %c0_202 = arith.constant 0 : index
    %780 = vector.load %arg14[%c2, %c0_201, %c0_202] : memref<8x8x6xi32, #tpu.memory_space<vmem>>, vector<1x8x6xi32>
    %781 = vector.shape_cast %780 : vector<1x8x6xi32> to vector<8x6xi32>
    %782 = vector.shape_cast %778 : vector<8x6xi32> to vector<1x8x6xi32>
    tpu.vector_store %arg14[%c2, %c0_201, %c0_202], %782 {strides = array<i32>} : memref<8x8x6xi32, #tpu.memory_space<vmem>>, vector<1x8x6xi32>,
    %c2_i32_203 = arith.constant 2 : i32
    %783 = vector.broadcast %c2_i32_203 : i32 to vector<8x1xi32>
    %784 = arith.cmpi sgt, %30, %783 : vector<8x1xi32>
    %785 = vector.shape_cast %784 : vector<8x1xi1> to vector<8x1xi1>
    %786 = vector.broadcast %785 : vector<8x1xi1> to vector<8x6xi1>
    %787 = arith.select %786, %779, %721 : vector<8x6xi1>, vector<8x6xf32>
    %788 = vector.extract_strided_slice %582 {offsets = [24, 0], sizes = [8, 6], strides = [1, 1]} : vector<64x6xf32> to vector<8x6xf32>
    %789 = vector.extract_strided_slice %787 {offsets = [0, 0], sizes = [8, 1], strides = [1, 1]} : vector<8x6xf32> to vector<8x1xf32>
    %790 = vector.broadcast %789 : vector<8x1xf32> to vector<8x6xf32>
    %791 = arith.addf %788, %790 : vector<8x6xf32>
    %792 = vector.extract_strided_slice %589 {offsets = [0, 0], sizes = [1, 6], strides = [1, 1]} : vector<6x6xf32> to vector<1x6xf32>
    %793 = vector.broadcast %792 : vector<1x6xf32> to vector<8x6xf32>
    %794 = arith.addf %791, %793 : vector<8x6xf32>
    %c0_i32_204 = arith.constant 0 : i32
    %795 = vector.broadcast %c0_i32_204 : i32 to vector<8x6xi32>
    %796 = vector.extract_strided_slice %787 {offsets = [0, 1], sizes = [8, 1], strides = [1, 1]} : vector<8x6xf32> to vector<8x1xf32>
    %797 = vector.broadcast %796 : vector<8x1xf32> to vector<8x6xf32>
    %798 = arith.addf %788, %797 : vector<8x6xf32>
    %799 = vector.extract_strided_slice %589 {offsets = [1, 0], sizes = [1, 6], strides = [1, 1]} : vector<6x6xf32> to vector<1x6xf32>
    %800 = vector.broadcast %799 : vector<1x6xf32> to vector<8x6xf32>
    %801 = arith.addf %798, %800 : vector<8x6xf32>
    %802 = arith.cmpf ogt, %801, %794 : vector<8x6xf32>
    %c1_i32_205 = arith.constant 1 : i32
    %803 = vector.broadcast %c1_i32_205 : i32 to vector<8x6xi32>
    %804 = arith.select %802, %803, %795 : vector<8x6xi1>, vector<8x6xi32>
    %805 = arith.select %802, %801, %794 : vector<8x6xi1>, vector<8x6xf32>
    %806 = vector.extract_strided_slice %787 {offsets = [0, 2], sizes = [8, 1], strides = [1, 1]} : vector<8x6xf32> to vector<8x1xf32>
    %807 = vector.broadcast %806 : vector<8x1xf32> to vector<8x6xf32>
    %808 = arith.addf %788, %807 : vector<8x6xf32>
    %809 = vector.extract_strided_slice %589 {offsets = [2, 0], sizes = [1, 6], strides = [1, 1]} : vector<6x6xf32> to vector<1x6xf32>
    %810 = vector.broadcast %809 : vector<1x6xf32> to vector<8x6xf32>
    %811 = arith.addf %808, %810 : vector<8x6xf32>
    %812 = arith.cmpf ogt, %811, %805 : vector<8x6xf32>
    %c2_i32_206 = arith.constant 2 : i32
    %813 = vector.broadcast %c2_i32_206 : i32 to vector<8x6xi32>
    %814 = arith.select %812, %813, %804 : vector<8x6xi1>, vector<8x6xi32>
    %815 = arith.select %812, %811, %805 : vector<8x6xi1>, vector<8x6xf32>
    %816 = vector.extract_strided_slice %787 {offsets = [0, 3], sizes = [8, 1], strides = [1, 1]} : vector<8x6xf32> to vector<8x1xf32>
    %817 = vector.broadcast %816 : vector<8x1xf32> to vector<8x6xf32>
    %818 = arith.addf %788, %817 : vector<8x6xf32>
    %819 = vector.extract_strided_slice %589 {offsets = [3, 0], sizes = [1, 6], strides = [1, 1]} : vector<6x6xf32> to vector<1x6xf32>
    %820 = vector.broadcast %819 : vector<1x6xf32> to vector<8x6xf32>
    %821 = arith.addf %818, %820 : vector<8x6xf32>
    %822 = arith.cmpf ogt, %821, %815 : vector<8x6xf32>
    %c3_i32_207 = arith.constant 3 : i32
    %823 = vector.broadcast %c3_i32_207 : i32 to vector<8x6xi32>
    %824 = arith.select %822, %823, %814 : vector<8x6xi1>, vector<8x6xi32>
    %825 = arith.select %822, %821, %815 : vector<8x6xi1>, vector<8x6xf32>
    %826 = vector.extract_strided_slice %787 {offsets = [0, 4], sizes = [8, 1], strides = [1, 1]} : vector<8x6xf32> to vector<8x1xf32>
    %827 = vector.broadcast %826 : vector<8x1xf32> to vector<8x6xf32>
    %828 = arith.addf %788, %827 : vector<8x6xf32>
    %829 = vector.extract_strided_slice %589 {offsets = [4, 0], sizes = [1, 6], strides = [1, 1]} : vector<6x6xf32> to vector<1x6xf32>
    %830 = vector.broadcast %829 : vector<1x6xf32> to vector<8x6xf32>
    %831 = arith.addf %828, %830 : vector<8x6xf32>
    %832 = arith.cmpf ogt, %831, %825 : vector<8x6xf32>
    %c4_i32_208 = arith.constant 4 : i32
    %833 = vector.broadcast %c4_i32_208 : i32 to vector<8x6xi32>
    %834 = arith.select %832, %833, %824 : vector<8x6xi1>, vector<8x6xi32>
    %835 = arith.select %832, %831, %825 : vector<8x6xi1>, vector<8x6xf32>
    %836 = vector.extract_strided_slice %787 {offsets = [0, 5], sizes = [8, 1], strides = [1, 1]} : vector<8x6xf32> to vector<8x1xf32>
    %837 = vector.broadcast %836 : vector<8x1xf32> to vector<8x6xf32>
    %838 = arith.addf %788, %837 : vector<8x6xf32>
    %839 = vector.extract_strided_slice %589 {offsets = [5, 0], sizes = [1, 6], strides = [1, 1]} : vector<6x6xf32> to vector<1x6xf32>
    %840 = vector.broadcast %839 : vector<1x6xf32> to vector<8x6xf32>
    %841 = arith.addf %838, %840 : vector<8x6xf32>
    %842 = arith.cmpf ogt, %841, %835 : vector<8x6xf32>
    %c5_i32_209 = arith.constant 5 : i32
    %843 = vector.broadcast %c5_i32_209 : i32 to vector<8x6xi32>
    %844 = arith.select %842, %843, %834 : vector<8x6xi1>, vector<8x6xi32>
    %845 = arith.select %842, %841, %835 : vector<8x6xi1>, vector<8x6xf32>
    %c3 = arith.constant 3 : index
    %c0_210 = arith.constant 0 : index
    %c0_211 = arith.constant 0 : index
    %846 = vector.load %arg14[%c3, %c0_210, %c0_211] : memref<8x8x6xi32, #tpu.memory_space<vmem>>, vector<1x8x6xi32>
    %847 = vector.shape_cast %846 : vector<1x8x6xi32> to vector<8x6xi32>
    %848 = vector.shape_cast %844 : vector<8x6xi32> to vector<1x8x6xi32>
    tpu.vector_store %arg14[%c3, %c0_210, %c0_211], %848 {strides = array<i32>} : memref<8x8x6xi32, #tpu.memory_space<vmem>>, vector<1x8x6xi32>,
    %c3_i32_212 = arith.constant 3 : i32
    %849 = vector.broadcast %c3_i32_212 : i32 to vector<8x1xi32>
    %850 = arith.cmpi sgt, %30, %849 : vector<8x1xi32>
    %851 = vector.shape_cast %850 : vector<8x1xi1> to vector<8x1xi1>
    %852 = vector.broadcast %851 : vector<8x1xi1> to vector<8x6xi1>
    %853 = arith.select %852, %845, %787 : vector<8x6xi1>, vector<8x6xf32>
    %854 = vector.extract_strided_slice %582 {offsets = [32, 0], sizes = [8, 6], strides = [1, 1]} : vector<64x6xf32> to vector<8x6xf32>
    %855 = vector.extract_strided_slice %853 {offsets = [0, 0], sizes = [8, 1], strides = [1, 1]} : vector<8x6xf32> to vector<8x1xf32>
    %856 = vector.broadcast %855 : vector<8x1xf32> to vector<8x6xf32>
    %857 = arith.addf %854, %856 : vector<8x6xf32>
    %858 = vector.extract_strided_slice %589 {offsets = [0, 0], sizes = [1, 6], strides = [1, 1]} : vector<6x6xf32> to vector<1x6xf32>
    %859 = vector.broadcast %858 : vector<1x6xf32> to vector<8x6xf32>
    %860 = arith.addf %857, %859 : vector<8x6xf32>
    %c0_i32_213 = arith.constant 0 : i32
    %861 = vector.broadcast %c0_i32_213 : i32 to vector<8x6xi32>
    %862 = vector.extract_strided_slice %853 {offsets = [0, 1], sizes = [8, 1], strides = [1, 1]} : vector<8x6xf32> to vector<8x1xf32>
    %863 = vector.broadcast %862 : vector<8x1xf32> to vector<8x6xf32>
    %864 = arith.addf %854, %863 : vector<8x6xf32>
    %865 = vector.extract_strided_slice %589 {offsets = [1, 0], sizes = [1, 6], strides = [1, 1]} : vector<6x6xf32> to vector<1x6xf32>
    %866 = vector.broadcast %865 : vector<1x6xf32> to vector<8x6xf32>
    %867 = arith.addf %864, %866 : vector<8x6xf32>
    %868 = arith.cmpf ogt, %867, %860 : vector<8x6xf32>
    %c1_i32_214 = arith.constant 1 : i32
    %869 = vector.broadcast %c1_i32_214 : i32 to vector<8x6xi32>
    %870 = arith.select %868, %869, %861 : vector<8x6xi1>, vector<8x6xi32>
    %871 = arith.select %868, %867, %860 : vector<8x6xi1>, vector<8x6xf32>
    %872 = vector.extract_strided_slice %853 {offsets = [0, 2], sizes = [8, 1], strides = [1, 1]} : vector<8x6xf32> to vector<8x1xf32>
    %873 = vector.broadcast %872 : vector<8x1xf32> to vector<8x6xf32>
    %874 = arith.addf %854, %873 : vector<8x6xf32>
    %875 = vector.extract_strided_slice %589 {offsets = [2, 0], sizes = [1, 6], strides = [1, 1]} : vector<6x6xf32> to vector<1x6xf32>
    %876 = vector.broadcast %875 : vector<1x6xf32> to vector<8x6xf32>
    %877 = arith.addf %874, %876 : vector<8x6xf32>
    %878 = arith.cmpf ogt, %877, %871 : vector<8x6xf32>
    %c2_i32_215 = arith.constant 2 : i32
    %879 = vector.broadcast %c2_i32_215 : i32 to vector<8x6xi32>
    %880 = arith.select %878, %879, %870 : vector<8x6xi1>, vector<8x6xi32>
    %881 = arith.select %878, %877, %871 : vector<8x6xi1>, vector<8x6xf32>
    %882 = vector.extract_strided_slice %853 {offsets = [0, 3], sizes = [8, 1], strides = [1, 1]} : vector<8x6xf32> to vector<8x1xf32>
    %883 = vector.broadcast %882 : vector<8x1xf32> to vector<8x6xf32>
    %884 = arith.addf %854, %883 : vector<8x6xf32>
    %885 = vector.extract_strided_slice %589 {offsets = [3, 0], sizes = [1, 6], strides = [1, 1]} : vector<6x6xf32> to vector<1x6xf32>
    %886 = vector.broadcast %885 : vector<1x6xf32> to vector<8x6xf32>
    %887 = arith.addf %884, %886 : vector<8x6xf32>
    %888 = arith.cmpf ogt, %887, %881 : vector<8x6xf32>
    %c3_i32_216 = arith.constant 3 : i32
    %889 = vector.broadcast %c3_i32_216 : i32 to vector<8x6xi32>
    %890 = arith.select %888, %889, %880 : vector<8x6xi1>, vector<8x6xi32>
    %891 = arith.select %888, %887, %881 : vector<8x6xi1>, vector<8x6xf32>
    %892 = vector.extract_strided_slice %853 {offsets = [0, 4], sizes = [8, 1], strides = [1, 1]} : vector<8x6xf32> to vector<8x1xf32>
    %893 = vector.broadcast %892 : vector<8x1xf32> to vector<8x6xf32>
    %894 = arith.addf %854, %893 : vector<8x6xf32>
    %895 = vector.extract_strided_slice %589 {offsets = [4, 0], sizes = [1, 6], strides = [1, 1]} : vector<6x6xf32> to vector<1x6xf32>
    %896 = vector.broadcast %895 : vector<1x6xf32> to vector<8x6xf32>
    %897 = arith.addf %894, %896 : vector<8x6xf32>
    %898 = arith.cmpf ogt, %897, %891 : vector<8x6xf32>
    %c4_i32_217 = arith.constant 4 : i32
    %899 = vector.broadcast %c4_i32_217 : i32 to vector<8x6xi32>
    %900 = arith.select %898, %899, %890 : vector<8x6xi1>, vector<8x6xi32>
    %901 = arith.select %898, %897, %891 : vector<8x6xi1>, vector<8x6xf32>
    %902 = vector.extract_strided_slice %853 {offsets = [0, 5], sizes = [8, 1], strides = [1, 1]} : vector<8x6xf32> to vector<8x1xf32>
    %903 = vector.broadcast %902 : vector<8x1xf32> to vector<8x6xf32>
    %904 = arith.addf %854, %903 : vector<8x6xf32>
    %905 = vector.extract_strided_slice %589 {offsets = [5, 0], sizes = [1, 6], strides = [1, 1]} : vector<6x6xf32> to vector<1x6xf32>
    %906 = vector.broadcast %905 : vector<1x6xf32> to vector<8x6xf32>
    %907 = arith.addf %904, %906 : vector<8x6xf32>
    %908 = arith.cmpf ogt, %907, %901 : vector<8x6xf32>
    %c5_i32_218 = arith.constant 5 : i32
    %909 = vector.broadcast %c5_i32_218 : i32 to vector<8x6xi32>
    %910 = arith.select %908, %909, %900 : vector<8x6xi1>, vector<8x6xi32>
    %911 = arith.select %908, %907, %901 : vector<8x6xi1>, vector<8x6xf32>
    %c4 = arith.constant 4 : index
    %c0_219 = arith.constant 0 : index
    %c0_220 = arith.constant 0 : index
    %912 = vector.load %arg14[%c4, %c0_219, %c0_220] : memref<8x8x6xi32, #tpu.memory_space<vmem>>, vector<1x8x6xi32>
    %913 = vector.shape_cast %912 : vector<1x8x6xi32> to vector<8x6xi32>
    %914 = vector.shape_cast %910 : vector<8x6xi32> to vector<1x8x6xi32>
    tpu.vector_store %arg14[%c4, %c0_219, %c0_220], %914 {strides = array<i32>} : memref<8x8x6xi32, #tpu.memory_space<vmem>>, vector<1x8x6xi32>,
    %c4_i32_221 = arith.constant 4 : i32
    %915 = vector.broadcast %c4_i32_221 : i32 to vector<8x1xi32>
    %916 = arith.cmpi sgt, %30, %915 : vector<8x1xi32>
    %917 = vector.shape_cast %916 : vector<8x1xi1> to vector<8x1xi1>
    %918 = vector.broadcast %917 : vector<8x1xi1> to vector<8x6xi1>
    %919 = arith.select %918, %911, %853 : vector<8x6xi1>, vector<8x6xf32>
    %920 = vector.extract_strided_slice %582 {offsets = [40, 0], sizes = [8, 6], strides = [1, 1]} : vector<64x6xf32> to vector<8x6xf32>
    %921 = vector.extract_strided_slice %919 {offsets = [0, 0], sizes = [8, 1], strides = [1, 1]} : vector<8x6xf32> to vector<8x1xf32>
    %922 = vector.broadcast %921 : vector<8x1xf32> to vector<8x6xf32>
    %923 = arith.addf %920, %922 : vector<8x6xf32>
    %924 = vector.extract_strided_slice %589 {offsets = [0, 0], sizes = [1, 6], strides = [1, 1]} : vector<6x6xf32> to vector<1x6xf32>
    %925 = vector.broadcast %924 : vector<1x6xf32> to vector<8x6xf32>
    %926 = arith.addf %923, %925 : vector<8x6xf32>
    %c0_i32_222 = arith.constant 0 : i32
    %927 = vector.broadcast %c0_i32_222 : i32 to vector<8x6xi32>
    %928 = vector.extract_strided_slice %919 {offsets = [0, 1], sizes = [8, 1], strides = [1, 1]} : vector<8x6xf32> to vector<8x1xf32>
    %929 = vector.broadcast %928 : vector<8x1xf32> to vector<8x6xf32>
    %930 = arith.addf %920, %929 : vector<8x6xf32>
    %931 = vector.extract_strided_slice %589 {offsets = [1, 0], sizes = [1, 6], strides = [1, 1]} : vector<6x6xf32> to vector<1x6xf32>
    %932 = vector.broadcast %931 : vector<1x6xf32> to vector<8x6xf32>
    %933 = arith.addf %930, %932 : vector<8x6xf32>
    %934 = arith.cmpf ogt, %933, %926 : vector<8x6xf32>
    %c1_i32_223 = arith.constant 1 : i32
    %935 = vector.broadcast %c1_i32_223 : i32 to vector<8x6xi32>
    %936 = arith.select %934, %935, %927 : vector<8x6xi1>, vector<8x6xi32>
    %937 = arith.select %934, %933, %926 : vector<8x6xi1>, vector<8x6xf32>
    %938 = vector.extract_strided_slice %919 {offsets = [0, 2], sizes = [8, 1], strides = [1, 1]} : vector<8x6xf32> to vector<8x1xf32>
    %939 = vector.broadcast %938 : vector<8x1xf32> to vector<8x6xf32>
    %940 = arith.addf %920, %939 : vector<8x6xf32>
    %941 = vector.extract_strided_slice %589 {offsets = [2, 0], sizes = [1, 6], strides = [1, 1]} : vector<6x6xf32> to vector<1x6xf32>
    %942 = vector.broadcast %941 : vector<1x6xf32> to vector<8x6xf32>
    %943 = arith.addf %940, %942 : vector<8x6xf32>
    %944 = arith.cmpf ogt, %943, %937 : vector<8x6xf32>
    %c2_i32_224 = arith.constant 2 : i32
    %945 = vector.broadcast %c2_i32_224 : i32 to vector<8x6xi32>
    %946 = arith.select %944, %945, %936 : vector<8x6xi1>, vector<8x6xi32>
    %947 = arith.select %944, %943, %937 : vector<8x6xi1>, vector<8x6xf32>
    %948 = vector.extract_strided_slice %919 {offsets = [0, 3], sizes = [8, 1], strides = [1, 1]} : vector<8x6xf32> to vector<8x1xf32>
    %949 = vector.broadcast %948 : vector<8x1xf32> to vector<8x6xf32>
    %950 = arith.addf %920, %949 : vector<8x6xf32>
    %951 = vector.extract_strided_slice %589 {offsets = [3, 0], sizes = [1, 6], strides = [1, 1]} : vector<6x6xf32> to vector<1x6xf32>
    %952 = vector.broadcast %951 : vector<1x6xf32> to vector<8x6xf32>
    %953 = arith.addf %950, %952 : vector<8x6xf32>
    %954 = arith.cmpf ogt, %953, %947 : vector<8x6xf32>
    %c3_i32_225 = arith.constant 3 : i32
    %955 = vector.broadcast %c3_i32_225 : i32 to vector<8x6xi32>
    %956 = arith.select %954, %955, %946 : vector<8x6xi1>, vector<8x6xi32>
    %957 = arith.select %954, %953, %947 : vector<8x6xi1>, vector<8x6xf32>
    %958 = vector.extract_strided_slice %919 {offsets = [0, 4], sizes = [8, 1], strides = [1, 1]} : vector<8x6xf32> to vector<8x1xf32>
    %959 = vector.broadcast %958 : vector<8x1xf32> to vector<8x6xf32>
    %960 = arith.addf %920, %959 : vector<8x6xf32>
    %961 = vector.extract_strided_slice %589 {offsets = [4, 0], sizes = [1, 6], strides = [1, 1]} : vector<6x6xf32> to vector<1x6xf32>
    %962 = vector.broadcast %961 : vector<1x6xf32> to vector<8x6xf32>
    %963 = arith.addf %960, %962 : vector<8x6xf32>
    %964 = arith.cmpf ogt, %963, %957 : vector<8x6xf32>
    %c4_i32_226 = arith.constant 4 : i32
    %965 = vector.broadcast %c4_i32_226 : i32 to vector<8x6xi32>
    %966 = arith.select %964, %965, %956 : vector<8x6xi1>, vector<8x6xi32>
    %967 = arith.select %964, %963, %957 : vector<8x6xi1>, vector<8x6xf32>
    %968 = vector.extract_strided_slice %919 {offsets = [0, 5], sizes = [8, 1], strides = [1, 1]} : vector<8x6xf32> to vector<8x1xf32>
    %969 = vector.broadcast %968 : vector<8x1xf32> to vector<8x6xf32>
    %970 = arith.addf %920, %969 : vector<8x6xf32>
    %971 = vector.extract_strided_slice %589 {offsets = [5, 0], sizes = [1, 6], strides = [1, 1]} : vector<6x6xf32> to vector<1x6xf32>
    %972 = vector.broadcast %971 : vector<1x6xf32> to vector<8x6xf32>
    %973 = arith.addf %970, %972 : vector<8x6xf32>
    %974 = arith.cmpf ogt, %973, %967 : vector<8x6xf32>
    %c5_i32_227 = arith.constant 5 : i32
    %975 = vector.broadcast %c5_i32_227 : i32 to vector<8x6xi32>
    %976 = arith.select %974, %975, %966 : vector<8x6xi1>, vector<8x6xi32>
    %977 = arith.select %974, %973, %967 : vector<8x6xi1>, vector<8x6xf32>
    %c5 = arith.constant 5 : index
    %c0_228 = arith.constant 0 : index
    %c0_229 = arith.constant 0 : index
    %978 = vector.load %arg14[%c5, %c0_228, %c0_229] : memref<8x8x6xi32, #tpu.memory_space<vmem>>, vector<1x8x6xi32>
    %979 = vector.shape_cast %978 : vector<1x8x6xi32> to vector<8x6xi32>
    %980 = vector.shape_cast %976 : vector<8x6xi32> to vector<1x8x6xi32>
    tpu.vector_store %arg14[%c5, %c0_228, %c0_229], %980 {strides = array<i32>} : memref<8x8x6xi32, #tpu.memory_space<vmem>>, vector<1x8x6xi32>,
    %c5_i32_230 = arith.constant 5 : i32
    %981 = vector.broadcast %c5_i32_230 : i32 to vector<8x1xi32>
    %982 = arith.cmpi sgt, %30, %981 : vector<8x1xi32>
    %983 = vector.shape_cast %982 : vector<8x1xi1> to vector<8x1xi1>
    %984 = vector.broadcast %983 : vector<8x1xi1> to vector<8x6xi1>
    %985 = arith.select %984, %977, %919 : vector<8x6xi1>, vector<8x6xf32>
    %986 = vector.extract_strided_slice %582 {offsets = [48, 0], sizes = [8, 6], strides = [1, 1]} : vector<64x6xf32> to vector<8x6xf32>
    %987 = vector.extract_strided_slice %985 {offsets = [0, 0], sizes = [8, 1], strides = [1, 1]} : vector<8x6xf32> to vector<8x1xf32>
    %988 = vector.broadcast %987 : vector<8x1xf32> to vector<8x6xf32>
    %989 = arith.addf %986, %988 : vector<8x6xf32>
    %990 = vector.extract_strided_slice %589 {offsets = [0, 0], sizes = [1, 6], strides = [1, 1]} : vector<6x6xf32> to vector<1x6xf32>
    %991 = vector.broadcast %990 : vector<1x6xf32> to vector<8x6xf32>
    %992 = arith.addf %989, %991 : vector<8x6xf32>
    %c0_i32_231 = arith.constant 0 : i32
    %993 = vector.broadcast %c0_i32_231 : i32 to vector<8x6xi32>
    %994 = vector.extract_strided_slice %985 {offsets = [0, 1], sizes = [8, 1], strides = [1, 1]} : vector<8x6xf32> to vector<8x1xf32>
    %995 = vector.broadcast %994 : vector<8x1xf32> to vector<8x6xf32>
    %996 = arith.addf %986, %995 : vector<8x6xf32>
    %997 = vector.extract_strided_slice %589 {offsets = [1, 0], sizes = [1, 6], strides = [1, 1]} : vector<6x6xf32> to vector<1x6xf32>
    %998 = vector.broadcast %997 : vector<1x6xf32> to vector<8x6xf32>
    %999 = arith.addf %996, %998 : vector<8x6xf32>
    %1000 = arith.cmpf ogt, %999, %992 : vector<8x6xf32>
    %c1_i32_232 = arith.constant 1 : i32
    %1001 = vector.broadcast %c1_i32_232 : i32 to vector<8x6xi32>
    %1002 = arith.select %1000, %1001, %993 : vector<8x6xi1>, vector<8x6xi32>
    %1003 = arith.select %1000, %999, %992 : vector<8x6xi1>, vector<8x6xf32>
    %1004 = vector.extract_strided_slice %985 {offsets = [0, 2], sizes = [8, 1], strides = [1, 1]} : vector<8x6xf32> to vector<8x1xf32>
    %1005 = vector.broadcast %1004 : vector<8x1xf32> to vector<8x6xf32>
    %1006 = arith.addf %986, %1005 : vector<8x6xf32>
    %1007 = vector.extract_strided_slice %589 {offsets = [2, 0], sizes = [1, 6], strides = [1, 1]} : vector<6x6xf32> to vector<1x6xf32>
    %1008 = vector.broadcast %1007 : vector<1x6xf32> to vector<8x6xf32>
    %1009 = arith.addf %1006, %1008 : vector<8x6xf32>
    %1010 = arith.cmpf ogt, %1009, %1003 : vector<8x6xf32>
    %c2_i32_233 = arith.constant 2 : i32
    %1011 = vector.broadcast %c2_i32_233 : i32 to vector<8x6xi32>
    %1012 = arith.select %1010, %1011, %1002 : vector<8x6xi1>, vector<8x6xi32>
    %1013 = arith.select %1010, %1009, %1003 : vector<8x6xi1>, vector<8x6xf32>
    %1014 = vector.extract_strided_slice %985 {offsets = [0, 3], sizes = [8, 1], strides = [1, 1]} : vector<8x6xf32> to vector<8x1xf32>
    %1015 = vector.broadcast %1014 : vector<8x1xf32> to vector<8x6xf32>
    %1016 = arith.addf %986, %1015 : vector<8x6xf32>
    %1017 = vector.extract_strided_slice %589 {offsets = [3, 0], sizes = [1, 6], strides = [1, 1]} : vector<6x6xf32> to vector<1x6xf32>
    %1018 = vector.broadcast %1017 : vector<1x6xf32> to vector<8x6xf32>
    %1019 = arith.addf %1016, %1018 : vector<8x6xf32>
    %1020 = arith.cmpf ogt, %1019, %1013 : vector<8x6xf32>
    %c3_i32_234 = arith.constant 3 : i32
    %1021 = vector.broadcast %c3_i32_234 : i32 to vector<8x6xi32>
    %1022 = arith.select %1020, %1021, %1012 : vector<8x6xi1>, vector<8x6xi32>
    %1023 = arith.select %1020, %1019, %1013 : vector<8x6xi1>, vector<8x6xf32>
    %1024 = vector.extract_strided_slice %985 {offsets = [0, 4], sizes = [8, 1], strides = [1, 1]} : vector<8x6xf32> to vector<8x1xf32>
    %1025 = vector.broadcast %1024 : vector<8x1xf32> to vector<8x6xf32>
    %1026 = arith.addf %986, %1025 : vector<8x6xf32>
    %1027 = vector.extract_strided_slice %589 {offsets = [4, 0], sizes = [1, 6], strides = [1, 1]} : vector<6x6xf32> to vector<1x6xf32>
    %1028 = vector.broadcast %1027 : vector<1x6xf32> to vector<8x6xf32>
    %1029 = arith.addf %1026, %1028 : vector<8x6xf32>
    %1030 = arith.cmpf ogt, %1029, %1023 : vector<8x6xf32>
    %c4_i32_235 = arith.constant 4 : i32
    %1031 = vector.broadcast %c4_i32_235 : i32 to vector<8x6xi32>
    %1032 = arith.select %1030, %1031, %1022 : vector<8x6xi1>, vector<8x6xi32>
    %1033 = arith.select %1030, %1029, %1023 : vector<8x6xi1>, vector<8x6xf32>
    %1034 = vector.extract_strided_slice %985 {offsets = [0, 5], sizes = [8, 1], strides = [1, 1]} : vector<8x6xf32> to vector<8x1xf32>
    %1035 = vector.broadcast %1034 : vector<8x1xf32> to vector<8x6xf32>
    %1036 = arith.addf %986, %1035 : vector<8x6xf32>
    %1037 = vector.extract_strided_slice %589 {offsets = [5, 0], sizes = [1, 6], strides = [1, 1]} : vector<6x6xf32> to vector<1x6xf32>
    %1038 = vector.broadcast %1037 : vector<1x6xf32> to vector<8x6xf32>
    %1039 = arith.addf %1036, %1038 : vector<8x6xf32>
    %1040 = arith.cmpf ogt, %1039, %1033 : vector<8x6xf32>
    %c5_i32_236 = arith.constant 5 : i32
    %1041 = vector.broadcast %c5_i32_236 : i32 to vector<8x6xi32>
    %1042 = arith.select %1040, %1041, %1032 : vector<8x6xi1>, vector<8x6xi32>
    %1043 = arith.select %1040, %1039, %1033 : vector<8x6xi1>, vector<8x6xf32>
    %c6 = arith.constant 6 : index
    %c0_237 = arith.constant 0 : index
    %c0_238 = arith.constant 0 : index
    %1044 = vector.load %arg14[%c6, %c0_237, %c0_238] : memref<8x8x6xi32, #tpu.memory_space<vmem>>, vector<1x8x6xi32>
    %1045 = vector.shape_cast %1044 : vector<1x8x6xi32> to vector<8x6xi32>
    %1046 = vector.shape_cast %1042 : vector<8x6xi32> to vector<1x8x6xi32>
    tpu.vector_store %arg14[%c6, %c0_237, %c0_238], %1046 {strides = array<i32>} : memref<8x8x6xi32, #tpu.memory_space<vmem>>, vector<1x8x6xi32>,
    %c6_i32_239 = arith.constant 6 : i32
    %1047 = vector.broadcast %c6_i32_239 : i32 to vector<8x1xi32>
    %1048 = arith.cmpi sgt, %30, %1047 : vector<8x1xi32>
    %1049 = vector.shape_cast %1048 : vector<8x1xi1> to vector<8x1xi1>
    %1050 = vector.broadcast %1049 : vector<8x1xi1> to vector<8x6xi1>
    %1051 = arith.select %1050, %1043, %985 : vector<8x6xi1>, vector<8x6xf32>
    %1052 = vector.extract_strided_slice %582 {offsets = [56, 0], sizes = [8, 6], strides = [1, 1]} : vector<64x6xf32> to vector<8x6xf32>
    %1053 = vector.extract_strided_slice %1051 {offsets = [0, 0], sizes = [8, 1], strides = [1, 1]} : vector<8x6xf32> to vector<8x1xf32>
    %1054 = vector.broadcast %1053 : vector<8x1xf32> to vector<8x6xf32>
    %1055 = arith.addf %1052, %1054 : vector<8x6xf32>
    %1056 = vector.extract_strided_slice %589 {offsets = [0, 0], sizes = [1, 6], strides = [1, 1]} : vector<6x6xf32> to vector<1x6xf32>
    %1057 = vector.broadcast %1056 : vector<1x6xf32> to vector<8x6xf32>
    %1058 = arith.addf %1055, %1057 : vector<8x6xf32>
    %c0_i32_240 = arith.constant 0 : i32
    %1059 = vector.broadcast %c0_i32_240 : i32 to vector<8x6xi32>
    %1060 = vector.extract_strided_slice %1051 {offsets = [0, 1], sizes = [8, 1], strides = [1, 1]} : vector<8x6xf32> to vector<8x1xf32>
    %1061 = vector.broadcast %1060 : vector<8x1xf32> to vector<8x6xf32>
    %1062 = arith.addf %1052, %1061 : vector<8x6xf32>
    %1063 = vector.extract_strided_slice %589 {offsets = [1, 0], sizes = [1, 6], strides = [1, 1]} : vector<6x6xf32> to vector<1x6xf32>
    %1064 = vector.broadcast %1063 : vector<1x6xf32> to vector<8x6xf32>
    %1065 = arith.addf %1062, %1064 : vector<8x6xf32>
    %1066 = arith.cmpf ogt, %1065, %1058 : vector<8x6xf32>
    %c1_i32_241 = arith.constant 1 : i32
    %1067 = vector.broadcast %c1_i32_241 : i32 to vector<8x6xi32>
    %1068 = arith.select %1066, %1067, %1059 : vector<8x6xi1>, vector<8x6xi32>
    %1069 = arith.select %1066, %1065, %1058 : vector<8x6xi1>, vector<8x6xf32>
    %1070 = vector.extract_strided_slice %1051 {offsets = [0, 2], sizes = [8, 1], strides = [1, 1]} : vector<8x6xf32> to vector<8x1xf32>
    %1071 = vector.broadcast %1070 : vector<8x1xf32> to vector<8x6xf32>
    %1072 = arith.addf %1052, %1071 : vector<8x6xf32>
    %1073 = vector.extract_strided_slice %589 {offsets = [2, 0], sizes = [1, 6], strides = [1, 1]} : vector<6x6xf32> to vector<1x6xf32>
    %1074 = vector.broadcast %1073 : vector<1x6xf32> to vector<8x6xf32>
    %1075 = arith.addf %1072, %1074 : vector<8x6xf32>
    %1076 = arith.cmpf ogt, %1075, %1069 : vector<8x6xf32>
    %c2_i32_242 = arith.constant 2 : i32
    %1077 = vector.broadcast %c2_i32_242 : i32 to vector<8x6xi32>
    %1078 = arith.select %1076, %1077, %1068 : vector<8x6xi1>, vector<8x6xi32>
    %1079 = arith.select %1076, %1075, %1069 : vector<8x6xi1>, vector<8x6xf32>
    %1080 = vector.extract_strided_slice %1051 {offsets = [0, 3], sizes = [8, 1], strides = [1, 1]} : vector<8x6xf32> to vector<8x1xf32>
    %1081 = vector.broadcast %1080 : vector<8x1xf32> to vector<8x6xf32>
    %1082 = arith.addf %1052, %1081 : vector<8x6xf32>
    %1083 = vector.extract_strided_slice %589 {offsets = [3, 0], sizes = [1, 6], strides = [1, 1]} : vector<6x6xf32> to vector<1x6xf32>
    %1084 = vector.broadcast %1083 : vector<1x6xf32> to vector<8x6xf32>
    %1085 = arith.addf %1082, %1084 : vector<8x6xf32>
    %1086 = arith.cmpf ogt, %1085, %1079 : vector<8x6xf32>
    %c3_i32_243 = arith.constant 3 : i32
    %1087 = vector.broadcast %c3_i32_243 : i32 to vector<8x6xi32>
    %1088 = arith.select %1086, %1087, %1078 : vector<8x6xi1>, vector<8x6xi32>
    %1089 = arith.select %1086, %1085, %1079 : vector<8x6xi1>, vector<8x6xf32>
    %1090 = vector.extract_strided_slice %1051 {offsets = [0, 4], sizes = [8, 1], strides = [1, 1]} : vector<8x6xf32> to vector<8x1xf32>
    %1091 = vector.broadcast %1090 : vector<8x1xf32> to vector<8x6xf32>
    %1092 = arith.addf %1052, %1091 : vector<8x6xf32>
    %1093 = vector.extract_strided_slice %589 {offsets = [4, 0], sizes = [1, 6], strides = [1, 1]} : vector<6x6xf32> to vector<1x6xf32>
    %1094 = vector.broadcast %1093 : vector<1x6xf32> to vector<8x6xf32>
    %1095 = arith.addf %1092, %1094 : vector<8x6xf32>
    %1096 = arith.cmpf ogt, %1095, %1089 : vector<8x6xf32>
    %c4_i32_244 = arith.constant 4 : i32
    %1097 = vector.broadcast %c4_i32_244 : i32 to vector<8x6xi32>
    %1098 = arith.select %1096, %1097, %1088 : vector<8x6xi1>, vector<8x6xi32>
    %1099 = arith.select %1096, %1095, %1089 : vector<8x6xi1>, vector<8x6xf32>
    %1100 = vector.extract_strided_slice %1051 {offsets = [0, 5], sizes = [8, 1], strides = [1, 1]} : vector<8x6xf32> to vector<8x1xf32>
    %1101 = vector.broadcast %1100 : vector<8x1xf32> to vector<8x6xf32>
    %1102 = arith.addf %1052, %1101 : vector<8x6xf32>
    %1103 = vector.extract_strided_slice %589 {offsets = [5, 0], sizes = [1, 6], strides = [1, 1]} : vector<6x6xf32> to vector<1x6xf32>
    %1104 = vector.broadcast %1103 : vector<1x6xf32> to vector<8x6xf32>
    %1105 = arith.addf %1102, %1104 : vector<8x6xf32>
    %1106 = arith.cmpf ogt, %1105, %1099 : vector<8x6xf32>
    %c5_i32_245 = arith.constant 5 : i32
    %1107 = vector.broadcast %c5_i32_245 : i32 to vector<8x6xi32>
    %1108 = arith.select %1106, %1107, %1098 : vector<8x6xi1>, vector<8x6xi32>
    %1109 = arith.select %1106, %1105, %1099 : vector<8x6xi1>, vector<8x6xf32>
    %c7 = arith.constant 7 : index
    %c0_246 = arith.constant 0 : index
    %c0_247 = arith.constant 0 : index
    %1110 = vector.load %arg14[%c7, %c0_246, %c0_247] : memref<8x8x6xi32, #tpu.memory_space<vmem>>, vector<1x8x6xi32>
    %1111 = vector.shape_cast %1110 : vector<1x8x6xi32> to vector<8x6xi32>
    %1112 = vector.shape_cast %1108 : vector<8x6xi32> to vector<1x8x6xi32>
    tpu.vector_store %arg14[%c7, %c0_246, %c0_247], %1112 {strides = array<i32>} : memref<8x8x6xi32, #tpu.memory_space<vmem>>, vector<1x8x6xi32>,
    %c7_i32_248 = arith.constant 7 : i32
    %1113 = vector.broadcast %c7_i32_248 : i32 to vector<8x1xi32>
    %1114 = arith.cmpi sgt, %30, %1113 : vector<8x1xi32>
    %1115 = vector.shape_cast %1114 : vector<8x1xi1> to vector<8x1xi1>
    %1116 = vector.broadcast %1115 : vector<8x1xi1> to vector<8x6xi1>
    %1117 = arith.select %1116, %1109, %1051 : vector<8x6xi1>, vector<8x6xf32>
    %c0_249 = arith.constant 0 : index
    %c0_250 = arith.constant 0 : index
    %1118 = vector.load %arg9[%c0_249, %c0_250] : memref<1x6xf32, #tpu.memory_space<vmem>>, vector<1x6xf32>
    %1119 = vector.broadcast %1118 : vector<1x6xf32> to vector<8x6xf32>
    %1120 = arith.addf %1117, %1119 : vector<8x6xf32>
    %cst_251 = arith.constant dense<0xFF800000> : vector<8xf32>
    %1121 = vector.multi_reduction <maximumf>, %1120, %cst_251 [1] : vector<8x6xf32> to vector<8xf32>
    %1122 = vector.shape_cast %1121 : vector<8xf32> to vector<8x1xf32>
    %c0_252 = arith.constant 0 : index
    %c0_253 = arith.constant 0 : index
    %1123 = vector.load %arg11[%c0_252, %c0_253] : memref<8x1xf32, #tpu.memory_space<vmem>>, vector<8x1xf32>
    tpu.vector_store %arg11[%c0_252, %c0_253], %1122 {strides = array<i32>} : memref<8x1xf32, #tpu.memory_space<vmem>>, vector<8x1xf32>,
    %1124 = tpu.reduce_index %1120 {axis = 1 : i32, kind = #tpu.reduction_kind<arg_max>} : vector<8x6xf32> -> vector<8xi32>
    %1125 = vector.shape_cast %1124 : vector<8xi32> to vector<8x1xi32>
    %1126 = tpu.iota {dimensions = array<i32: 1>} : vector<8x8xi32>
    %c0_i32_254 = arith.constant 0 : i32
    %1127 = vector.broadcast %c0_i32_254 : i32 to vector<8x8xi32>
    %c7_i32_255 = arith.constant 7 : i32
    %1128 = vector.broadcast %c7_i32_255 : i32 to vector<8x1xi32>
    %1129 = arith.cmpi sgt, %30, %1128 : vector<8x1xi32>
    %c7_i32_256 = arith.constant 7 : i32
    %1130 = vector.broadcast %c7_i32_256 : i32 to vector<8x8xi32>
    %1131 = arith.cmpi eq, %1126, %1130 : vector<8x8xi32>
    %1132 = vector.broadcast %1129 : vector<8x1xi1> to vector<8x8xi1>
    %1133 = arith.andi %1132, %1131 : vector<8x8xi1>
    %1134 = vector.shape_cast %1125 : vector<8x1xi32> to vector<8x1xi32>
    %1135 = vector.broadcast %1134 : vector<8x1xi32> to vector<8x8xi32>
    %1136 = arith.select %1133, %1135, %1127 : vector<8x8xi1>, vector<8x8xi32>
    %1137 = vector.broadcast %1125 : vector<8x1xi32> to vector<8x6xi32>
    %1138 = arith.cmpi eq, %583, %1137 : vector<8x6xi32>
    %c7_257 = arith.constant 7 : index
    %c0_258 = arith.constant 0 : index
    %c0_259 = arith.constant 0 : index
    %1139 = vector.load %arg14[%c7_257, %c0_258, %c0_259] : memref<8x8x6xi32, #tpu.memory_space<vmem>>, vector<1x8x6xi32>
    %1140 = vector.shape_cast %1139 : vector<1x8x6xi32> to vector<8x6xi32>
    %c0_i32_260 = arith.constant 0 : i32
    %1141 = vector.broadcast %c0_i32_260 : i32 to vector<8x6xi32>
    %1142 = arith.select %1138, %1140, %1141 : vector<8x6xi1>, vector<8x6xi32>
    %cst_261 = arith.constant dense<0> : vector<8xi32>
    %1143 = vector.multi_reduction <add>, %1142, %cst_261 [1] : vector<8x6xi32> to vector<8xi32>
    %1144 = vector.shape_cast %1143 : vector<8xi32> to vector<8x1xi32>
    %1145 = arith.select %1129, %1144, %1125 : vector<8x1xi1>, vector<8x1xi32>
    %c6_i32_262 = arith.constant 6 : i32
    %1146 = vector.broadcast %c6_i32_262 : i32 to vector<8x1xi32>
    %1147 = arith.cmpi sgt, %30, %1146 : vector<8x1xi32>
    %c6_i32_263 = arith.constant 6 : i32
    %1148 = vector.broadcast %c6_i32_263 : i32 to vector<8x8xi32>
    %1149 = arith.cmpi eq, %1126, %1148 : vector<8x8xi32>
    %1150 = vector.broadcast %1147 : vector<8x1xi1> to vector<8x8xi1>
    %1151 = arith.andi %1150, %1149 : vector<8x8xi1>
    %1152 = vector.shape_cast %1145 : vector<8x1xi32> to vector<8x1xi32>
    %1153 = vector.broadcast %1152 : vector<8x1xi32> to vector<8x8xi32>
    %1154 = arith.select %1151, %1153, %1136 : vector<8x8xi1>, vector<8x8xi32>
    %1155 = vector.broadcast %1145 : vector<8x1xi32> to vector<8x6xi32>
    %1156 = arith.cmpi eq, %583, %1155 : vector<8x6xi32>
    %c6_264 = arith.constant 6 : index
    %c0_265 = arith.constant 0 : index
    %c0_266 = arith.constant 0 : index
    %1157 = vector.load %arg14[%c6_264, %c0_265, %c0_266] : memref<8x8x6xi32, #tpu.memory_space<vmem>>, vector<1x8x6xi32>
    %1158 = vector.shape_cast %1157 : vector<1x8x6xi32> to vector<8x6xi32>
    %c0_i32_267 = arith.constant 0 : i32
    %1159 = vector.broadcast %c0_i32_267 : i32 to vector<8x6xi32>
    %1160 = arith.select %1156, %1158, %1159 : vector<8x6xi1>, vector<8x6xi32>
    %cst_268 = arith.constant dense<0> : vector<8xi32>
    %1161 = vector.multi_reduction <add>, %1160, %cst_268 [1] : vector<8x6xi32> to vector<8xi32>
    %1162 = vector.shape_cast %1161 : vector<8xi32> to vector<8x1xi32>
    %1163 = arith.select %1147, %1162, %1145 : vector<8x1xi1>, vector<8x1xi32>
    %c5_i32_269 = arith.constant 5 : i32
    %1164 = vector.broadcast %c5_i32_269 : i32 to vector<8x1xi32>
    %1165 = arith.cmpi sgt, %30, %1164 : vector<8x1xi32>
    %c5_i32_270 = arith.constant 5 : i32
    %1166 = vector.broadcast %c5_i32_270 : i32 to vector<8x8xi32>
    %1167 = arith.cmpi eq, %1126, %1166 : vector<8x8xi32>
    %1168 = vector.broadcast %1165 : vector<8x1xi1> to vector<8x8xi1>
    %1169 = arith.andi %1168, %1167 : vector<8x8xi1>
    %1170 = vector.shape_cast %1163 : vector<8x1xi32> to vector<8x1xi32>
    %1171 = vector.broadcast %1170 : vector<8x1xi32> to vector<8x8xi32>
    %1172 = arith.select %1169, %1171, %1154 : vector<8x8xi1>, vector<8x8xi32>
    %1173 = vector.broadcast %1163 : vector<8x1xi32> to vector<8x6xi32>
    %1174 = arith.cmpi eq, %583, %1173 : vector<8x6xi32>
    %c5_271 = arith.constant 5 : index
    %c0_272 = arith.constant 0 : index
    %c0_273 = arith.constant 0 : index
    %1175 = vector.load %arg14[%c5_271, %c0_272, %c0_273] : memref<8x8x6xi32, #tpu.memory_space<vmem>>, vector<1x8x6xi32>
    %1176 = vector.shape_cast %1175 : vector<1x8x6xi32> to vector<8x6xi32>
    %c0_i32_274 = arith.constant 0 : i32
    %1177 = vector.broadcast %c0_i32_274 : i32 to vector<8x6xi32>
    %1178 = arith.select %1174, %1176, %1177 : vector<8x6xi1>, vector<8x6xi32>
    %cst_275 = arith.constant dense<0> : vector<8xi32>
    %1179 = vector.multi_reduction <add>, %1178, %cst_275 [1] : vector<8x6xi32> to vector<8xi32>
    %1180 = vector.shape_cast %1179 : vector<8xi32> to vector<8x1xi32>
    %1181 = arith.select %1165, %1180, %1163 : vector<8x1xi1>, vector<8x1xi32>
    %c4_i32_276 = arith.constant 4 : i32
    %1182 = vector.broadcast %c4_i32_276 : i32 to vector<8x1xi32>
    %1183 = arith.cmpi sgt, %30, %1182 : vector<8x1xi32>
    %c4_i32_277 = arith.constant 4 : i32
    %1184 = vector.broadcast %c4_i32_277 : i32 to vector<8x8xi32>
    %1185 = arith.cmpi eq, %1126, %1184 : vector<8x8xi32>
    %1186 = vector.broadcast %1183 : vector<8x1xi1> to vector<8x8xi1>
    %1187 = arith.andi %1186, %1185 : vector<8x8xi1>
    %1188 = vector.shape_cast %1181 : vector<8x1xi32> to vector<8x1xi32>
    %1189 = vector.broadcast %1188 : vector<8x1xi32> to vector<8x8xi32>
    %1190 = arith.select %1187, %1189, %1172 : vector<8x8xi1>, vector<8x8xi32>
    %1191 = vector.broadcast %1181 : vector<8x1xi32> to vector<8x6xi32>
    %1192 = arith.cmpi eq, %583, %1191 : vector<8x6xi32>
    %c4_278 = arith.constant 4 : index
    %c0_279 = arith.constant 0 : index
    %c0_280 = arith.constant 0 : index
    %1193 = vector.load %arg14[%c4_278, %c0_279, %c0_280] : memref<8x8x6xi32, #tpu.memory_space<vmem>>, vector<1x8x6xi32>
    %1194 = vector.shape_cast %1193 : vector<1x8x6xi32> to vector<8x6xi32>
    %c0_i32_281 = arith.constant 0 : i32
    %1195 = vector.broadcast %c0_i32_281 : i32 to vector<8x6xi32>
    %1196 = arith.select %1192, %1194, %1195 : vector<8x6xi1>, vector<8x6xi32>
    %cst_282 = arith.constant dense<0> : vector<8xi32>
    %1197 = vector.multi_reduction <add>, %1196, %cst_282 [1] : vector<8x6xi32> to vector<8xi32>
    %1198 = vector.shape_cast %1197 : vector<8xi32> to vector<8x1xi32>
    %1199 = arith.select %1183, %1198, %1181 : vector<8x1xi1>, vector<8x1xi32>
    %c3_i32_283 = arith.constant 3 : i32
    %1200 = vector.broadcast %c3_i32_283 : i32 to vector<8x1xi32>
    %1201 = arith.cmpi sgt, %30, %1200 : vector<8x1xi32>
    %c3_i32_284 = arith.constant 3 : i32
    %1202 = vector.broadcast %c3_i32_284 : i32 to vector<8x8xi32>
    %1203 = arith.cmpi eq, %1126, %1202 : vector<8x8xi32>
    %1204 = vector.broadcast %1201 : vector<8x1xi1> to vector<8x8xi1>
    %1205 = arith.andi %1204, %1203 : vector<8x8xi1>
    %1206 = vector.shape_cast %1199 : vector<8x1xi32> to vector<8x1xi32>
    %1207 = vector.broadcast %1206 : vector<8x1xi32> to vector<8x8xi32>
    %1208 = arith.select %1205, %1207, %1190 : vector<8x8xi1>, vector<8x8xi32>
    %1209 = vector.broadcast %1199 : vector<8x1xi32> to vector<8x6xi32>
    %1210 = arith.cmpi eq, %583, %1209 : vector<8x6xi32>
    %c3_285 = arith.constant 3 : index
    %c0_286 = arith.constant 0 : index
    %c0_287 = arith.constant 0 : index
    %1211 = vector.load %arg14[%c3_285, %c0_286, %c0_287] : memref<8x8x6xi32, #tpu.memory_space<vmem>>, vector<1x8x6xi32>
    %1212 = vector.shape_cast %1211 : vector<1x8x6xi32> to vector<8x6xi32>
    %c0_i32_288 = arith.constant 0 : i32
    %1213 = vector.broadcast %c0_i32_288 : i32 to vector<8x6xi32>
    %1214 = arith.select %1210, %1212, %1213 : vector<8x6xi1>, vector<8x6xi32>
    %cst_289 = arith.constant dense<0> : vector<8xi32>
    %1215 = vector.multi_reduction <add>, %1214, %cst_289 [1] : vector<8x6xi32> to vector<8xi32>
    %1216 = vector.shape_cast %1215 : vector<8xi32> to vector<8x1xi32>
    %1217 = arith.select %1201, %1216, %1199 : vector<8x1xi1>, vector<8x1xi32>
    %c2_i32_290 = arith.constant 2 : i32
    %1218 = vector.broadcast %c2_i32_290 : i32 to vector<8x1xi32>
    %1219 = arith.cmpi sgt, %30, %1218 : vector<8x1xi32>
    %c2_i32_291 = arith.constant 2 : i32
    %1220 = vector.broadcast %c2_i32_291 : i32 to vector<8x8xi32>
    %1221 = arith.cmpi eq, %1126, %1220 : vector<8x8xi32>
    %1222 = vector.broadcast %1219 : vector<8x1xi1> to vector<8x8xi1>
    %1223 = arith.andi %1222, %1221 : vector<8x8xi1>
    %1224 = vector.shape_cast %1217 : vector<8x1xi32> to vector<8x1xi32>
    %1225 = vector.broadcast %1224 : vector<8x1xi32> to vector<8x8xi32>
    %1226 = arith.select %1223, %1225, %1208 : vector<8x8xi1>, vector<8x8xi32>
    %1227 = vector.broadcast %1217 : vector<8x1xi32> to vector<8x6xi32>
    %1228 = arith.cmpi eq, %583, %1227 : vector<8x6xi32>
    %c2_292 = arith.constant 2 : index
    %c0_293 = arith.constant 0 : index
    %c0_294 = arith.constant 0 : index
    %1229 = vector.load %arg14[%c2_292, %c0_293, %c0_294] : memref<8x8x6xi32, #tpu.memory_space<vmem>>, vector<1x8x6xi32>
    %1230 = vector.shape_cast %1229 : vector<1x8x6xi32> to vector<8x6xi32>
    %c0_i32_295 = arith.constant 0 : i32
    %1231 = vector.broadcast %c0_i32_295 : i32 to vector<8x6xi32>
    %1232 = arith.select %1228, %1230, %1231 : vector<8x6xi1>, vector<8x6xi32>
    %cst_296 = arith.constant dense<0> : vector<8xi32>
    %1233 = vector.multi_reduction <add>, %1232, %cst_296 [1] : vector<8x6xi32> to vector<8xi32>
    %1234 = vector.shape_cast %1233 : vector<8xi32> to vector<8x1xi32>
    %1235 = arith.select %1219, %1234, %1217 : vector<8x1xi1>, vector<8x1xi32>
    %c1_i32_297 = arith.constant 1 : i32
    %1236 = vector.broadcast %c1_i32_297 : i32 to vector<8x1xi32>
    %1237 = arith.cmpi sgt, %30, %1236 : vector<8x1xi32>
    %c1_i32_298 = arith.constant 1 : i32
    %1238 = vector.broadcast %c1_i32_298 : i32 to vector<8x8xi32>
    %1239 = arith.cmpi eq, %1126, %1238 : vector<8x8xi32>
    %1240 = vector.broadcast %1237 : vector<8x1xi1> to vector<8x8xi1>
    %1241 = arith.andi %1240, %1239 : vector<8x8xi1>
    %1242 = vector.shape_cast %1235 : vector<8x1xi32> to vector<8x1xi32>
    %1243 = vector.broadcast %1242 : vector<8x1xi32> to vector<8x8xi32>
    %1244 = arith.select %1241, %1243, %1226 : vector<8x8xi1>, vector<8x8xi32>
    %1245 = vector.broadcast %1235 : vector<8x1xi32> to vector<8x6xi32>
    %1246 = arith.cmpi eq, %583, %1245 : vector<8x6xi32>
    %c1_299 = arith.constant 1 : index
    %c0_300 = arith.constant 0 : index
    %c0_301 = arith.constant 0 : index
    %1247 = vector.load %arg14[%c1_299, %c0_300, %c0_301] : memref<8x8x6xi32, #tpu.memory_space<vmem>>, vector<1x8x6xi32>
    %1248 = vector.shape_cast %1247 : vector<1x8x6xi32> to vector<8x6xi32>
    %c0_i32_302 = arith.constant 0 : i32
    %1249 = vector.broadcast %c0_i32_302 : i32 to vector<8x6xi32>
    %1250 = arith.select %1246, %1248, %1249 : vector<8x6xi1>, vector<8x6xi32>
    %cst_303 = arith.constant dense<0> : vector<8xi32>
    %1251 = vector.multi_reduction <add>, %1250, %cst_303 [1] : vector<8x6xi32> to vector<8xi32>
    %1252 = vector.shape_cast %1251 : vector<8xi32> to vector<8x1xi32>
    %1253 = arith.select %1237, %1252, %1235 : vector<8x1xi1>, vector<8x1xi32>
    %c0_i32_304 = arith.constant 0 : i32
    %1254 = vector.broadcast %c0_i32_304 : i32 to vector<8x1xi32>
    %1255 = arith.cmpi sgt, %30, %1254 : vector<8x1xi32>
    %c0_i32_305 = arith.constant 0 : i32
    %1256 = vector.broadcast %c0_i32_305 : i32 to vector<8x8xi32>
    %1257 = arith.cmpi eq, %1126, %1256 : vector<8x8xi32>
    %1258 = vector.broadcast %1255 : vector<8x1xi1> to vector<8x8xi1>
    %1259 = arith.andi %1258, %1257 : vector<8x8xi1>
    %1260 = vector.shape_cast %1253 : vector<8x1xi32> to vector<8x1xi32>
    %1261 = vector.broadcast %1260 : vector<8x1xi32> to vector<8x8xi32>
    %1262 = arith.select %1259, %1261, %1244 : vector<8x8xi1>, vector<8x8xi32>
    %c0_306 = arith.constant 0 : index
    %c0_307 = arith.constant 0 : index
    %1263 = vector.load %arg10[%c0_306, %c0_307] : memref<8x8xi32, #tpu.memory_space<vmem>>, vector<8x8xi32>
    tpu.vector_store %arg10[%c0_306, %c0_307], %1262 {strides = array<i32>} : memref<8x8xi32, #tpu.memory_space<vmem>>, vector<8x8xi32>,
    return
  }
}

</mosaic_0001>

<llo_original>
// kernel: tpu_custom_call.1
$region0: #{tpu_custom_call.1}
  #allocation0 [shape = 'u32[]', space=smem, size = 0x4, offset = 0x4, fixed_abs, tag = 'smem constant byte address 0x4 - core index']
  #allocation1 [shape = 'u32[72,128]{1,0:T(1,128)}', space=vmem, size = 0x9000, scoped, tag = 'internal scratch']
  #allocation2 [shape = 'f32[2,64,32]{2,1,0:T(8,128)}', space=vmem, size = 0x10000, scoped, tag = 'scratch operand']
  #allocation3 [shape = 'bf16[64,16]{1,0:T(8,128)(2,1)}', space=vmem, size = 0x4000, scoped, tag = 'scratch operand']
  #allocation4 [shape = 's32[8,8,6]{2,1,0:T(8,128)}', space=vmem, size = 0x8000, scoped, tag = 'scratch operand']
  %s0 = inlined_call_operand.vmem [shape: s32[64,1], index: 0, kind: input, shape index: {}]
  %s1 = inlined_call_operand.vmem [shape: bf16[20,8], index: 1, kind: input, shape index: {}]
  %s2 = inlined_call_operand.vmem [shape: bf16[2,8,32], index: 2, kind: input, shape index: {}]
  %s3 = inlined_call_operand.vmem [shape: bf16[2,8,32], index: 3, kind: input, shape index: {}]
  %s4 = inlined_call_operand.vmem [shape: f32[2,1,32], index: 4, kind: input, shape index: {}]
  %s5 = inlined_call_operand.vmem [shape: s32[8,1], index: 5, kind: input, shape index: {}]
  %s6 = inlined_call_operand.vmem [shape: bf16[16,6], index: 6, kind: input, shape index: {}]
  %s7 = inlined_call_operand.vmem [shape: f32[1,6], index: 7, kind: input, shape index: {}]
  %s8 = inlined_call_operand.vmem [shape: f32[6,6], index: 8, kind: input, shape index: {}]
  %s9 = inlined_call_operand.vmem [shape: f32[1,6], index: 9, kind: input, shape index: {}]
  %s10 = inlined_call_operand.hbm [shape: s32[8,8], index: 10, kind: output, shape index: {0}]
  %s11 = inlined_call_operand.vmem [shape: f32[8,1], index: 11, kind: output, shape index: {1}]
  %12 = xla_tuple %s10, %s11
  %s13 = sld [smem:[#allocation0]]
  $region58: #{tpu_custom_call.1} parent=0
    _
  %s15 = ssub.s32 1, %s13
  %s16 = scalar_select 0, %s15, %s13
  $region1: #{tpu_custom_call.1} parent=0
    #allocation5 [shape = 'u8[4096]{0}', space=vmem, size = 0x1000, scoped, tag = 'output window, operand 0, single buffered']
    #allocation6 [shape = 's32[1]{0}', space=sflag, size = 0x4, scoped, tag = 'scoped memory for tpu_custom_call.1']
    %17 = vsyncpa [#allocation6], 0
    // Predicated region
    $region2: #{tpu_custom_call.1} parent=1 // pred_check
      _
    $region3: #{tpu_custom_call.1} parent=1 // pred_check_branch
      %19 = sbr.rel (0) target = $region5
    $region4: #{tpu_custom_call.1} parent=1 // pred_region
      _
    $region5: #{tpu_custom_call.1} parent=1 // pred_fallthru
      _
    // Predicated region
    $region6: #{tpu_custom_call.1} parent=1 // pred_check
      _
    $region7: #{tpu_custom_call.1} parent=1 // pred_check_branch
      %21 = sbr.rel (0) target = $region9
    $region8: #{tpu_custom_call.1} parent=1 // pred_region
      _
    $region9: #{tpu_custom_call.1} parent=1 // pred_fallthru
      _
    // Predicated region
    $region10: #{tpu_custom_call.1} parent=1 // pred_check
      _
    $region11: #{tpu_custom_call.1} parent=1 // pred_check_branch
      %23 = sbr.rel (0) target = $region13
    $region12: #{tpu_custom_call.1} parent=1 // pred_region
      _
    $region13: #{tpu_custom_call.1} parent=1 // pred_fallthru
      _
    // Predicated region
    $region14: #{tpu_custom_call.1} parent=1 // pred_check
      _
    $region15: #{tpu_custom_call.1} parent=1 // pred_check_branch
      %25 = sbr.rel (0) target = $region17
    $region16: #{tpu_custom_call.1} parent=1 // pred_region
      _
    $region17: #{tpu_custom_call.1} parent=1 // pred_fallthru
      _
    // Predicated region
    $region18: #{tpu_custom_call.1} parent=1 // pred_check
      _
    $region19: #{tpu_custom_call.1} parent=1 // pred_check_branch
      %27 = sbr.rel (0) target = $region21
    $region20: #{tpu_custom_call.1} parent=1 // pred_region
      _
    $region21: #{tpu_custom_call.1} parent=1 // pred_fallthru
      _
    // Predicated region
    $region22: #{tpu_custom_call.1} parent=1 // pred_check
      _
    $region23: #{tpu_custom_call.1} parent=1 // pred_check_branch
      %29 = sbr.rel (0) target = $region25
    $region24: #{tpu_custom_call.1} parent=1 // pred_region
      _
    $region25: #{tpu_custom_call.1} parent=1 // pred_fallthru
      _
    // Predicated region
    $region26: #{tpu_custom_call.1} parent=1 // pred_check
      _
    $region27: #{tpu_custom_call.1} parent=1 // pred_check_branch
      %31 = sbr.rel (0) target = $region29
    $region28: #{tpu_custom_call.1} parent=1 // pred_region
      _
    $region29: #{tpu_custom_call.1} parent=1 // pred_fallthru
      _
    // Predicated region
    $region30: #{tpu_custom_call.1} parent=1 // pred_check
      _
    $region31: #{tpu_custom_call.1} parent=1 // pred_check_branch
      %33 = sbr.rel (0) target = $region33
    $region32: #{tpu_custom_call.1} parent=1 // pred_region
      _
    $region33: #{tpu_custom_call.1} parent=1 // pred_fallthru
      _
    // Predicated region
    $region34: #{tpu_custom_call.1} parent=1 // pred_check
      _
    $region35: #{tpu_custom_call.1} parent=1 // pred_check_branch
      %35 = sbr.rel (0) target = $region37
    $region36: #{tpu_custom_call.1} parent=1 // pred_region
      _
    $region37: #{tpu_custom_call.1} parent=1 // pred_fallthru
      _
    // Predicated region
    $region38: #{tpu_custom_call.1} parent=1 // pred_check
      _
    $region39: #{tpu_custom_call.1} parent=1 // pred_check_branch
      %37 = sbr.rel (0) target = $region41
    $region40: #{tpu_custom_call.1} parent=1 // pred_region
      _
    $region41: #{tpu_custom_call.1} parent=1 // pred_fallthru
      _
    %v39 = vlaneseq
    %v40 = vand.u32 %v39, 127
    %v41 = vld [vmem:[%s0] sm:$0xff]
    %v42 = vld [vmem:[%s0 + $0x8] sm:$0xff]
    %v43 = vld [vmem:[%s0 + $0x10] sm:$0xff]
    %v44 = vld [vmem:[%s0 + $0x18] sm:$0xff]
    %v45 = vld [vmem:[%s0 + $0x20] sm:$0xff]
    %v46 = vld [vmem:[%s0 + $0x28] sm:$0xff]
    %v47 = vld [vmem:[%s0 + $0x30] sm:$0xff]
    %v48 = vld [vmem:[%s0 + $0x38] sm:$0xff]
    %49 = vset.pattern.permute.xlu0 0
    %50 = vperm.xlu0 %49, %v41
    %v51 = vpop.permute.xlu0 %50
    %52 = vset.pattern.permute.xlu0 0
    %53 = vperm.xlu0 %52, %v42
    %v54 = vpop.permute.xlu0 %53
    %55 = vset.pattern.permute.xlu0 0
    %56 = vperm.xlu0 %55, %v43
    %v57 = vpop.permute.xlu0 %56
    %58 = vset.pattern.permute.xlu0 0
    %59 = vperm.xlu0 %58, %v44
    %v60 = vpop.permute.xlu0 %59
    %61 = vset.pattern.permute.xlu0 0
    %62 = vperm.xlu0 %61, %v45
    %v63 = vpop.permute.xlu0 %62
    %64 = vset.pattern.permute.xlu0 0
    %65 = vperm.xlu0 %64, %v46
    %v66 = vpop.permute.xlu0 %65
    %67 = vset.pattern.permute.xlu0 0
    %68 = vperm.xlu0 %67, %v47
    %v69 = vpop.permute.xlu0 %68
    %70 = vset.pattern.permute.xlu0 0
    %71 = vperm.xlu0 %70, %v48
    %v72 = vpop.permute.xlu0 %71
    %vm73 = vcmp.eq.s32.totalorder %v51, %v40
    %vm74 = vcmp.eq.s32.totalorder %v54, %v40
    %vm75 = vcmp.eq.s32.totalorder %v57, %v40
    %vm76 = vcmp.eq.s32.totalorder %v60, %v40
    %vm77 = vcmp.eq.s32.totalorder %v63, %v40
    %vm78 = vcmp.eq.s32.totalorder %v66, %v40
    %vm79 = vcmp.eq.s32.totalorder %v69, %v40
    %vm80 = vcmp.eq.s32.totalorder %v72, %v40
    %v81 = vsel %vm73, 1, 0
    %v82 = vsel %vm74, 1, 0
    %v83 = vsel %vm75, 1, 0
    %v84 = vsel %vm76, 1, 0
    %v85 = vsel %vm77, 1, 0
    %v86 = vsel %vm78, 1, 0
    %v87 = vsel %vm79, 1, 0
    %v88 = vsel %vm80, 1, 0
    %v89 = vcvt.s32.f32 %v81
    %v90 = vcvt.s32.f32 %v82
    %v91 = vcvt.s32.f32 %v83
    %v92 = vcvt.s32.f32 %v84
    %v93 = vcvt.s32.f32 %v85
    %v94 = vcvt.s32.f32 %v86
    %v95 = vcvt.s32.f32 %v87
    %v96 = vcvt.s32.f32 %v88
    %v97 = vpack.c.bf16 %v90, %v89
    %v98 = vpack.c.bf16 %v92, %v91
    %v99 = vpack.c.bf16 %v94, %v93
    %v100 = vpack.c.bf16 %v96, %v95
    %v101 = vld [vmem:[%s1] sm:$0xf]
    %v102 = vld [vmem:[%s1 + $0x4] sm:$0xf]
    %v103 = vld [vmem:[%s1 + $0x8] sm:$0x3]
    %v107 = vunpack.c.l.b16 %v101
    %v108 = vunpack.c.l.b16 %v102
    %v109 = vunpack.c.l.b16 %v103
    %v110 = vpack.c.b16 %v108, %v107
    %v111 = vpack.c.b16 %v109, %v109
    %vm113 = vcmask 162816
    %v115 = vsel %vm113, %v97, 0
    %v118 = vsel %vm113, %v98, 0
    %v121 = vsel %vm113, %v99, 0
    %v124 = vsel %vm113, %v100, 0
    %vm126 = vcmask 1041408
    %v128 = vsel %vm126, %v111, 0
    %130 = vmatpush.bf16.msra.mxu0 0
    %131 = vmatpush.bf16.msra.mxu0 0
    %132 = vmatpush.bf16.msra.mxu0 0
    %133 = vmatpush.bf16.msra.mxu0 0
    %134 = vmatpush.bf16.msra.mxu0 0
    %135 = vmatpush.bf16.msra.mxu0 0
    %136 = vmatpush.bf16.msra.mxu0 %v128
    %137 = vmatpush.bf16.msra.mxu0 %v110
    %138 = vmatmul.bf16.gmra.mxu0 %v115
    %v139 = vpop.f32.mrf.mxu0
    %v140 = vadd.f32 0.0, %v139
    %v141 = vpop.f32.mrf.mxu0
    %v142 = vadd.f32 0.0, %v141
    %143 = vmatmul.bf16.gmra.mxu0 %v118
    %v144 = vpop.f32.mrf.mxu0
    %v145 = vadd.f32 0.0, %v144
    %v146 = vpop.f32.mrf.mxu0
    %v147 = vadd.f32 0.0, %v146
    %148 = vmatmul.bf16.gmra.mxu0 %v121
    %v149 = vpop.f32.mrf.mxu0
    %v150 = vadd.f32 0.0, %v149
    %v151 = vpop.f32.mrf.mxu0
    %v152 = vadd.f32 0.0, %v151
    %153 = vmatmul.bf16.gmra.mxu0 %v124
    %v154 = vpop.f32.mrf.mxu0
    %v155 = vadd.f32 0.0, %v154
    %v156 = vpop.f32.mrf.mxu0
    %v157 = vadd.f32 0.0, %v156
    %158 = vdwg.mxu0
    %v159 = vpack.c.bf16 %v142, %v140
    %v160 = vpack.c.bf16 %v147, %v145
    %v161 = vpack.c.bf16 %v152, %v150
    %v162 = vpack.c.bf16 %v157, %v155
    %v163 = vld [vmem:[%s2] sm:$0xf]
    %v164 = vld [vmem:[%s4] sm:$0x1]
    %v166 = vperm.slane %v164, 0
    %vm168 = vcmask 64512
    %v170 = vsel %vm168, %v159, 0
    %v173 = vsel %vm168, %v160, 0
    %v176 = vsel %vm168, %v161, 0
    %v179 = vsel %vm168, %v162, 0
    %vm181 = vcmask 1043456
    %v183 = vsel %vm181, %v163, 0
    %185 = vmatpush.bf16.msra.mxu0 0
    %186 = vmatpush.bf16.msra.mxu0 0
    %187 = vmatpush.bf16.msra.mxu0 0
    %188 = vmatpush.bf16.msra.mxu0 0
    %189 = vmatpush.bf16.msra.mxu0 0
    %190 = vmatpush.bf16.msra.mxu0 0
    %191 = vmatpush.bf16.msra.mxu0 0
    %192 = vmatpush.bf16.msra.mxu0 %v183
    %193 = vmatmul.bf16.gmra.mxu0 %v170
    %v194 = vpop.f32.mrf.mxu0
    %v195 = vadd.f32 %v166, %v194
    %v196 = vpop.f32.mrf.mxu0
    %v197 = vadd.f32 %v166, %v196
    %198 = vmatmul.bf16.gmra.mxu0 %v173
    %v199 = vpop.f32.mrf.mxu0
    %v200 = vadd.f32 %v166, %v199
    %v201 = vpop.f32.mrf.mxu0
    %v202 = vadd.f32 %v166, %v201
    %203 = vmatmul.bf16.gmra.mxu0 %v176
    %v204 = vpop.f32.mrf.mxu0
    %v205 = vadd.f32 %v166, %v204
    %v206 = vpop.f32.mrf.mxu0
    %v207 = vadd.f32 %v166, %v206
    %208 = vmatmul.bf16.gmra.mxu0 %v179
    %v209 = vpop.f32.mrf.mxu0
    %v210 = vadd.f32 %v166, %v209
    %v211 = vpop.f32.mrf.mxu0
    %v212 = vadd.f32 %v166, %v211
    %213 = vdwg.mxu0
    %vm214 = vcmask 261120
    %215 = vst.msk [vmem:[#allocation2] sm:$0xff] %vm214, %v195
    %216 = vst.msk [vmem:[#allocation2 + $0x8] sm:$0xff] %vm214, %v197
    %217 = vst.msk [vmem:[#allocation2 + $0x10] sm:$0xff] %vm214, %v200
    %218 = vst.msk [vmem:[#allocation2 + $0x18] sm:$0xff] %vm214, %v202
    %219 = vst.msk [vmem:[#allocation2 + $0x20] sm:$0xff] %vm214, %v205
    %220 = vst.msk [vmem:[#allocation2 + $0x28] sm:$0xff] %vm214, %v207
    %221 = vst.msk [vmem:[#allocation2 + $0x30] sm:$0xff] %vm214, %v210
    %222 = vst.msk [vmem:[#allocation2 + $0x38] sm:$0xff] %vm214, %v212
    %s223 = scalar_lea.vmem %s2, 4
    %v224 = vld [vmem:[%s223] sm:$0xf]
    %s225 = scalar_lea.vmem %s4, 1
    %v226 = vld [vmem:[%s225] sm:$0x1]
    %v228 = vperm.slane %v226, 0
    %v231 = vsel %vm181, %v224, 0
    %233 = vmatpush.bf16.msra.mxu0 0
    %234 = vmatpush.bf16.msra.mxu0 0
    %235 = vmatpush.bf16.msra.mxu0 0
    %236 = vmatpush.bf16.msra.mxu0 0
    %237 = vmatpush.bf16.msra.mxu0 0
    %238 = vmatpush.bf16.msra.mxu0 0
    %239 = vmatpush.bf16.msra.mxu0 0
    %240 = vmatpush.bf16.msra.mxu0 %v231
    %241 = vmatmul.bf16.gmra.mxu0 %v170
    %v242 = vpop.f32.mrf.mxu0
    %v243 = vadd.f32 %v228, %v242
    %v244 = vpop.f32.mrf.mxu0
    %v245 = vadd.f32 %v228, %v244
    %246 = vmatmul.bf16.gmra.mxu0 %v173
    %v247 = vpop.f32.mrf.mxu0
    %v248 = vadd.f32 %v228, %v247
    %v249 = vpop.f32.mrf.mxu0
    %v250 = vadd.f32 %v228, %v249
    %251 = vmatmul.bf16.gmra.mxu0 %v176
    %v252 = vpop.f32.mrf.mxu0
    %v253 = vadd.f32 %v228, %v252
    %v254 = vpop.f32.mrf.mxu0
    %v255 = vadd.f32 %v228, %v254
    %256 = vmatmul.bf16.gmra.mxu0 %v179
    %v257 = vpop.f32.mrf.mxu0
    %v258 = vadd.f32 %v228, %v257
    %v259 = vpop.f32.mrf.mxu0
    %v260 = vadd.f32 %v228, %v259
    %261 = vdwg.mxu0
    %s262 = scalar_lea.vmem [#allocation2], 64
    %263 = vst.msk [vmem:[%s262] sm:$0xff] %vm214, %v243
    %264 = vst.msk [vmem:[%s262 + $0x8] sm:$0xff] %vm214, %v245
    %265 = vst.msk [vmem:[%s262 + $0x10] sm:$0xff] %vm214, %v248
    %266 = vst.msk [vmem:[%s262 + $0x18] sm:$0xff] %vm214, %v250
    %267 = vst.msk [vmem:[%s262 + $0x20] sm:$0xff] %vm214, %v253
    %268 = vst.msk [vmem:[%s262 + $0x28] sm:$0xff] %vm214, %v255
    %269 = vst.msk [vmem:[%s262 + $0x30] sm:$0xff] %vm214, %v258
    %270 = vst.msk [vmem:[%s262 + $0x38] sm:$0xff] %vm214, %v260
    %v271 = vld [vmem:[%s5] sm:$0xff]
    %v272 = vld [vmem:[%s3] sm:$0xf]
    %s273 = scalar_lea.vmem %s3, 4
    %v274 = vld [vmem:[%s273] sm:$0xf]
    %v275 = vld [vmem:[#allocation2] sm:$0xff]
    %v277 = vsel %vm168, 0, 0
    %v280 = vsel %vm181, %v272, 0
    %282 = vmatpush.bf16.msra.mxu0 0
    %283 = vmatpush.bf16.msra.mxu0 0
    %284 = vmatpush.bf16.msra.mxu0 0
    %285 = vmatpush.bf16.msra.mxu0 0
    %286 = vmatpush.bf16.msra.mxu0 0
    %287 = vmatpush.bf16.msra.mxu0 0
    %288 = vmatpush.bf16.msra.mxu0 0
    %289 = vmatpush.bf16.msra.mxu0 %v280
    %290 = vmatmul.bf16.gmra.mxu0 %v277
    %v291 = vpop.f32.mrf.mxu0
    %v292 = vadd.f32 0.0, %v291
    %v293 = vpop.f32.mrf.mxu0
    %294 = vdwg.mxu0
    %v295 = vadd.f32 %v275, %v292
    %v296 = vxor.u32 %v295, 2147483648
    %v297 = vmul.f32 %v296, 1.442695
    %v298 = vpow.pop %v297
    %v299 = vadd.f32 %v298, 1.0
    %v300 = vrcp.pop %v299
    %v301 = vmul.f32 %v299, %v300
    %v302 = vsub.f32 1.0, %v301
    %v303 = vmul.f32 %v300, %v302
    %v304 = vadd.f32 %v300, %v303
    %vm305 = vweird.f32 %v299
    %vm306 = vweird.f32 %v300
    %vm307 = vmor %vm305, %vm306
    %v308 = vsel %vm307, %v300, %v304
    %v309 = vand.u32 2147483647, %v299
    %vm310 = vcmp.eq.f32.partialorder %v309, 8.507059e+37
    %v311 = vand.u32 %v299, 2147483648
    %v312 = vor.u32 1.1754944e-38, %v311
    %v313 = vsel %vm310, %v312, %v308
    %v314 = vmul.f32 1.0, %v313
    %v315 = vtanh.pop %v295
    %v316 = vmul.f32 %v314, 0.0
    %318 = vrot.lane.b32.xlu0 %v315, 112
    %v319 = vpop.permute.xlu0 %318
    %v321 = vmul.f32 %v314, %v319
    %323 = vrot.lane.b32.xlu0 %v321, 8
    %v324 = vpop.permute.xlu0 %323
    %v326 = vadd.f32 %v316, %v324
    %v327 = vtanh.pop %v326
    %329 = vrot.lane.b32.xlu0 %v327, 16
    %v330 = vpop.permute.xlu0 %329
    %v332 = vmul.f32 %v314, %v330
    %vm333 = vcmp.gt.s32.totalorder %v271, 0
    %v334 = vsel %vm333, 1, 0
    %335 = vset.pattern.permute.xlu0 0
    %336 = vperm.xlu0 %335, %v334
    %v337 = vpop.permute.xlu0 %336
    %vm338 = vcmp.eq.s32.totalorder %v337, 1
    %v339 = vsel %vm338, %v332, 0.0
    %v340 = vsel %vm338, %v326, 0.0
    %v341 = vpack.c.bf16 %v339, %v339
    %343 = vrot.lane.b32.xlu0 %v341, 104
    %v344 = vpop.permute.xlu0 %343
    %vm346 = vcmask 60416
    %347 = vst.msk [vmem:[#allocation3] sm:$0xf] %vm346, %v344
    %v348 = vld [vmem:[%s262 + $0x38] sm:$0xff]
    %v350 = vsel %vm181, %v274, 0
    %352 = vmatpush.bf16.msra.mxu0 0
    %353 = vmatpush.bf16.msra.mxu0 0
    %354 = vmatpush.bf16.msra.mxu0 0
    %355 = vmatpush.bf16.msra.mxu0 0
    %356 = vmatpush.bf16.msra.mxu0 0
    %357 = vmatpush.bf16.msra.mxu0 0
    %358 = vmatpush.bf16.msra.mxu0 0
    %359 = vmatpush.bf16.msra.mxu0 %v350
    %360 = vmatmul.bf16.gmra.mxu0 %v277
    %v361 = vpop.f32.mrf.mxu0
    %v362 = vadd.f32 0.0, %v361
    %v363 = vpop.f32.mrf.mxu0
    %364 = vdwg.mxu0
    %v365 = vadd.f32 %v348, %v362
    %v366 = vxor.u32 %v365, 2147483648
    %v367 = vmul.f32 %v366, 1.442695
    %v368 = vpow.pop %v367
    %v369 = vadd.f32 %v368, 1.0
    %v370 = vrcp.pop %v369
    %v371 = vmul.f32 %v369, %v370
    %v372 = vsub.f32 1.0, %v371
    %v373 = vmul.f32 %v370, %v372
    %v374 = vadd.f32 %v370, %v373
    %vm375 = vweird.f32 %v369
    %vm376 = vweird.f32 %v370
    %vm377 = vmor %vm375, %vm376
    %v378 = vsel %vm377, %v370, %v374
    %v379 = vand.u32 2147483647, %v369
    %vm380 = vcmp.eq.f32.partialorder %v379, 8.507059e+37
    %v381 = vand.u32 %v369, 2147483648
    %v382 = vor.u32 1.1754944e-38, %v381
    %v383 = vsel %vm380, %v382, %v378
    %v384 = vmul.f32 1.0, %v383
    %v385 = vtanh.pop %v365
    %v386 = vmul.f32 %v384, 0.0
    %388 = vrot.lane.b32.xlu0 %v385, 112
    %v389 = vpop.permute.xlu0 %388
    %v391 = vmul.f32 %v384, %v389
    %393 = vrot.lane.b32.xlu0 %v391, 8
    %v394 = vpop.permute.xlu0 %393
    %v396 = vadd.f32 %v386, %v394
    %v397 = vtanh.pop %v396
    %399 = vrot.lane.b32.xlu0 %v397, 16
    %v400 = vpop.permute.xlu0 %399
    %v402 = vmul.f32 %v384, %v400
    %vm403 = vcmp.gt.s32.totalorder %v271, 7
    %v404 = vsel %vm403, 1, 0
    %405 = vset.pattern.permute.xlu0 0
    %406 = vperm.xlu0 %405, %v404
    %v407 = vpop.permute.xlu0 %406
    %vm408 = vcmp.eq.s32.totalorder %v407, 1
    %v409 = vsel %vm408, %v402, 0.0
    %v410 = vsel %vm408, %v396, 0.0
    %v411 = vpack.c.bf16 %v409, %v409
    %413 = vrot.lane.b32.xlu0 %v411, 112
    %v414 = vpop.permute.xlu0 %413
    %vm416 = vcmask 126016
    %417 = vst.msk [vmem:[#allocation3 + $0x1c] sm:$0xf] %vm416, %v414
    %v418 = vld [vmem:[#allocation2 + $0x8] sm:$0xff]
    %v419 = vunpack.c.l.b16 %v341
    %v420 = vpack.c.b16 %v419, %v419
    %421 = vrot.lane.b32.xlu0 %v420, 104
    %v422 = vpop.permute.xlu0 %421
    %v424 = vsel %vm168, %v422, 0
    %426 = vmatpush.bf16.msra.mxu0 0
    %427 = vmatpush.bf16.msra.mxu0 0
    %428 = vmatpush.bf16.msra.mxu0 0
    %429 = vmatpush.bf16.msra.mxu0 0
    %430 = vmatpush.bf16.msra.mxu0 0
    %431 = vmatpush.bf16.msra.mxu0 0
    %432 = vmatpush.bf16.msra.mxu0 0
    %433 = vmatpush.bf16.msra.mxu0 %v280
    %434 = vmatmul.bf16.gmra.mxu0 %v424
    %v435 = vpop.f32.mrf.mxu0
    %v436 = vadd.f32 0.0, %v435
    %v437 = vpop.f32.mrf.mxu0
    %438 = vdwg.mxu0
    %v439 = vadd.f32 %v418, %v436
    %v440 = vxor.u32 %v439, 2147483648
    %v441 = vmul.f32 %v440, 1.442695
    %v442 = vpow.pop %v441
    %v443 = vadd.f32 %v442, 1.0
    %v444 = vrcp.pop %v443
    %v445 = vmul.f32 %v443, %v444
    %v446 = vsub.f32 1.0, %v445
    %v447 = vmul.f32 %v444, %v446
    %v448 = vadd.f32 %v444, %v447
    %vm449 = vweird.f32 %v443
    %vm450 = vweird.f32 %v444
    %vm451 = vmor %vm449, %vm450
    %v452 = vsel %vm451, %v444, %v448
    %v453 = vand.u32 2147483647, %v443
    %vm454 = vcmp.eq.f32.partialorder %v453, 8.507059e+37
    %v455 = vand.u32 %v443, 2147483648
    %v456 = vor.u32 1.1754944e-38, %v455
    %v457 = vsel %vm454, %v456, %v452
    %v458 = vmul.f32 1.0, %v457
    %v459 = vtanh.pop %v439
    %v460 = vmul.f32 %v458, %v340
    %462 = vrot.lane.b32.xlu0 %v459, 112
    %v463 = vpop.permute.xlu0 %462
    %v465 = vmul.f32 %v458, %v463
    %467 = vrot.lane.b32.xlu0 %v465, 8
    %v468 = vpop.permute.xlu0 %467
    %v470 = vadd.f32 %v460, %v468
    %v471 = vtanh.pop %v470
    %473 = vrot.lane.b32.xlu0 %v471, 16
    %v474 = vpop.permute.xlu0 %473
    %v476 = vmul.f32 %v458, %v474
    %vm477 = vcmp.gt.s32.totalorder %v271, 1
    %v478 = vsel %vm477, 1, 0
    %479 = vset.pattern.permute.xlu0 0
    %480 = vperm.xlu0 %479, %v478
    %v481 = vpop.permute.xlu0 %480
    %vm482 = vcmp.eq.s32.totalorder %v481, 1
    %v483 = vsel %vm482, %v476, %v339
    %v484 = vsel %vm482, %v470, %v340
    %v485 = vsel %vm482, %v476, 0.0
    %v486 = vpack.c.bf16 %v485, %v485
    %488 = vrot.lane.b32.xlu0 %v486, 104
    %v489 = vpop.permute.xlu0 %488
    %491 = vst.msk [vmem:[#allocation3 + $0x4] sm:$0xf] %vm346, %v489
    %v492 = vld [vmem:[%s262 + $0x30] sm:$0xff]
    %v493 = vunpack.c.l.b16 %v411
    %v494 = vpack.c.b16 %v493, %v493
    %495 = vrot.lane.b32.xlu0 %v494, 104
    %v496 = vpop.permute.xlu0 %495
    %v498 = vsel %vm168, %v496, 0
    %500 = vmatpush.bf16.msra.mxu0 0
    %501 = vmatpush.bf16.msra.mxu0 0
    %502 = vmatpush.bf16.msra.mxu0 0
    %503 = vmatpush.bf16.msra.mxu0 0
    %504 = vmatpush.bf16.msra.mxu0 0
    %505 = vmatpush.bf16.msra.mxu0 0
    %506 = vmatpush.bf16.msra.mxu0 0
    %507 = vmatpush.bf16.msra.mxu0 %v350
    %508 = vmatmul.bf16.gmra.mxu0 %v498
    %v509 = vpop.f32.mrf.mxu0
    %v510 = vadd.f32 0.0, %v509
    %v511 = vpop.f32.mrf.mxu0
    %512 = vdwg.mxu0
    %v513 = vadd.f32 %v492, %v510
    %v514 = vxor.u32 %v513, 2147483648
    %v515 = vmul.f32 %v514, 1.442695
    %v516 = vpow.pop %v515
    %v517 = vadd.f32 %v516, 1.0
    %v518 = vrcp.pop %v517
    %v519 = vmul.f32 %v517, %v518
    %v520 = vsub.f32 1.0, %v519
    %v521 = vmul.f32 %v518, %v520
    %v522 = vadd.f32 %v518, %v521
    %vm523 = vweird.f32 %v517
    %vm524 = vweird.f32 %v518
    %vm525 = vmor %vm523, %vm524
    %v526 = vsel %vm525, %v518, %v522
    %v527 = vand.u32 2147483647, %v517
    %vm528 = vcmp.eq.f32.partialorder %v527, 8.507059e+37
    %v529 = vand.u32 %v517, 2147483648
    %v530 = vor.u32 1.1754944e-38, %v529
    %v531 = vsel %vm528, %v530, %v526
    %v532 = vmul.f32 1.0, %v531
    %v533 = vtanh.pop %v513
    %v534 = vmul.f32 %v532, %v410
    %536 = vrot.lane.b32.xlu0 %v533, 112
    %v537 = vpop.permute.xlu0 %536
    %v539 = vmul.f32 %v532, %v537
    %541 = vrot.lane.b32.xlu0 %v539, 8
    %v542 = vpop.permute.xlu0 %541
    %v544 = vadd.f32 %v534, %v542
    %v545 = vtanh.pop %v544
    %547 = vrot.lane.b32.xlu0 %v545, 16
    %v548 = vpop.permute.xlu0 %547
    %v550 = vmul.f32 %v532, %v548
    %vm551 = vcmp.gt.s32.totalorder %v271, 6
    %v552 = vsel %vm551, 1, 0
    %553 = vset.pattern.permute.xlu0 0
    %554 = vperm.xlu0 %553, %v552
    %v555 = vpop.permute.xlu0 %554
    %vm556 = vcmp.eq.s32.totalorder %v555, 1
    %v557 = vsel %vm556, %v550, %v409
    %v558 = vsel %vm556, %v544, %v410
    %v559 = vsel %vm556, %v550, 0.0
    %v560 = vpack.c.bf16 %v559, %v559
    %562 = vrot.lane.b32.xlu0 %v560, 112
    %v563 = vpop.permute.xlu0 %562
    %565 = vst.msk [vmem:[#allocation3 + $0x18] sm:$0xf] %vm416, %v563
    %v566 = vld [vmem:[#allocation2 + $0x10] sm:$0xff]
    %v567 = vpack.c.bf16 %v483, %v483
    %569 = vrot.lane.b32.xlu0 %v567, 104
    %v570 = vpop.permute.xlu0 %569
    %v572 = vsel %vm168, %v570, 0
    %574 = vmatpush.bf16.msra.mxu0 0
    %575 = vmatpush.bf16.msra.mxu0 0
    %576 = vmatpush.bf16.msra.mxu0 0
    %577 = vmatpush.bf16.msra.mxu0 0
    %578 = vmatpush.bf16.msra.mxu0 0
    %579 = vmatpush.bf16.msra.mxu0 0
    %580 = vmatpush.bf16.msra.mxu0 0
    %581 = vmatpush.bf16.msra.mxu0 %v280
    %582 = vmatmul.bf16.gmra.mxu0 %v572
    %v583 = vpop.f32.mrf.mxu0
    %v584 = vadd.f32 0.0, %v583
    %v585 = vpop.f32.mrf.mxu0
    %586 = vdwg.mxu0
    %v587 = vadd.f32 %v566, %v584
    %v588 = vxor.u32 %v587, 2147483648
    %v589 = vmul.f32 %v588, 1.442695
    %v590 = vpow.pop %v589
    %v591 = vadd.f32 %v590, 1.0
    %v592 = vrcp.pop %v591
    %v593 = vmul.f32 %v591, %v592
    %v594 = vsub.f32 1.0, %v593
    %v595 = vmul.f32 %v592, %v594
    %v596 = vadd.f32 %v592, %v595
    %vm597 = vweird.f32 %v591
    %vm598 = vweird.f32 %v592
    %vm599 = vmor %vm597, %vm598
    %v600 = vsel %vm599, %v592, %v596
    %v601 = vand.u32 2147483647, %v591
    %vm602 = vcmp.eq.f32.partialorder %v601, 8.507059e+37
    %v603 = vand.u32 %v591, 2147483648
    %v604 = vor.u32 1.1754944e-38, %v603
    %v605 = vsel %vm602, %v604, %v600
    %v606 = vmul.f32 1.0, %v605
    %v607 = vtanh.pop %v587
    %v608 = vmul.f32 %v606, %v484
    %610 = vrot.lane.b32.xlu0 %v607, 112
    %v611 = vpop.permute.xlu0 %610
    %v613 = vmul.f32 %v606, %v611
    %615 = vrot.lane.b32.xlu0 %v613, 8
    %v616 = vpop.permute.xlu0 %615
    %v618 = vadd.f32 %v608, %v616
    %v619 = vtanh.pop %v618
    %621 = vrot.lane.b32.xlu0 %v619, 16
    %v622 = vpop.permute.xlu0 %621
    %v624 = vmul.f32 %v606, %v622
    %vm625 = vcmp.gt.s32.totalorder %v271, 2
    %v626 = vsel %vm625, 1, 0
    %627 = vset.pattern.permute.xlu0 0
    %628 = vperm.xlu0 %627, %v626
    %v629 = vpop.permute.xlu0 %628
    %vm630 = vcmp.eq.s32.totalorder %v629, 1
    %v631 = vsel %vm630, %v624, %v483
    %v632 = vsel %vm630, %v618, %v484
    %v633 = vsel %vm630, %v624, 0.0
    %v634 = vpack.c.bf16 %v633, %v633
    %636 = vrot.lane.b32.xlu0 %v634, 104
    %v637 = vpop.permute.xlu0 %636
    %639 = vst.msk [vmem:[#allocation3 + $0x8] sm:$0xf] %vm346, %v637
    %v640 = vld [vmem:[%s262 + $0x28] sm:$0xff]
    %v641 = vpack.c.bf16 %v557, %v557
    %643 = vrot.lane.b32.xlu0 %v641, 104
    %v644 = vpop.permute.xlu0 %643
    %v646 = vsel %vm168, %v644, 0
    %648 = vmatpush.bf16.msra.mxu0 0
    %649 = vmatpush.bf16.msra.mxu0 0
    %650 = vmatpush.bf16.msra.mxu0 0
    %651 = vmatpush.bf16.msra.mxu0 0
    %652 = vmatpush.bf16.msra.mxu0 0
    %653 = vmatpush.bf16.msra.mxu0 0
    %654 = vmatpush.bf16.msra.mxu0 0
    %655 = vmatpush.bf16.msra.mxu0 %v350
    %656 = vmatmul.bf16.gmra.mxu0 %v646
    %v657 = vpop.f32.mrf.mxu0
    %v658 = vadd.f32 0.0, %v657
    %v659 = vpop.f32.mrf.mxu0
    %660 = vdwg.mxu0
    %v661 = vadd.f32 %v640, %v658
    %v662 = vxor.u32 %v661, 2147483648
    %v663 = vmul.f32 %v662, 1.442695
    %v664 = vpow.pop %v663
    %v665 = vadd.f32 %v664, 1.0
    %v666 = vrcp.pop %v665
    %v667 = vmul.f32 %v665, %v666
    %v668 = vsub.f32 1.0, %v667
    %v669 = vmul.f32 %v666, %v668
    %v670 = vadd.f32 %v666, %v669
    %vm671 = vweird.f32 %v665
    %vm672 = vweird.f32 %v666
    %vm673 = vmor %vm671, %vm672
    %v674 = vsel %vm673, %v666, %v670
    %v675 = vand.u32 2147483647, %v665
    %vm676 = vcmp.eq.f32.partialorder %v675, 8.507059e+37
    %v677 = vand.u32 %v665, 2147483648
    %v678 = vor.u32 1.1754944e-38, %v677
    %v679 = vsel %vm676, %v678, %v674
    %v680 = vmul.f32 1.0, %v679
    %v681 = vtanh.pop %v661
    %v682 = vmul.f32 %v680, %v558
    %684 = vrot.lane.b32.xlu0 %v681, 112
    %v685 = vpop.permute.xlu0 %684
    %v687 = vmul.f32 %v680, %v685
    %689 = vrot.lane.b32.xlu0 %v687, 8
    %v690 = vpop.permute.xlu0 %689
    %v692 = vadd.f32 %v682, %v690
    %v693 = vtanh.pop %v692
    %695 = vrot.lane.b32.xlu0 %v693, 16
    %v696 = vpop.permute.xlu0 %695
    %v698 = vmul.f32 %v680, %v696
    %vm699 = vcmp.gt.s32.totalorder %v271, 5
    %v700 = vsel %vm699, 1, 0
    %701 = vset.pattern.permute.xlu0 0
    %702 = vperm.xlu0 %701, %v700
    %v703 = vpop.permute.xlu0 %702
    %vm704 = vcmp.eq.s32.totalorder %v703, 1
    %v705 = vsel %vm704, %v698, %v557
    %v706 = vsel %vm704, %v692, %v558
    %v707 = vsel %vm704, %v698, 0.0
    %v708 = vpack.c.bf16 %v707, %v707
    %710 = vrot.lane.b32.xlu0 %v708, 112
    %v711 = vpop.permute.xlu0 %710
    %713 = vst.msk [vmem:[#allocation3 + $0x14] sm:$0xf] %vm416, %v711
    %v714 = vld [vmem:[#allocation2 + $0x18] sm:$0xff]
    %v715 = vpack.c.bf16 %v631, %v631
    %717 = vrot.lane.b32.xlu0 %v715, 104
    %v718 = vpop.permute.xlu0 %717
    %v720 = vsel %vm168, %v718, 0
    %722 = vmatpush.bf16.msra.mxu0 0
    %723 = vmatpush.bf16.msra.mxu0 0
    %724 = vmatpush.bf16.msra.mxu0 0
    %725 = vmatpush.bf16.msra.mxu0 0
    %726 = vmatpush.bf16.msra.mxu0 0
    %727 = vmatpush.bf16.msra.mxu0 0
    %728 = vmatpush.bf16.msra.mxu0 0
    %729 = vmatpush.bf16.msra.mxu0 %v280
    %730 = vmatmul.bf16.gmra.mxu0 %v720
    %v731 = vpop.f32.mrf.mxu0
    %v732 = vadd.f32 0.0, %v731
    %v733 = vpop.f32.mrf.mxu0
    %734 = vdwg.mxu0
    %v735 = vadd.f32 %v714, %v732
    %v736 = vxor.u32 %v735, 2147483648
    %v737 = vmul.f32 %v736, 1.442695
    %v738 = vpow.pop %v737
    %v739 = vadd.f32 %v738, 1.0
    %v740 = vrcp.pop %v739
    %v741 = vmul.f32 %v739, %v740
    %v742 = vsub.f32 1.0, %v741
    %v743 = vmul.f32 %v740, %v742
    %v744 = vadd.f32 %v740, %v743
    %vm745 = vweird.f32 %v739
    %vm746 = vweird.f32 %v740
    %vm747 = vmor %vm745, %vm746
    %v748 = vsel %vm747, %v740, %v744
    %v749 = vand.u32 2147483647, %v739
    %vm750 = vcmp.eq.f32.partialorder %v749, 8.507059e+37
    %v751 = vand.u32 %v739, 2147483648
    %v752 = vor.u32 1.1754944e-38, %v751
    %v753 = vsel %vm750, %v752, %v748
    %v754 = vmul.f32 1.0, %v753
    %v755 = vtanh.pop %v735
    %v756 = vmul.f32 %v754, %v632
    %758 = vrot.lane.b32.xlu0 %v755, 112
    %v759 = vpop.permute.xlu0 %758
    %v761 = vmul.f32 %v754, %v759
    %763 = vrot.lane.b32.xlu0 %v761, 8
    %v764 = vpop.permute.xlu0 %763
    %v766 = vadd.f32 %v756, %v764
    %v767 = vtanh.pop %v766
    %769 = vrot.lane.b32.xlu0 %v767, 16
    %v770 = vpop.permute.xlu0 %769
    %v772 = vmul.f32 %v754, %v770
    %vm773 = vcmp.gt.s32.totalorder %v271, 3
    %v774 = vsel %vm773, 1, 0
    %775 = vset.pattern.permute.xlu0 0
    %776 = vperm.xlu0 %775, %v774
    %v777 = vpop.permute.xlu0 %776
    %vm778 = vcmp.eq.s32.totalorder %v777, 1
    %v779 = vsel %vm778, %v772, %v631
    %v780 = vsel %vm778, %v766, %v632
    %v781 = vsel %vm778, %v772, 0.0
    %v782 = vpack.c.bf16 %v781, %v781
    %784 = vrot.lane.b32.xlu0 %v782, 104
    %v785 = vpop.permute.xlu0 %784
    %787 = vst.msk [vmem:[#allocation3 + $0xc] sm:$0xf] %vm346, %v785
    %v788 = vld [vmem:[%s262 + $0x20] sm:$0xff]
    %v789 = vpack.c.bf16 %v705, %v705
    %791 = vrot.lane.b32.xlu0 %v789, 104
    %v792 = vpop.permute.xlu0 %791
    %v794 = vsel %vm168, %v792, 0
    %796 = vmatpush.bf16.msra.mxu0 0
    %797 = vmatpush.bf16.msra.mxu0 0
    %798 = vmatpush.bf16.msra.mxu0 0
    %799 = vmatpush.bf16.msra.mxu0 0
    %800 = vmatpush.bf16.msra.mxu0 0
    %801 = vmatpush.bf16.msra.mxu0 0
    %802 = vmatpush.bf16.msra.mxu0 0
    %803 = vmatpush.bf16.msra.mxu0 %v350
    %804 = vmatmul.bf16.gmra.mxu0 %v794
    %v805 = vpop.f32.mrf.mxu0
    %v806 = vadd.f32 0.0, %v805
    %v807 = vpop.f32.mrf.mxu0
    %808 = vdwg.mxu0
    %v809 = vadd.f32 %v788, %v806
    %v810 = vxor.u32 %v809, 2147483648
    %v811 = vmul.f32 %v810, 1.442695
    %v812 = vpow.pop %v811
    %v813 = vadd.f32 %v812, 1.0
    %v814 = vrcp.pop %v813
    %v815 = vmul.f32 %v813, %v814
    %v816 = vsub.f32 1.0, %v815
    %v817 = vmul.f32 %v814, %v816
    %v818 = vadd.f32 %v814, %v817
    %vm819 = vweird.f32 %v813
    %vm820 = vweird.f32 %v814
    %vm821 = vmor %vm819, %vm820
    %v822 = vsel %vm821, %v814, %v818
    %v823 = vand.u32 2147483647, %v813
    %vm824 = vcmp.eq.f32.partialorder %v823, 8.507059e+37
    %v825 = vand.u32 %v813, 2147483648
    %v826 = vor.u32 1.1754944e-38, %v825
    %v827 = vsel %vm824, %v826, %v822
    %v828 = vmul.f32 1.0, %v827
    %v829 = vtanh.pop %v809
    %v830 = vmul.f32 %v828, %v706
    %832 = vrot.lane.b32.xlu0 %v829, 112
    %v833 = vpop.permute.xlu0 %832
    %v835 = vmul.f32 %v828, %v833
    %837 = vrot.lane.b32.xlu0 %v835, 8
    %v838 = vpop.permute.xlu0 %837
    %v840 = vadd.f32 %v830, %v838
    %v841 = vtanh.pop %v840
    %843 = vrot.lane.b32.xlu0 %v841, 16
    %v844 = vpop.permute.xlu0 %843
    %v846 = vmul.f32 %v828, %v844
    %vm847 = vcmp.gt.s32.totalorder %v271, 4
    %v848 = vsel %vm847, 1, 0
    %849 = vset.pattern.permute.xlu0 0
    %850 = vperm.xlu0 %849, %v848
    %v851 = vpop.permute.xlu0 %850
    %vm852 = vcmp.eq.s32.totalorder %v851, 1
    %v853 = vsel %vm852, %v846, %v705
    %v854 = vsel %vm852, %v840, %v706
    %v855 = vsel %vm852, %v846, 0.0
    %v856 = vpack.c.bf16 %v855, %v855
    %858 = vrot.lane.b32.xlu0 %v856, 112
    %v859 = vpop.permute.xlu0 %858
    %861 = vst.msk [vmem:[#allocation3 + $0x10] sm:$0xf] %vm416, %v859
    %v862 = vld [vmem:[#allocation2 + $0x20] sm:$0xff]
    %v863 = vpack.c.bf16 %v779, %v779
    %865 = vrot.lane.b32.xlu0 %v863, 104
    %v866 = vpop.permute.xlu0 %865
    %v868 = vsel %vm168, %v866, 0
    %870 = vmatpush.bf16.msra.mxu0 0
    %871 = vmatpush.bf16.msra.mxu0 0
    %872 = vmatpush.bf16.msra.mxu0 0
    %873 = vmatpush.bf16.msra.mxu0 0
    %874 = vmatpush.bf16.msra.mxu0 0
    %875 = vmatpush.bf16.msra.mxu0 0
    %876 = vmatpush.bf16.msra.mxu0 0
    %877 = vmatpush.bf16.msra.mxu0 %v280
    %878 = vmatmul.bf16.gmra.mxu0 %v868
    %v879 = vpop.f32.mrf.mxu0
    %v880 = vadd.f32 0.0, %v879
    %v881 = vpop.f32.mrf.mxu0
    %882 = vdwg.mxu0
    %v883 = vadd.f32 %v862, %v880
    %v884 = vxor.u32 %v883, 2147483648
    %v885 = vmul.f32 %v884, 1.442695
    %v886 = vpow.pop %v885
    %v887 = vadd.f32 %v886, 1.0
    %v888 = vrcp.pop %v887
    %v889 = vmul.f32 %v887, %v888
    %v890 = vsub.f32 1.0, %v889
    %v891 = vmul.f32 %v888, %v890
    %v892 = vadd.f32 %v888, %v891
    %vm893 = vweird.f32 %v887
    %vm894 = vweird.f32 %v888
    %vm895 = vmor %vm893, %vm894
    %v896 = vsel %vm895, %v888, %v892
    %v897 = vand.u32 2147483647, %v887
    %vm898 = vcmp.eq.f32.partialorder %v897, 8.507059e+37
    %v899 = vand.u32 %v887, 2147483648
    %v900 = vor.u32 1.1754944e-38, %v899
    %v901 = vsel %vm898, %v900, %v896
    %v902 = vmul.f32 1.0, %v901
    %v903 = vtanh.pop %v883
    %v904 = vmul.f32 %v902, %v780
    %906 = vrot.lane.b32.xlu0 %v903, 112
    %v907 = vpop.permute.xlu0 %906
    %v909 = vmul.f32 %v902, %v907
    %911 = vrot.lane.b32.xlu0 %v909, 8
    %v912 = vpop.permute.xlu0 %911
    %v914 = vadd.f32 %v904, %v912
    %v915 = vtanh.pop %v914
    %917 = vrot.lane.b32.xlu0 %v915, 16
    %v918 = vpop.permute.xlu0 %917
    %v920 = vmul.f32 %v902, %v918
    %v921 = vsel %vm852, %v920, %v779
    %v922 = vsel %vm852, %v914, %v780
    %v923 = vsel %vm852, %v920, 0.0
    %v924 = vpack.c.bf16 %v923, %v923
    %926 = vrot.lane.b32.xlu0 %v924, 104
    %v927 = vpop.permute.xlu0 %926
    %929 = vst.msk [vmem:[#allocation3 + $0x10] sm:$0xf] %vm346, %v927
    %v930 = vld [vmem:[%s262 + $0x18] sm:$0xff]
    %v931 = vpack.c.bf16 %v853, %v853
    %933 = vrot.lane.b32.xlu0 %v931, 104
    %v934 = vpop.permute.xlu0 %933
    %v936 = vsel %vm168, %v934, 0
    %938 = vmatpush.bf16.msra.mxu0 0
    %939 = vmatpush.bf16.msra.mxu0 0
    %940 = vmatpush.bf16.msra.mxu0 0
    %941 = vmatpush.bf16.msra.mxu0 0
    %942 = vmatpush.bf16.msra.mxu0 0
    %943 = vmatpush.bf16.msra.mxu0 0
    %944 = vmatpush.bf16.msra.mxu0 0
    %945 = vmatpush.bf16.msra.mxu0 %v350
    %946 = vmatmul.bf16.gmra.mxu0 %v936
    %v947 = vpop.f32.mrf.mxu0
    %v948 = vadd.f32 0.0, %v947
    %v949 = vpop.f32.mrf.mxu0
    %950 = vdwg.mxu0
    %v951 = vadd.f32 %v930, %v948
    %v952 = vxor.u32 %v951, 2147483648
    %v953 = vmul.f32 %v952, 1.442695
    %v954 = vpow.pop %v953
    %v955 = vadd.f32 %v954, 1.0
    %v956 = vrcp.pop %v955
    %v957 = vmul.f32 %v955, %v956
    %v958 = vsub.f32 1.0, %v957
    %v959 = vmul.f32 %v956, %v958
    %v960 = vadd.f32 %v956, %v959
    %vm961 = vweird.f32 %v955
    %vm962 = vweird.f32 %v956
    %vm963 = vmor %vm961, %vm962
    %v964 = vsel %vm963, %v956, %v960
    %v965 = vand.u32 2147483647, %v955
    %vm966 = vcmp.eq.f32.partialorder %v965, 8.507059e+37
    %v967 = vand.u32 %v955, 2147483648
    %v968 = vor.u32 1.1754944e-38, %v967
    %v969 = vsel %vm966, %v968, %v964
    %v970 = vmul.f32 1.0, %v969
    %v971 = vtanh.pop %v951
    %v972 = vmul.f32 %v970, %v854
    %974 = vrot.lane.b32.xlu0 %v971, 112
    %v975 = vpop.permute.xlu0 %974
    %v977 = vmul.f32 %v970, %v975
    %979 = vrot.lane.b32.xlu0 %v977, 8
    %v980 = vpop.permute.xlu0 %979
    %v982 = vadd.f32 %v972, %v980
    %v983 = vtanh.pop %v982
    %985 = vrot.lane.b32.xlu0 %v983, 16
    %v986 = vpop.permute.xlu0 %985
    %v988 = vmul.f32 %v970, %v986
    %v989 = vsel %vm778, %v988, %v853
    %v990 = vsel %vm778, %v982, %v854
    %v991 = vsel %vm778, %v988, 0.0
    %v992 = vpack.c.bf16 %v991, %v991
    %994 = vrot.lane.b32.xlu0 %v992, 112
    %v995 = vpop.permute.xlu0 %994
    %997 = vst.msk [vmem:[#allocation3 + $0xc] sm:$0xf] %vm416, %v995
    %v998 = vld [vmem:[#allocation2 + $0x28] sm:$0xff]
    %v999 = vpack.c.bf16 %v921, %v921
    %1001 = vrot.lane.b32.xlu0 %v999, 104
    %v1002 = vpop.permute.xlu0 %1001
    %v1004 = vsel %vm168, %v1002, 0
    %1006 = vmatpush.bf16.msra.mxu0 0
    %1007 = vmatpush.bf16.msra.mxu0 0
    %1008 = vmatpush.bf16.msra.mxu0 0
    %1009 = vmatpush.bf16.msra.mxu0 0
    %1010 = vmatpush.bf16.msra.mxu0 0
    %1011 = vmatpush.bf16.msra.mxu0 0
    %1012 = vmatpush.bf16.msra.mxu0 0
    %1013 = vmatpush.bf16.msra.mxu0 %v280
    %1014 = vmatmul.bf16.gmra.mxu0 %v1004
    %v1015 = vpop.f32.mrf.mxu0
    %v1016 = vadd.f32 0.0, %v1015
    %v1017 = vpop.f32.mrf.mxu0
    %1018 = vdwg.mxu0
    %v1019 = vadd.f32 %v998, %v1016
    %v1020 = vxor.u32 %v1019, 2147483648
    %v1021 = vmul.f32 %v1020, 1.442695
    %v1022 = vpow.pop %v1021
    %v1023 = vadd.f32 %v1022, 1.0
    %v1024 = vrcp.pop %v1023
    %v1025 = vmul.f32 %v1023, %v1024
    %v1026 = vsub.f32 1.0, %v1025
    %v1027 = vmul.f32 %v1024, %v1026
    %v1028 = vadd.f32 %v1024, %v1027
    %vm1029 = vweird.f32 %v1023
    %vm1030 = vweird.f32 %v1024
    %vm1031 = vmor %vm1029, %vm1030
    %v1032 = vsel %vm1031, %v1024, %v1028
    %v1033 = vand.u32 2147483647, %v1023
    %vm1034 = vcmp.eq.f32.partialorder %v1033, 8.507059e+37
    %v1035 = vand.u32 %v1023, 2147483648
    %v1036 = vor.u32 1.1754944e-38, %v1035
    %v1037 = vsel %vm1034, %v1036, %v1032
    %v1038 = vmul.f32 1.0, %v1037
    %v1039 = vtanh.pop %v1019
    %v1040 = vmul.f32 %v1038, %v922
    %1042 = vrot.lane.b32.xlu0 %v1039, 112
    %v1043 = vpop.permute.xlu0 %1042
    %v1045 = vmul.f32 %v1038, %v1043
    %1047 = vrot.lane.b32.xlu0 %v1045, 8
    %v1048 = vpop.permute.xlu0 %1047
    %v1050 = vadd.f32 %v1040, %v1048
    %v1051 = vtanh.pop %v1050
    %1053 = vrot.lane.b32.xlu0 %v1051, 16
    %v1054 = vpop.permute.xlu0 %1053
    %v1056 = vmul.f32 %v1038, %v1054
    %v1057 = vsel %vm704, %v1056, %v921
    %v1058 = vsel %vm704, %v1050, %v922
    %v1059 = vsel %vm704, %v1056, 0.0
    %v1060 = vpack.c.bf16 %v1059, %v1059
    %1062 = vrot.lane.b32.xlu0 %v1060, 104
    %v1063 = vpop.permute.xlu0 %1062
    %1065 = vst.msk [vmem:[#allocation3 + $0x14] sm:$0xf] %vm346, %v1063
    %v1066 = vld [vmem:[%s262 + $0x10] sm:$0xff]
    %v1067 = vpack.c.bf16 %v989, %v989
    %1069 = vrot.lane.b32.xlu0 %v1067, 104
    %v1070 = vpop.permute.xlu0 %1069
    %v1072 = vsel %vm168, %v1070, 0
    %1074 = vmatpush.bf16.msra.mxu0 0
    %1075 = vmatpush.bf16.msra.mxu0 0
    %1076 = vmatpush.bf16.msra.mxu0 0
    %1077 = vmatpush.bf16.msra.mxu0 0
    %1078 = vmatpush.bf16.msra.mxu0 0
    %1079 = vmatpush.bf16.msra.mxu0 0
    %1080 = vmatpush.bf16.msra.mxu0 0
    %1081 = vmatpush.bf16.msra.mxu0 %v350
    %1082 = vmatmul.bf16.gmra.mxu0 %v1072
    %v1083 = vpop.f32.mrf.mxu0
    %v1084 = vadd.f32 0.0, %v1083
    %v1085 = vpop.f32.mrf.mxu0
    %1086 = vdwg.mxu0
    %v1087 = vadd.f32 %v1066, %v1084
    %v1088 = vxor.u32 %v1087, 2147483648
    %v1089 = vmul.f32 %v1088, 1.442695
    %v1090 = vpow.pop %v1089
    %v1091 = vadd.f32 %v1090, 1.0
    %v1092 = vrcp.pop %v1091
    %v1093 = vmul.f32 %v1091, %v1092
    %v1094 = vsub.f32 1.0, %v1093
    %v1095 = vmul.f32 %v1092, %v1094
    %v1096 = vadd.f32 %v1092, %v1095
    %vm1097 = vweird.f32 %v1091
    %vm1098 = vweird.f32 %v1092
    %vm1099 = vmor %vm1097, %vm1098
    %v1100 = vsel %vm1099, %v1092, %v1096
    %v1101 = vand.u32 2147483647, %v1091
    %vm1102 = vcmp.eq.f32.partialorder %v1101, 8.507059e+37
    %v1103 = vand.u32 %v1091, 2147483648
    %v1104 = vor.u32 1.1754944e-38, %v1103
    %v1105 = vsel %vm1102, %v1104, %v1100
    %v1106 = vmul.f32 1.0, %v1105
    %v1107 = vtanh.pop %v1087
    %v1108 = vmul.f32 %v1106, %v990
    %1110 = vrot.lane.b32.xlu0 %v1107, 112
    %v1111 = vpop.permute.xlu0 %1110
    %v1113 = vmul.f32 %v1106, %v1111
    %1115 = vrot.lane.b32.xlu0 %v1113, 8
    %v1116 = vpop.permute.xlu0 %1115
    %v1118 = vadd.f32 %v1108, %v1116
    %v1119 = vtanh.pop %v1118
    %1121 = vrot.lane.b32.xlu0 %v1119, 16
    %v1122 = vpop.permute.xlu0 %1121
    %v1124 = vmul.f32 %v1106, %v1122
    %v1125 = vsel %vm630, %v1124, %v989
    %v1126 = vsel %vm630, %v1118, %v990
    %v1127 = vsel %vm630, %v1124, 0.0
    %v1128 = vpack.c.bf16 %v1127, %v1127
    %1130 = vrot.lane.b32.xlu0 %v1128, 112
    %v1131 = vpop.permute.xlu0 %1130
    %1133 = vst.msk [vmem:[#allocation3 + $0x8] sm:$0xf] %vm416, %v1131
    %v1134 = vld [vmem:[#allocation2 + $0x30] sm:$0xff]
    %v1135 = vpack.c.bf16 %v1057, %v1057
    %1137 = vrot.lane.b32.xlu0 %v1135, 104
    %v1138 = vpop.permute.xlu0 %1137
    %v1140 = vsel %vm168, %v1138, 0
    %1142 = vmatpush.bf16.msra.mxu0 0
    %1143 = vmatpush.bf16.msra.mxu0 0
    %1144 = vmatpush.bf16.msra.mxu0 0
    %1145 = vmatpush.bf16.msra.mxu0 0
    %1146 = vmatpush.bf16.msra.mxu0 0
    %1147 = vmatpush.bf16.msra.mxu0 0
    %1148 = vmatpush.bf16.msra.mxu0 0
    %1149 = vmatpush.bf16.msra.mxu0 %v280
    %1150 = vmatmul.bf16.gmra.mxu0 %v1140
    %v1151 = vpop.f32.mrf.mxu0
    %v1152 = vadd.f32 0.0, %v1151
    %v1153 = vpop.f32.mrf.mxu0
    %1154 = vdwg.mxu0
    %v1155 = vadd.f32 %v1134, %v1152
    %v1156 = vxor.u32 %v1155, 2147483648
    %v1157 = vmul.f32 %v1156, 1.442695
    %v1158 = vpow.pop %v1157
    %v1159 = vadd.f32 %v1158, 1.0
    %v1160 = vrcp.pop %v1159
    %v1161 = vmul.f32 %v1159, %v1160
    %v1162 = vsub.f32 1.0, %v1161
    %v1163 = vmul.f32 %v1160, %v1162
    %v1164 = vadd.f32 %v1160, %v1163
    %vm1165 = vweird.f32 %v1159
    %vm1166 = vweird.f32 %v1160
    %vm1167 = vmor %vm1165, %vm1166
    %v1168 = vsel %vm1167, %v1160, %v1164
    %v1169 = vand.u32 2147483647, %v1159
    %vm1170 = vcmp.eq.f32.partialorder %v1169, 8.507059e+37
    %v1171 = vand.u32 %v1159, 2147483648
    %v1172 = vor.u32 1.1754944e-38, %v1171
    %v1173 = vsel %vm1170, %v1172, %v1168
    %v1174 = vmul.f32 1.0, %v1173
    %v1175 = vtanh.pop %v1155
    %v1176 = vmul.f32 %v1174, %v1058
    %1178 = vrot.lane.b32.xlu0 %v1175, 112
    %v1179 = vpop.permute.xlu0 %1178
    %v1181 = vmul.f32 %v1174, %v1179
    %1183 = vrot.lane.b32.xlu0 %v1181, 8
    %v1184 = vpop.permute.xlu0 %1183
    %v1186 = vadd.f32 %v1176, %v1184
    %v1187 = vtanh.pop %v1186
    %1189 = vrot.lane.b32.xlu0 %v1187, 16
    %v1190 = vpop.permute.xlu0 %1189
    %v1192 = vmul.f32 %v1174, %v1190
    %v1193 = vsel %vm556, %v1192, %v1057
    %v1194 = vsel %vm556, %v1186, %v1058
    %v1195 = vsel %vm556, %v1192, 0.0
    %v1196 = vpack.c.bf16 %v1195, %v1195
    %1198 = vrot.lane.b32.xlu0 %v1196, 104
    %v1199 = vpop.permute.xlu0 %1198
    %1201 = vst.msk [vmem:[#allocation3 + $0x18] sm:$0xf] %vm346, %v1199
    %v1202 = vld [vmem:[%s262 + $0x8] sm:$0xff]
    %v1203 = vpack.c.bf16 %v1125, %v1125
    %1205 = vrot.lane.b32.xlu0 %v1203, 104
    %v1206 = vpop.permute.xlu0 %1205
    %v1208 = vsel %vm168, %v1206, 0
    %1210 = vmatpush.bf16.msra.mxu0 0
    %1211 = vmatpush.bf16.msra.mxu0 0
    %1212 = vmatpush.bf16.msra.mxu0 0
    %1213 = vmatpush.bf16.msra.mxu0 0
    %1214 = vmatpush.bf16.msra.mxu0 0
    %1215 = vmatpush.bf16.msra.mxu0 0
    %1216 = vmatpush.bf16.msra.mxu0 0
    %1217 = vmatpush.bf16.msra.mxu0 %v350
    %1218 = vmatmul.bf16.gmra.mxu0 %v1208
    %v1219 = vpop.f32.mrf.mxu0
    %v1220 = vadd.f32 0.0, %v1219
    %v1221 = vpop.f32.mrf.mxu0
    %1222 = vdwg.mxu0
    %v1223 = vadd.f32 %v1202, %v1220
    %v1224 = vxor.u32 %v1223, 2147483648
    %v1225 = vmul.f32 %v1224, 1.442695
    %v1226 = vpow.pop %v1225
    %v1227 = vadd.f32 %v1226, 1.0
    %v1228 = vrcp.pop %v1227
    %v1229 = vmul.f32 %v1227, %v1228
    %v1230 = vsub.f32 1.0, %v1229
    %v1231 = vmul.f32 %v1228, %v1230
    %v1232 = vadd.f32 %v1228, %v1231
    %vm1233 = vweird.f32 %v1227
    %vm1234 = vweird.f32 %v1228
    %vm1235 = vmor %vm1233, %vm1234
    %v1236 = vsel %vm1235, %v1228, %v1232
    %v1237 = vand.u32 2147483647, %v1227
    %vm1238 = vcmp.eq.f32.partialorder %v1237, 8.507059e+37
    %v1239 = vand.u32 %v1227, 2147483648
    %v1240 = vor.u32 1.1754944e-38, %v1239
    %v1241 = vsel %vm1238, %v1240, %v1236
    %v1242 = vmul.f32 1.0, %v1241
    %v1243 = vtanh.pop %v1223
    %v1244 = vmul.f32 %v1242, %v1126
    %1246 = vrot.lane.b32.xlu0 %v1243, 112
    %v1247 = vpop.permute.xlu0 %1246
    %v1249 = vmul.f32 %v1242, %v1247
    %1251 = vrot.lane.b32.xlu0 %v1249, 8
    %v1252 = vpop.permute.xlu0 %1251
    %v1254 = vadd.f32 %v1244, %v1252
    %v1255 = vtanh.pop %v1254
    %1257 = vrot.lane.b32.xlu0 %v1255, 16
    %v1258 = vpop.permute.xlu0 %1257
    %v1260 = vmul.f32 %v1242, %v1258
    %v1261 = vsel %vm482, %v1260, %v1125
    %v1262 = vsel %vm482, %v1254, %v1126
    %v1263 = vsel %vm482, %v1260, 0.0
    %v1264 = vpack.c.bf16 %v1263, %v1263
    %1266 = vrot.lane.b32.xlu0 %v1264, 112
    %v1267 = vpop.permute.xlu0 %1266
    %1269 = vst.msk [vmem:[#allocation3 + $0x4] sm:$0xf] %vm416, %v1267
    %v1270 = vld [vmem:[#allocation2 + $0x38] sm:$0xff]
    %v1271 = vpack.c.bf16 %v1193, %v1193
    %1273 = vrot.lane.b32.xlu0 %v1271, 104
    %v1274 = vpop.permute.xlu0 %1273
    %v1276 = vsel %vm168, %v1274, 0
    %1278 = vmatpush.bf16.msra.mxu0 0
    %1279 = vmatpush.bf16.msra.mxu0 0
    %1280 = vmatpush.bf16.msra.mxu0 0
    %1281 = vmatpush.bf16.msra.mxu0 0
    %1282 = vmatpush.bf16.msra.mxu0 0
    %1283 = vmatpush.bf16.msra.mxu0 0
    %1284 = vmatpush.bf16.msra.mxu0 0
    %1285 = vmatpush.bf16.msra.mxu0 %v280
    %1286 = vmatmul.bf16.gmra.mxu0 %v1276
    %v1287 = vpop.f32.mrf.mxu0
    %v1288 = vadd.f32 0.0, %v1287
    %v1289 = vpop.f32.mrf.mxu0
    %1290 = vdwg.mxu0
    %v1291 = vadd.f32 %v1270, %v1288
    %v1292 = vxor.u32 %v1291, 2147483648
    %v1293 = vmul.f32 %v1292, 1.442695
    %v1294 = vpow.pop %v1293
    %v1295 = vadd.f32 %v1294, 1.0
    %v1296 = vrcp.pop %v1295
    %v1297 = vmul.f32 %v1295, %v1296
    %v1298 = vsub.f32 1.0, %v1297
    %v1299 = vmul.f32 %v1296, %v1298
    %v1300 = vadd.f32 %v1296, %v1299
    %vm1301 = vweird.f32 %v1295
    %vm1302 = vweird.f32 %v1296
    %vm1303 = vmor %vm1301, %vm1302
    %v1304 = vsel %vm1303, %v1296, %v1300
    %v1305 = vand.u32 2147483647, %v1295
    %vm1306 = vcmp.eq.f32.partialorder %v1305, 8.507059e+37
    %v1307 = vand.u32 %v1295, 2147483648
    %v1308 = vor.u32 1.1754944e-38, %v1307
    %v1309 = vsel %vm1306, %v1308, %v1304
    %v1310 = vmul.f32 1.0, %v1309
    %v1311 = vtanh.pop %v1291
    %v1312 = vmul.f32 %v1310, %v1194
    %1314 = vrot.lane.b32.xlu0 %v1311, 112
    %v1315 = vpop.permute.xlu0 %1314
    %v1317 = vmul.f32 %v1310, %v1315
    %1319 = vrot.lane.b32.xlu0 %v1317, 8
    %v1320 = vpop.permute.xlu0 %1319
    %v1322 = vadd.f32 %v1312, %v1320
    %v1323 = vtanh.pop %v1322
    %1325 = vrot.lane.b32.xlu0 %v1323, 16
    %v1326 = vpop.permute.xlu0 %1325
    %v1328 = vmul.f32 %v1310, %v1326
    %v1329 = vsel %vm408, %v1328, 0.0
    %v1330 = vpack.c.bf16 %v1329, %v1329
    %1332 = vrot.lane.b32.xlu0 %v1330, 104
    %v1333 = vpop.permute.xlu0 %1332
    %1335 = vst.msk [vmem:[#allocation3 + $0x1c] sm:$0xf] %vm346, %v1333
    %v1336 = vld [vmem:[%s262] sm:$0xff]
    %v1337 = vpack.c.bf16 %v1261, %v1261
    %1339 = vrot.lane.b32.xlu0 %v1337, 104
    %v1340 = vpop.permute.xlu0 %1339
    %v1342 = vsel %vm168, %v1340, 0
    %1344 = vmatpush.bf16.msra.mxu0 0
    %1345 = vmatpush.bf16.msra.mxu0 0
    %1346 = vmatpush.bf16.msra.mxu0 0
    %1347 = vmatpush.bf16.msra.mxu0 0
    %1348 = vmatpush.bf16.msra.mxu0 0
    %1349 = vmatpush.bf16.msra.mxu0 0
    %1350 = vmatpush.bf16.msra.mxu0 0
    %1351 = vmatpush.bf16.msra.mxu0 %v350
    %1352 = vmatmul.bf16.gmra.mxu0 %v1342
    %v1353 = vpop.f32.mrf.mxu0
    %v1354 = vadd.f32 0.0, %v1353
    %v1355 = vpop.f32.mrf.mxu0
    %1356 = vdwg.mxu0
    %v1357 = vadd.f32 %v1336, %v1354
    %v1358 = vxor.u32 %v1357, 2147483648
    %v1359 = vmul.f32 %v1358, 1.442695
    %v1360 = vpow.pop %v1359
    %v1361 = vadd.f32 %v1360, 1.0
    %v1362 = vrcp.pop %v1361
    %v1363 = vmul.f32 %v1361, %v1362
    %v1364 = vsub.f32 1.0, %v1363
    %v1365 = vmul.f32 %v1362, %v1364
    %v1366 = vadd.f32 %v1362, %v1365
    %vm1367 = vweird.f32 %v1361
    %vm1368 = vweird.f32 %v1362
    %vm1369 = vmor %vm1367, %vm1368
    %v1370 = vsel %vm1369, %v1362, %v1366
    %v1371 = vand.u32 2147483647, %v1361
    %vm1372 = vcmp.eq.f32.partialorder %v1371, 8.507059e+37
    %v1373 = vand.u32 %v1361, 2147483648
    %v1374 = vor.u32 1.1754944e-38, %v1373
    %v1375 = vsel %vm1372, %v1374, %v1370
    %v1376 = vmul.f32 1.0, %v1375
    %v1377 = vtanh.pop %v1357
    %v1378 = vmul.f32 %v1376, %v1262
    %1380 = vrot.lane.b32.xlu0 %v1377, 112
    %v1381 = vpop.permute.xlu0 %1380
    %v1383 = vmul.f32 %v1376, %v1381
    %1385 = vrot.lane.b32.xlu0 %v1383, 8
    %v1386 = vpop.permute.xlu0 %1385
    %v1388 = vadd.f32 %v1378, %v1386
    %v1389 = vtanh.pop %v1388
    %1391 = vrot.lane.b32.xlu0 %v1389, 16
    %v1392 = vpop.permute.xlu0 %1391
    %v1394 = vmul.f32 %v1376, %v1392
    %v1395 = vsel %vm338, %v1394, 0.0
    %v1396 = vpack.c.bf16 %v1395, %v1395
    %1398 = vrot.lane.b32.xlu0 %v1396, 112
    %v1399 = vpop.permute.xlu0 %1398
    %1401 = vst.msk [vmem:[#allocation3] sm:$0xf] %vm416, %v1399
    %v1402 = vld [vmem:[%s7] sm:$0x1]
    %v1403 = vld [vmem:[#allocation3] sm:$0xf]
    %v1404 = vld [vmem:[#allocation3 + $0x4] sm:$0xf]
    %v1405 = vld [vmem:[#allocation3 + $0x8] sm:$0xf]
    %v1406 = vld [vmem:[#allocation3 + $0xc] sm:$0xf]
    %v1407 = vld [vmem:[#allocation3 + $0x10] sm:$0xf]
    %v1408 = vld [vmem:[#allocation3 + $0x14] sm:$0xf]
    %v1409 = vld [vmem:[#allocation3 + $0x18] sm:$0xf]
    %v1410 = vld [vmem:[#allocation3 + $0x1c] sm:$0xf]
    %v1411 = vld [vmem:[%s6] sm:$0xf]
    %v1412 = vld [vmem:[%s6 + $0x4] sm:$0xf]
    %v1421 = vunpack.c.l.b16 %v1403
    %v1422 = vunpack.c.l.b16 %v1404
    %v1423 = vunpack.c.l.b16 %v1405
    %v1424 = vunpack.c.l.b16 %v1406
    %v1425 = vunpack.c.l.b16 %v1407
    %v1426 = vunpack.c.l.b16 %v1408
    %v1427 = vunpack.c.l.b16 %v1409
    %v1428 = vunpack.c.l.b16 %v1410
    %v1429 = vpack.c.b16 %v1422, %v1421
    %v1430 = vpack.c.b16 %v1424, %v1423
    %v1431 = vpack.c.b16 %v1426, %v1425
    %v1432 = vpack.c.b16 %v1428, %v1427
    %v1435 = vunpack.c.l.b16 %v1411
    %v1436 = vunpack.c.l.b16 %v1412
    %v1437 = vpack.c.b16 %v1436, %v1435
    %vm1439 = vcmask 130048
    %v1441 = vsel %vm1439, %v1429, 0
    %v1444 = vsel %vm1439, %v1430, 0
    %v1447 = vsel %vm1439, %v1431, 0
    %v1450 = vsel %vm1439, %v1432, 0
    %1452 = vmatpush.bf16.msra.mxu0 0
    %1453 = vmatpush.bf16.msra.mxu0 0
    %1454 = vmatpush.bf16.msra.mxu0 0
    %1455 = vmatpush.bf16.msra.mxu0 0
    %1456 = vmatpush.bf16.msra.mxu0 0
    %1457 = vmatpush.bf16.msra.mxu0 0
    %1458 = vmatpush.bf16.msra.mxu0 0
    %1459 = vmatpush.bf16.msra.mxu0 %v1437
    %1460 = vmatmul.bf16.gmra.mxu0 %v1441
    %v1461 = vpop.f32.mrf.mxu0
    %v1462 = vadd.f32 0.0, %v1461
    %v1463 = vpop.f32.mrf.mxu0
    %v1464 = vadd.f32 0.0, %v1463
    %1465 = vmatmul.bf16.gmra.mxu0 %v1444
    %v1466 = vpop.f32.mrf.mxu0
    %v1467 = vadd.f32 0.0, %v1466
    %v1468 = vpop.f32.mrf.mxu0
    %v1469 = vadd.f32 0.0, %v1468
    %1470 = vmatmul.bf16.gmra.mxu0 %v1447
    %v1471 = vpop.f32.mrf.mxu0
    %v1472 = vadd.f32 0.0, %v1471
    %v1473 = vpop.f32.mrf.mxu0
    %v1474 = vadd.f32 0.0, %v1473
    %1475 = vmatmul.bf16.gmra.mxu0 %v1450
    %v1476 = vpop.f32.mrf.mxu0
    %v1477 = vadd.f32 0.0, %v1476
    %v1478 = vpop.f32.mrf.mxu0
    %v1479 = vadd.f32 0.0, %v1478
    %1480 = vdwg.mxu0
    %v1482 = vperm.slane %v1402, 0
    %v1484 = vadd.f32 %v1482, %v1462
    %v1485 = vadd.f32 %v1482, %v1464
    %v1486 = vadd.f32 %v1482, %v1467
    %v1487 = vadd.f32 %v1482, %v1469
    %v1488 = vadd.f32 %v1482, %v1472
    %v1489 = vadd.f32 %v1482, %v1474
    %v1490 = vadd.f32 %v1482, %v1477
    %v1491 = vadd.f32 %v1482, %v1479
    %vm1492 = vcmp.eq.s32.totalorder %v40, 4
    %v1493 = vsel %vm1492, 0.0, -10000.0
    %v1494 = vld [vmem:[%s8] sm:$0x3f]
    %1496 = vset.pattern.permute.xlu0 0
    %1497 = vperm.xlu0 %1496, %v1493
    %v1498 = vpop.permute.xlu0 %1497
    %v1500 = vadd.f32 %v1484, %v1498
    %v1501 = vperm.slane %v1494, 0
    %v1502 = vadd.f32 %v1500, %v1501
    %1503 = vset.pattern.permute.xlu0 1
    %1504 = vperm.xlu0 %1503, %v1493
    %v1505 = vpop.permute.xlu0 %1504
    %v1507 = vadd.f32 %v1484, %v1505
    %v1508 = vperm.slane %v1494, 1
    %v1509 = vadd.f32 %v1507, %v1508
    %vm1510 = vcmp.gt.f32.partialorder %v1509, %v1502
    %v1511 = vsel %vm1510, 1, 0
    %v1512 = vsel %vm1510, %v1509, %v1502
    %1513 = vset.pattern.permute.xlu0 2
    %1514 = vperm.xlu0 %1513, %v1493
    %v1515 = vpop.permute.xlu0 %1514
    %v1517 = vadd.f32 %v1484, %v1515
    %v1518 = vperm.slane %v1494, 2
    %v1519 = vadd.f32 %v1517, %v1518
    %vm1520 = vcmp.gt.f32.partialorder %v1519, %v1512
    %v1521 = vsel %vm1520, 2, %v1511
    %v1522 = vsel %vm1520, %v1519, %v1512
    %1523 = vset.pattern.permute.xlu0 3
    %1524 = vperm.xlu0 %1523, %v1493
    %v1525 = vpop.permute.xlu0 %1524
    %v1527 = vadd.f32 %v1484, %v1525
    %v1528 = vperm.slane %v1494, 3
    %v1529 = vadd.f32 %v1527, %v1528
    %vm1530 = vcmp.gt.f32.partialorder %v1529, %v1522
    %v1531 = vsel %vm1530, 3, %v1521
    %v1532 = vsel %vm1530, %v1529, %v1522
    %1533 = vset.pattern.permute.xlu0 4
    %1534 = vperm.xlu0 %1533, %v1493
    %v1535 = vpop.permute.xlu0 %1534
    %v1537 = vadd.f32 %v1484, %v1535
    %v1538 = vperm.slane %v1494, 4
    %v1539 = vadd.f32 %v1537, %v1538
    %vm1540 = vcmp.gt.f32.partialorder %v1539, %v1532
    %v1541 = vsel %vm1540, 4, %v1531
    %v1542 = vsel %vm1540, %v1539, %v1532
    %1543 = vset.pattern.permute.xlu0 5
    %1544 = vperm.xlu0 %1543, %v1493
    %v1545 = vpop.permute.xlu0 %1544
    %v1547 = vadd.f32 %v1484, %v1545
    %v1548 = vperm.slane %v1494, 5
    %v1549 = vadd.f32 %v1547, %v1548
    %vm1550 = vcmp.gt.f32.partialorder %v1549, %v1542
    %v1551 = vsel %vm1550, 5, %v1541
    %v1552 = vsel %vm1550, %v1549, %v1542
    %vm1553 = vcmask 48128
    %1554 = vst.msk [vmem:[#allocation4] sm:$0xff] %vm1553, %v1551
    %v1555 = vsel %vm338, %v1552, %v1493
    %1557 = vset.pattern.permute.xlu0 0
    %1558 = vperm.xlu0 %1557, %v1555
    %v1559 = vpop.permute.xlu0 %1558
    %v1561 = vadd.f32 %v1485, %v1559
    %v1562 = vadd.f32 %v1561, %v1501
    %1563 = vset.pattern.permute.xlu0 1
    %1564 = vperm.xlu0 %1563, %v1555
    %v1565 = vpop.permute.xlu0 %1564
    %v1567 = vadd.f32 %v1485, %v1565
    %v1568 = vadd.f32 %v1567, %v1508
    %vm1569 = vcmp.gt.f32.partialorder %v1568, %v1562
    %v1570 = vsel %vm1569, 1, 0
    %v1571 = vsel %vm1569, %v1568, %v1562
    %1572 = vset.pattern.permute.xlu0 2
    %1573 = vperm.xlu0 %1572, %v1555
    %v1574 = vpop.permute.xlu0 %1573
    %v1576 = vadd.f32 %v1485, %v1574
    %v1577 = vadd.f32 %v1576, %v1518
    %vm1578 = vcmp.gt.f32.partialorder %v1577, %v1571
    %v1579 = vsel %vm1578, 2, %v1570
    %v1580 = vsel %vm1578, %v1577, %v1571
    %1581 = vset.pattern.permute.xlu0 3
    %1582 = vperm.xlu0 %1581, %v1555
    %v1583 = vpop.permute.xlu0 %1582
    %v1585 = vadd.f32 %v1485, %v1583
    %v1586 = vadd.f32 %v1585, %v1528
    %vm1587 = vcmp.gt.f32.partialorder %v1586, %v1580
    %v1588 = vsel %vm1587, 3, %v1579
    %v1589 = vsel %vm1587, %v1586, %v1580
    %1590 = vset.pattern.permute.xlu0 4
    %1591 = vperm.xlu0 %1590, %v1555
    %v1592 = vpop.permute.xlu0 %1591
    %v1594 = vadd.f32 %v1485, %v1592
    %v1595 = vadd.f32 %v1594, %v1538
    %vm1596 = vcmp.gt.f32.partialorder %v1595, %v1589
    %v1597 = vsel %vm1596, 4, %v1588
    %v1598 = vsel %vm1596, %v1595, %v1589
    %1599 = vset.pattern.permute.xlu0 5
    %1600 = vperm.xlu0 %1599, %v1555
    %v1601 = vpop.permute.xlu0 %1600
    %v1603 = vadd.f32 %v1485, %v1601
    %v1604 = vadd.f32 %v1603, %v1548
    %vm1605 = vcmp.gt.f32.partialorder %v1604, %v1598
    %v1606 = vsel %vm1605, 5, %v1597
    %v1607 = vsel %vm1605, %v1604, %v1598
    %s1608 = scalar_lea.vmem [#allocation4], 8
    %1609 = vst.msk [vmem:[%s1608] sm:$0xff] %vm1553, %v1606
    %v1610 = vsel %vm482, %v1607, %v1555
    %1612 = vset.pattern.permute.xlu0 0
    %1613 = vperm.xlu0 %1612, %v1610
    %v1614 = vpop.permute.xlu0 %1613
    %v1616 = vadd.f32 %v1486, %v1614
    %v1617 = vadd.f32 %v1616, %v1501
    %1618 = vset.pattern.permute.xlu0 1
    %1619 = vperm.xlu0 %1618, %v1610
    %v1620 = vpop.permute.xlu0 %1619
    %v1622 = vadd.f32 %v1486, %v1620
    %v1623 = vadd.f32 %v1622, %v1508
    %vm1624 = vcmp.gt.f32.partialorder %v1623, %v1617
    %v1625 = vsel %vm1624, 1, 0
    %v1626 = vsel %vm1624, %v1623, %v1617
    %1627 = vset.pattern.permute.xlu0 2
    %1628 = vperm.xlu0 %1627, %v1610
    %v1629 = vpop.permute.xlu0 %1628
    %v1631 = vadd.f32 %v1486, %v1629
    %v1632 = vadd.f32 %v1631, %v1518
    %vm1633 = vcmp.gt.f32.partialorder %v1632, %v1626
    %v1634 = vsel %vm1633, 2, %v1625
    %v1635 = vsel %vm1633, %v1632, %v1626
    %1636 = vset.pattern.permute.xlu0 3
    %1637 = vperm.xlu0 %1636, %v1610
    %v1638 = vpop.permute.xlu0 %1637
    %v1640 = vadd.f32 %v1486, %v1638
    %v1641 = vadd.f32 %v1640, %v1528
    %vm1642 = vcmp.gt.f32.partialorder %v1641, %v1635
    %v1643 = vsel %vm1642, 3, %v1634
    %v1644 = vsel %vm1642, %v1641, %v1635
    %1645 = vset.pattern.permute.xlu0 4
    %1646 = vperm.xlu0 %1645, %v1610
    %v1647 = vpop.permute.xlu0 %1646
    %v1649 = vadd.f32 %v1486, %v1647
    %v1650 = vadd.f32 %v1649, %v1538
    %vm1651 = vcmp.gt.f32.partialorder %v1650, %v1644
    %v1652 = vsel %vm1651, 4, %v1643
    %v1653 = vsel %vm1651, %v1650, %v1644
    %1654 = vset.pattern.permute.xlu0 5
    %1655 = vperm.xlu0 %1654, %v1610
    %v1656 = vpop.permute.xlu0 %1655
    %v1658 = vadd.f32 %v1486, %v1656
    %v1659 = vadd.f32 %v1658, %v1548
    %vm1660 = vcmp.gt.f32.partialorder %v1659, %v1653
    %v1661 = vsel %vm1660, 5, %v1652
    %v1662 = vsel %vm1660, %v1659, %v1653
    %s1663 = scalar_lea.vmem [#allocation4], 16
    %1664 = vst.msk [vmem:[%s1663] sm:$0xff] %vm1553, %v1661
    %v1665 = vsel %vm630, %v1662, %v1610
    %1667 = vset.pattern.permute.xlu0 0
    %1668 = vperm.xlu0 %1667, %v1665
    %v1669 = vpop.permute.xlu0 %1668
    %v1671 = vadd.f32 %v1487, %v1669
    %v1672 = vadd.f32 %v1671, %v1501
    %1673 = vset.pattern.permute.xlu0 1
    %1674 = vperm.xlu0 %1673, %v1665
    %v1675 = vpop.permute.xlu0 %1674
    %v1677 = vadd.f32 %v1487, %v1675
    %v1678 = vadd.f32 %v1677, %v1508
    %vm1679 = vcmp.gt.f32.partialorder %v1678, %v1672
    %v1680 = vsel %vm1679, 1, 0
    %v1681 = vsel %vm1679, %v1678, %v1672
    %1682 = vset.pattern.permute.xlu0 2
    %1683 = vperm.xlu0 %1682, %v1665
    %v1684 = vpop.permute.xlu0 %1683
    %v1686 = vadd.f32 %v1487, %v1684
    %v1687 = vadd.f32 %v1686, %v1518
    %vm1688 = vcmp.gt.f32.partialorder %v1687, %v1681
    %v1689 = vsel %vm1688, 2, %v1680
    %v1690 = vsel %vm1688, %v1687, %v1681
    %1691 = vset.pattern.permute.xlu0 3
    %1692 = vperm.xlu0 %1691, %v1665
    %v1693 = vpop.permute.xlu0 %1692
    %v1695 = vadd.f32 %v1487, %v1693
    %v1696 = vadd.f32 %v1695, %v1528
    %vm1697 = vcmp.gt.f32.partialorder %v1696, %v1690
    %v1698 = vsel %vm1697, 3, %v1689
    %v1699 = vsel %vm1697, %v1696, %v1690
    %1700 = vset.pattern.permute.xlu0 4
    %1701 = vperm.xlu0 %1700, %v1665
    %v1702 = vpop.permute.xlu0 %1701
    %v1704 = vadd.f32 %v1487, %v1702
    %v1705 = vadd.f32 %v1704, %v1538
    %vm1706 = vcmp.gt.f32.partialorder %v1705, %v1699
    %v1707 = vsel %vm1706, 4, %v1698
    %v1708 = vsel %vm1706, %v1705, %v1699
    %1709 = vset.pattern.permute.xlu0 5
    %1710 = vperm.xlu0 %1709, %v1665
    %v1711 = vpop.permute.xlu0 %1710
    %v1713 = vadd.f32 %v1487, %v1711
    %v1714 = vadd.f32 %v1713, %v1548
    %vm1715 = vcmp.gt.f32.partialorder %v1714, %v1708
    %v1716 = vsel %vm1715, 5, %v1707
    %v1717 = vsel %vm1715, %v1714, %v1708
    %s1718 = scalar_lea.vmem [#allocation4], 24
    %1719 = vst.msk [vmem:[%s1718] sm:$0xff] %vm1553, %v1716
    %v1720 = vsel %vm778, %v1717, %v1665
    %1722 = vset.pattern.permute.xlu0 0
    %1723 = vperm.xlu0 %1722, %v1720
    %v1724 = vpop.permute.xlu0 %1723
    %v1726 = vadd.f32 %v1488, %v1724
    %v1727 = vadd.f32 %v1726, %v1501
    %1728 = vset.pattern.permute.xlu0 1
    %1729 = vperm.xlu0 %1728, %v1720
    %v1730 = vpop.permute.xlu0 %1729
    %v1732 = vadd.f32 %v1488, %v1730
    %v1733 = vadd.f32 %v1732, %v1508
    %vm1734 = vcmp.gt.f32.partialorder %v1733, %v1727
    %v1735 = vsel %vm1734, 1, 0
    %v1736 = vsel %vm1734, %v1733, %v1727
    %1737 = vset.pattern.permute.xlu0 2
    %1738 = vperm.xlu0 %1737, %v1720
    %v1739 = vpop.permute.xlu0 %1738
    %v1741 = vadd.f32 %v1488, %v1739
    %v1742 = vadd.f32 %v1741, %v1518
    %vm1743 = vcmp.gt.f32.partialorder %v1742, %v1736
    %v1744 = vsel %vm1743, 2, %v1735
    %v1745 = vsel %vm1743, %v1742, %v1736
    %1746 = vset.pattern.permute.xlu0 3
    %1747 = vperm.xlu0 %1746, %v1720
    %v1748 = vpop.permute.xlu0 %1747
    %v1750 = vadd.f32 %v1488, %v1748
    %v1751 = vadd.f32 %v1750, %v1528
    %vm1752 = vcmp.gt.f32.partialorder %v1751, %v1745
    %v1753 = vsel %vm1752, 3, %v1744
    %v1754 = vsel %vm1752, %v1751, %v1745
    %1755 = vset.pattern.permute.xlu0 4
    %1756 = vperm.xlu0 %1755, %v1720
    %v1757 = vpop.permute.xlu0 %1756
    %v1759 = vadd.f32 %v1488, %v1757
    %v1760 = vadd.f32 %v1759, %v1538
    %vm1761 = vcmp.gt.f32.partialorder %v1760, %v1754
    %v1762 = vsel %vm1761, 4, %v1753
    %v1763 = vsel %vm1761, %v1760, %v1754
    %1764 = vset.pattern.permute.xlu0 5
    %1765 = vperm.xlu0 %1764, %v1720
    %v1766 = vpop.permute.xlu0 %1765
    %v1768 = vadd.f32 %v1488, %v1766
    %v1769 = vadd.f32 %v1768, %v1548
    %vm1770 = vcmp.gt.f32.partialorder %v1769, %v1763
    %v1771 = vsel %vm1770, 5, %v1762
    %v1772 = vsel %vm1770, %v1769, %v1763
    %s1773 = scalar_lea.vmem [#allocation4], 32
    %1774 = vst.msk [vmem:[%s1773] sm:$0xff] %vm1553, %v1771
    %v1775 = vsel %vm852, %v1772, %v1720
    %1777 = vset.pattern.permute.xlu0 0
    %1778 = vperm.xlu0 %1777, %v1775
    %v1779 = vpop.permute.xlu0 %1778
    %v1781 = vadd.f32 %v1489, %v1779
    %v1782 = vadd.f32 %v1781, %v1501
    %1783 = vset.pattern.permute.xlu0 1
    %1784 = vperm.xlu0 %1783, %v1775
    %v1785 = vpop.permute.xlu0 %1784
    %v1787 = vadd.f32 %v1489, %v1785
    %v1788 = vadd.f32 %v1787, %v1508
    %vm1789 = vcmp.gt.f32.partialorder %v1788, %v1782
    %v1790 = vsel %vm1789, 1, 0
    %v1791 = vsel %vm1789, %v1788, %v1782
    %1792 = vset.pattern.permute.xlu0 2
    %1793 = vperm.xlu0 %1792, %v1775
    %v1794 = vpop.permute.xlu0 %1793
    %v1796 = vadd.f32 %v1489, %v1794
    %v1797 = vadd.f32 %v1796, %v1518
    %vm1798 = vcmp.gt.f32.partialorder %v1797, %v1791
    %v1799 = vsel %vm1798, 2, %v1790
    %v1800 = vsel %vm1798, %v1797, %v1791
    %1801 = vset.pattern.permute.xlu0 3
    %1802 = vperm.xlu0 %1801, %v1775
    %v1803 = vpop.permute.xlu0 %1802
    %v1805 = vadd.f32 %v1489, %v1803
    %v1806 = vadd.f32 %v1805, %v1528
    %vm1807 = vcmp.gt.f32.partialorder %v1806, %v1800
    %v1808 = vsel %vm1807, 3, %v1799
    %v1809 = vsel %vm1807, %v1806, %v1800
    %1810 = vset.pattern.permute.xlu0 4
    %1811 = vperm.xlu0 %1810, %v1775
    %v1812 = vpop.permute.xlu0 %1811
    %v1814 = vadd.f32 %v1489, %v1812
    %v1815 = vadd.f32 %v1814, %v1538
    %vm1816 = vcmp.gt.f32.partialorder %v1815, %v1809
    %v1817 = vsel %vm1816, 4, %v1808
    %v1818 = vsel %vm1816, %v1815, %v1809
    %1819 = vset.pattern.permute.xlu0 5
    %1820 = vperm.xlu0 %1819, %v1775
    %v1821 = vpop.permute.xlu0 %1820
    %v1823 = vadd.f32 %v1489, %v1821
    %v1824 = vadd.f32 %v1823, %v1548
    %vm1825 = vcmp.gt.f32.partialorder %v1824, %v1818
    %v1826 = vsel %vm1825, 5, %v1817
    %v1827 = vsel %vm1825, %v1824, %v1818
    %s1828 = scalar_lea.vmem [#allocation4], 40
    %1829 = vst.msk [vmem:[%s1828] sm:$0xff] %vm1553, %v1826
    %v1830 = vsel %vm704, %v1827, %v1775
    %1832 = vset.pattern.permute.xlu0 0
    %1833 = vperm.xlu0 %1832, %v1830
    %v1834 = vpop.permute.xlu0 %1833
    %v1836 = vadd.f32 %v1490, %v1834
    %v1837 = vadd.f32 %v1836, %v1501
    %1838 = vset.pattern.permute.xlu0 1
    %1839 = vperm.xlu0 %1838, %v1830
    %v1840 = vpop.permute.xlu0 %1839
    %v1842 = vadd.f32 %v1490, %v1840
    %v1843 = vadd.f32 %v1842, %v1508
    %vm1844 = vcmp.gt.f32.partialorder %v1843, %v1837
    %v1845 = vsel %vm1844, 1, 0
    %v1846 = vsel %vm1844, %v1843, %v1837
    %1847 = vset.pattern.permute.xlu0 2
    %1848 = vperm.xlu0 %1847, %v1830
    %v1849 = vpop.permute.xlu0 %1848
    %v1851 = vadd.f32 %v1490, %v1849
    %v1852 = vadd.f32 %v1851, %v1518
    %vm1853 = vcmp.gt.f32.partialorder %v1852, %v1846
    %v1854 = vsel %vm1853, 2, %v1845
    %v1855 = vsel %vm1853, %v1852, %v1846
    %1856 = vset.pattern.permute.xlu0 3
    %1857 = vperm.xlu0 %1856, %v1830
    %v1858 = vpop.permute.xlu0 %1857
    %v1860 = vadd.f32 %v1490, %v1858
    %v1861 = vadd.f32 %v1860, %v1528
    %vm1862 = vcmp.gt.f32.partialorder %v1861, %v1855
    %v1863 = vsel %vm1862, 3, %v1854
    %v1864 = vsel %vm1862, %v1861, %v1855
    %1865 = vset.pattern.permute.xlu0 4
    %1866 = vperm.xlu0 %1865, %v1830
    %v1867 = vpop.permute.xlu0 %1866
    %v1869 = vadd.f32 %v1490, %v1867
    %v1870 = vadd.f32 %v1869, %v1538
    %vm1871 = vcmp.gt.f32.partialorder %v1870, %v1864
    %v1872 = vsel %vm1871, 4, %v1863
    %v1873 = vsel %vm1871, %v1870, %v1864
    %1874 = vset.pattern.permute.xlu0 5
    %1875 = vperm.xlu0 %1874, %v1830
    %v1876 = vpop.permute.xlu0 %1875
    %v1878 = vadd.f32 %v1490, %v1876
    %v1879 = vadd.f32 %v1878, %v1548
    %vm1880 = vcmp.gt.f32.partialorder %v1879, %v1873
    %v1881 = vsel %vm1880, 5, %v1872
    %v1882 = vsel %vm1880, %v1879, %v1873
    %s1883 = scalar_lea.vmem [#allocation4], 48
    %1884 = vst.msk [vmem:[%s1883] sm:$0xff] %vm1553, %v1881
    %v1885 = vsel %vm556, %v1882, %v1830
    %1887 = vset.pattern.permute.xlu0 0
    %1888 = vperm.xlu0 %1887, %v1885
    %v1889 = vpop.permute.xlu0 %1888
    %v1891 = vadd.f32 %v1491, %v1889
    %v1892 = vadd.f32 %v1891, %v1501
    %1893 = vset.pattern.permute.xlu0 1
    %1894 = vperm.xlu0 %1893, %v1885
    %v1895 = vpop.permute.xlu0 %1894
    %v1897 = vadd.f32 %v1491, %v1895
    %v1898 = vadd.f32 %v1897, %v1508
    %vm1899 = vcmp.gt.f32.partialorder %v1898, %v1892
    %v1900 = vsel %vm1899, 1, 0
    %v1901 = vsel %vm1899, %v1898, %v1892
    %1902 = vset.pattern.permute.xlu0 2
    %1903 = vperm.xlu0 %1902, %v1885
    %v1904 = vpop.permute.xlu0 %1903
    %v1906 = vadd.f32 %v1491, %v1904
    %v1907 = vadd.f32 %v1906, %v1518
    %vm1908 = vcmp.gt.f32.partialorder %v1907, %v1901
    %v1909 = vsel %vm1908, 2, %v1900
    %v1910 = vsel %vm1908, %v1907, %v1901
    %1911 = vset.pattern.permute.xlu0 3
    %1912 = vperm.xlu0 %1911, %v1885
    %v1913 = vpop.permute.xlu0 %1912
    %v1915 = vadd.f32 %v1491, %v1913
    %v1916 = vadd.f32 %v1915, %v1528
    %vm1917 = vcmp.gt.f32.partialorder %v1916, %v1910
    %v1918 = vsel %vm1917, 3, %v1909
    %v1919 = vsel %vm1917, %v1916, %v1910
    %1920 = vset.pattern.permute.xlu0 4
    %1921 = vperm.xlu0 %1920, %v1885
    %v1922 = vpop.permute.xlu0 %1921
    %v1924 = vadd.f32 %v1491, %v1922
    %v1925 = vadd.f32 %v1924, %v1538
    %vm1926 = vcmp.gt.f32.partialorder %v1925, %v1919
    %v1927 = vsel %vm1926, 4, %v1918
    %v1928 = vsel %vm1926, %v1925, %v1919
    %1929 = vset.pattern.permute.xlu0 5
    %1930 = vperm.xlu0 %1929, %v1885
    %v1931 = vpop.permute.xlu0 %1930
    %v1933 = vadd.f32 %v1491, %v1931
    %v1934 = vadd.f32 %v1933, %v1548
    %vm1935 = vcmp.gt.f32.partialorder %v1934, %v1928
    %v1936 = vsel %vm1935, 5, %v1927
    %v1937 = vsel %vm1935, %v1934, %v1928
    %s1938 = scalar_lea.vmem [#allocation4], 56
    %1939 = vst.msk [vmem:[%s1938] sm:$0xff] %vm1553, %v1936
    %v1940 = vsel %vm408, %v1937, %v1885
    %v1941 = vld [vmem:[%s9] sm:$0x1]
    %v1943 = vperm.slane %v1941, 0
    %v1945 = vadd.f32 %v1940, %v1943
    %v1946 = vsel %vm1553, %v1945, -inf
    %1947 = vmax.xlane.f32.xlu0 %v1946
    %v1948 = vpop.xlane.xlu0 %1947
    %vm1949 = vcmask 7168
    %1950 = vst.msk [vmem:[%s11] sm:$0xff] %vm1949, %v1948
    %1951 = vmax.index.xlane.f32.xlu0 %v1946
    %v1952 = vpop.xlane.xlu0 %1951
    %vm1953 = vcmp.eq.s32.totalorder %v40, 7
    %vm1954 = vmand %vm408, %vm1953
    %v1955 = vsel %vm1954, %v1952, 0
    %vm1956 = vcmp.eq.s32.totalorder %v40, %v1952
    %v1957 = vld [vmem:[%s1938] sm:$0xff]
    %v1958 = vsel %vm1956, %v1957, 0
    %v1959 = vsel %vm1553, %v1958, 0
    %v1960 = vand.u32 %v1959, 65535
    %v1961 = vshrl.u32 %v1959, 16
    %v1962 = vcvt.s32.f32 %v1960
    %v1963 = vcvt.s32.f32 %v1961
    %1964 = vadd.xlane.f32.xlu0 %v1962
    %v1965 = vpop.xlane.xlu0 %1964
    %1966 = vadd.xlane.f32.xlu0 %v1963
    %v1967 = vpop.xlane.xlu0 %1966
    %v1968 = vcvt.f32.s32 %v1965
    %v1969 = vcvt.f32.s32 %v1967
    %v1970 = vshll.u32 %v1969, 16
    %v1971 = vadd.s32 %v1970, %v1968
    %v1972 = vsel %vm403, %v1971, %v1952
    %vm1973 = vcmp.eq.s32.totalorder %v40, 6
    %vm1974 = vmand %vm556, %vm1973
    %1975 = vset.pattern.permute.xlu0 0
    %1976 = vperm.xlu0 %1975, %v1972
    %v1977 = vpop.permute.xlu0 %1976
    %v1978 = vsel %vm1974, %v1977, %v1955
    %vm1979 = vcmp.eq.s32.totalorder %v40, %v1977
    %v1980 = vld [vmem:[%s1883] sm:$0xff]
    %v1981 = vsel %vm1979, %v1980, 0
    %v1982 = vsel %vm1553, %v1981, 0
    %v1983 = vand.u32 %v1982, 65535
    %v1984 = vshrl.u32 %v1982, 16
    %v1985 = vcvt.s32.f32 %v1983
    %v1986 = vcvt.s32.f32 %v1984
    %1987 = vadd.xlane.f32.xlu0 %v1985
    %v1988 = vpop.xlane.xlu0 %1987
    %1989 = vadd.xlane.f32.xlu0 %v1986
    %v1990 = vpop.xlane.xlu0 %1989
    %v1991 = vcvt.f32.s32 %v1988
    %v1992 = vcvt.f32.s32 %v1990
    %v1993 = vshll.u32 %v1992, 16
    %v1994 = vadd.s32 %v1993, %v1991
    %v1995 = vsel %vm551, %v1994, %v1972
    %vm1996 = vcmp.eq.s32.totalorder %v40, 5
    %vm1997 = vmand %vm704, %vm1996
    %1998 = vset.pattern.permute.xlu0 0
    %1999 = vperm.xlu0 %1998, %v1995
    %v2000 = vpop.permute.xlu0 %1999
    %v2001 = vsel %vm1997, %v2000, %v1978
    %vm2002 = vcmp.eq.s32.totalorder %v40, %v2000
    %v2003 = vld [vmem:[%s1828] sm:$0xff]
    %v2004 = vsel %vm2002, %v2003, 0
    %v2005 = vsel %vm1553, %v2004, 0
    %v2006 = vand.u32 %v2005, 65535
    %v2007 = vshrl.u32 %v2005, 16
    %v2008 = vcvt.s32.f32 %v2006
    %v2009 = vcvt.s32.f32 %v2007
    %2010 = vadd.xlane.f32.xlu0 %v2008
    %v2011 = vpop.xlane.xlu0 %2010
    %2012 = vadd.xlane.f32.xlu0 %v2009
    %v2013 = vpop.xlane.xlu0 %2012
    %v2014 = vcvt.f32.s32 %v2011
    %v2015 = vcvt.f32.s32 %v2013
    %v2016 = vshll.u32 %v2015, 16
    %v2017 = vadd.s32 %v2016, %v2014
    %v2018 = vsel %vm699, %v2017, %v1995
    %vm2019 = vmand %vm852, %vm1492
    %2020 = vset.pattern.permute.xlu0 0
    %2021 = vperm.xlu0 %2020, %v2018
    %v2022 = vpop.permute.xlu0 %2021
    %v2023 = vsel %vm2019, %v2022, %v2001
    %vm2024 = vcmp.eq.s32.totalorder %v40, %v2022
    %v2025 = vld [vmem:[%s1773] sm:$0xff]
    %v2026 = vsel %vm2024, %v2025, 0
    %v2027 = vsel %vm1553, %v2026, 0
    %v2028 = vand.u32 %v2027, 65535
    %v2029 = vshrl.u32 %v2027, 16
    %v2030 = vcvt.s32.f32 %v2028
    %v2031 = vcvt.s32.f32 %v2029
    %2032 = vadd.xlane.f32.xlu0 %v2030
    %v2033 = vpop.xlane.xlu0 %2032
    %2034 = vadd.xlane.f32.xlu0 %v2031
    %v2035 = vpop.xlane.xlu0 %2034
    %v2036 = vcvt.f32.s32 %v2033
    %v2037 = vcvt.f32.s32 %v2035
    %v2038 = vshll.u32 %v2037, 16
    %v2039 = vadd.s32 %v2038, %v2036
    %v2040 = vsel %vm847, %v2039, %v2018
    %vm2041 = vcmp.eq.s32.totalorder %v40, 3
    %vm2042 = vmand %vm778, %vm2041
    %2043 = vset.pattern.permute.xlu0 0
    %2044 = vperm.xlu0 %2043, %v2040
    %v2045 = vpop.permute.xlu0 %2044
    %v2046 = vsel %vm2042, %v2045, %v2023
    %vm2047 = vcmp.eq.s32.totalorder %v40, %v2045
    %v2048 = vld [vmem:[%s1718] sm:$0xff]
    %v2049 = vsel %vm2047, %v2048, 0
    %v2050 = vsel %vm1553, %v2049, 0
    %v2051 = vand.u32 %v2050, 65535
    %v2052 = vshrl.u32 %v2050, 16
    %v2053 = vcvt.s32.f32 %v2051
    %v2054 = vcvt.s32.f32 %v2052
    %2055 = vadd.xlane.f32.xlu0 %v2053
    %v2056 = vpop.xlane.xlu0 %2055
    %2057 = vadd.xlane.f32.xlu0 %v2054
    %v2058 = vpop.xlane.xlu0 %2057
    %v2059 = vcvt.f32.s32 %v2056
    %v2060 = vcvt.f32.s32 %v2058
    %v2061 = vshll.u32 %v2060, 16
    %v2062 = vadd.s32 %v2061, %v2059
    %v2063 = vsel %vm773, %v2062, %v2040
    %vm2064 = vcmp.eq.s32.totalorder %v40, 2
    %vm2065 = vmand %vm630, %vm2064
    %2066 = vset.pattern.permute.xlu0 0
    %2067 = vperm.xlu0 %2066, %v2063
    %v2068 = vpop.permute.xlu0 %2067
    %v2069 = vsel %vm2065, %v2068, %v2046
    %vm2070 = vcmp.eq.s32.totalorder %v40, %v2068
    %v2071 = vld [vmem:[%s1663] sm:$0xff]
    %v2072 = vsel %vm2070, %v2071, 0
    %v2073 = vsel %vm1553, %v2072, 0
    %v2074 = vand.u32 %v2073, 65535
    %v2075 = vshrl.u32 %v2073, 16
    %v2076 = vcvt.s32.f32 %v2074
    %v2077 = vcvt.s32.f32 %v2075
    %2078 = vadd.xlane.f32.xlu0 %v2076
    %v2079 = vpop.xlane.xlu0 %2078
    %2080 = vadd.xlane.f32.xlu0 %v2077
    %v2081 = vpop.xlane.xlu0 %2080
    %v2082 = vcvt.f32.s32 %v2079
    %v2083 = vcvt.f32.s32 %v2081
    %v2084 = vshll.u32 %v2083, 16
    %v2085 = vadd.s32 %v2084, %v2082
    %v2086 = vsel %vm625, %v2085, %v2063
    %vm2087 = vcmp.eq.s32.totalorder %v40, 1
    %vm2088 = vmand %vm482, %vm2087
    %2089 = vset.pattern.permute.xlu0 0
    %2090 = vperm.xlu0 %2089, %v2086
    %v2091 = vpop.permute.xlu0 %2090
    %v2092 = vsel %vm2088, %v2091, %v2069
    %vm2093 = vcmp.eq.s32.totalorder %v40, %v2091
    %v2094 = vld [vmem:[%s1608] sm:$0xff]
    %v2095 = vsel %vm2093, %v2094, 0
    %v2096 = vsel %vm1553, %v2095, 0
    %v2097 = vand.u32 %v2096, 65535
    %v2098 = vshrl.u32 %v2096, 16
    %v2099 = vcvt.s32.f32 %v2097
    %v2100 = vcvt.s32.f32 %v2098
    %2101 = vadd.xlane.f32.xlu0 %v2099
    %v2102 = vpop.xlane.xlu0 %2101
    %2103 = vadd.xlane.f32.xlu0 %v2100
    %v2104 = vpop.xlane.xlu0 %2103
    %v2105 = vcvt.f32.s32 %v2102
    %v2106 = vcvt.f32.s32 %v2104
    %v2107 = vshll.u32 %v2106, 16
    %v2108 = vadd.s32 %v2107, %v2105
    %v2109 = vsel %vm477, %v2108, %v2086
    %vm2110 = vcmp.eq.s32.totalorder %v40, 0
    %vm2111 = vmand %vm338, %vm2110
    %2112 = vset.pattern.permute.xlu0 0
    %2113 = vperm.xlu0 %2112, %v2109
    %v2114 = vpop.permute.xlu0 %2113
    %v2115 = vsel %vm2111, %v2114, %v2092
    %2116 = vst.msk [vmem:[#allocation5] sm:$0xff] %vm168, %v2115
    // Predicated region
    $region42: #{tpu_custom_call.1} parent=1 // pred_check
      _
    $region43: #{tpu_custom_call.1} parent=1 // pred_check_branch
      %2118 = sbr.rel (0) target = $region45
    $region44: #{tpu_custom_call.1} parent=1 // pred_region
      %2120 = vsyncadd [#allocation6], 0
      %s2122 = sshll.u32 [#allocation5], 4
      %s2123 = int_to_ptr.vmem [resolvable:$true] %s2122
      %s2124 = sshll.u32 %s10, 4
      %s2125 = int_to_ptr.hbm [resolvable:$true] %s2124
      %2127 = dma.vmem_to_hbm [thread:$0]  %s2123, 128, %s2125, [#allocation6]
    $region45: #{tpu_custom_call.1} parent=1 // pred_fallthru
      _
    // Predicated region
    $region46: #{tpu_custom_call.1} parent=1 // pred_check
      _
    $region47: #{tpu_custom_call.1} parent=1 // pred_check_branch
      %2129 = sbr.rel (0) target = $region49
    $region48: #{tpu_custom_call.1} parent=1 // pred_region
      _
    $region49: #{tpu_custom_call.1} parent=1 // pred_fallthru
      _
    // Predicated region
    $region50: #{tpu_custom_call.1} parent=1 // pred_check
      _
    $region51: #{tpu_custom_call.1} parent=1 // pred_check_branch
      %2131 = sbr.rel (0) target = $region53
    $region52: #{tpu_custom_call.1} parent=1 // pred_region
      %2133 = dma.done [#allocation6], 128
    $region53: #{tpu_custom_call.1} parent=1 // pred_fallthru
      _
    // Predicated region
    $region54: #{tpu_custom_call.1} parent=1 // pred_check
      _
    $region55: #{tpu_custom_call.1} parent=1 // pred_check_branch
      %2135 = sbr.rel (0) target = $region57
    $region56: #{tpu_custom_call.1} parent=1 // pred_region
      _
    $region57: #{tpu_custom_call.1} parent=1 // pred_fallthru
      _
    %2136 = vsyncpa [#allocation6], 1

</llo_original>
